<compile_context>
chip_gen: v7x
topology: tpu7x:2x2x1
jax: 0.10.0
libtpu: 0.0.40
codegen_flags: <defaults>
</compile_context>

<pallas_src>
import functools

import jax
import jax.numpy as jnp
from jax.experimental import pallas as pl
from jax.experimental.pallas import tpu as pltpu


LANE = 128      # lane width (last-dim alignment)
SUBLANE = 8     # sublane width (second-last-dim alignment)


def _round_up(x, m):
    return ((x + m - 1) // m) * m


def _largest_divisor_tile(n, cap):
    for t in (1024, 512, 256, 128, 64, 32, 16, 8):
        if t <= cap and t <= n and n % t == 0:
            return t
    return n


def _row_tile(n, min_steps=2):
    """Divisor of n, multiple of 8, <=512, preferring >= min_steps grid steps."""
    cap = min(512, n)
    if n // cap < min_steps:
        cap = max(SUBLANE, n // min_steps)
    r = (cap // SUBLANE) * SUBLANE
    while r >= SUBLANE:
        if n % r == 0:
            return r
        r -= SUBLANE
    return n


def _time_tile(t, cap=16):
    for d in range(min(t, cap), 0, -1):
        if t % d == 0:
            return d
    return t


def _v_tile(v_pad, cap=1024):
    for t in (1024, 512, 256, 128):
        if t <= cap and t <= v_pad and v_pad % t == 0:
            return t
    return v_pad


# ----------------------------------------------------------------------------
# Kernel 1: encoder stand-in (conv-stem + global avg pool + embed linear)
#   grid over pixel tiles, pooled sum accumulated in VMEM scratch.
# ----------------------------------------------------------------------------
def _encoder_kernel(x_ref, wb_ref, bb_ref, we_ref, be_ref, out_ref, acc_ref,
                    *, inv_pixels):
    p = pl.program_id(0)

    @pl.when(p == 0)
    def _():
        acc_ref[...] = jnp.zeros_like(acc_ref)

    xb = x_ref[...]                                       # [B_pad, tile_p, C]
    n_chan = wb_ref.shape[0]
    # K = C is tiny: channel contraction as whole-block VPU broadcast-MACs
    # (no per-batch-row loop, no masked single-sublane stores).
    h = xb[:, :, 0:1] * wb_ref[0:1, :] + bb_ref[...]
    for c in range(1, n_chan):
        h = h + xb[:, :, c:c + 1] * wb_ref[c:c + 1, :]
    h = jnp.maximum(h, 0.0)                               # ReLU
    acc_ref[...] = acc_ref[...] + jnp.sum(h, axis=1)      # single dense accumulate

    @pl.when(p == pl.num_programs(0) - 1)
    def _():
        pooled = (acc_ref[...] * inv_pixels).astype(we_ref.dtype)
        out_ref[...] = (jnp.dot(pooled, we_ref[...],
                                preferred_element_type=jnp.float32)
                        + be_ref[...])


def encoder_pallas(images_nchw, enc_params):
    # images already batch-padded to a sublane multiple by the caller.
    B_pad, C, H, W = images_nchw.shape
    P = H * W
    # TODO(synk): for ResNet-scale inputs, re-lay-out so a 128-multiple (pixel) axis
    # is lane-minor; with C=3 minor the input block is lane-sparse (fine at 16x16).
    x = jnp.transpose(images_nchw, (0, 2, 3, 1)).reshape(B_pad, P, C)
    Fdim = enc_params["w_backbone"].shape[1]
    E_pad = enc_params["w_embed"].shape[1]
    tile_p = _largest_divisor_tile(P, cap=128)
    return pl.pallas_call(
        functools.partial(_encoder_kernel, inv_pixels=1.0 / P),
        out_shape=jax.ShapeDtypeStruct((B_pad, E_pad), jnp.float32),
        grid=(P // tile_p,),
        in_specs=[pl.BlockSpec((B_pad, tile_p, C), lambda p: (0, p, 0)),
                  pl.BlockSpec((C, Fdim), lambda p: (0, 0)),
                  pl.BlockSpec((1, Fdim), lambda p: (0, 0)),
                  pl.BlockSpec((Fdim, E_pad), lambda p: (0, 0)),
                  pl.BlockSpec((1, E_pad), lambda p: (0, 0))],
        out_specs=pl.BlockSpec((B_pad, E_pad), lambda p: (0, 0)),
        scratch_shapes=[pltpu.VMEM((B_pad, Fdim), jnp.float32)],
        compiler_params=pltpu.CompilerParams(dimension_semantics=("arbitrary",)),
    )(x, enc_params["w_backbone"], enc_params["b_backbone"],
      enc_params["w_embed"], enc_params["b_embed"])


# ----------------------------------------------------------------------------
# Kernel 2: hoisted input projection
#   gates_x = x @ W_ih + b for ALL timesteps in one big matmul (bf16 output).
#   Embedding dropout is already folded into x by the glue (no mask stream).
# ----------------------------------------------------------------------------
def _gates_x_kernel(x_ref, w_ref, b_ref, o_ref):
    x = x_ref[...].astype(w_ref.dtype)
    o_ref[...] = (jnp.dot(x, w_ref[...], preferred_element_type=jnp.float32)
                  + b_ref[...]).astype(o_ref.dtype)


def gates_x_pallas(xs_tbe, lstm_params, *, out_dtype=jnp.bfloat16):
    T, B_pad, E_pad = xs_tbe.shape
    G = lstm_params["w_ih"].shape[1]                  # 4 * H_pad
    N = T * B_pad
    x2 = xs_tbe.reshape(N, E_pad)
    row = _row_tile(N)                                # divides N exactly: no pad/slice
    out = pl.pallas_call(
        _gates_x_kernel,
        out_shape=jax.ShapeDtypeStruct((N, G), out_dtype),
        grid=(N // row,),
        in_specs=[pl.BlockSpec((row, E_pad), lambda r: (r, 0)),
                  pl.BlockSpec((E_pad, G), lambda r: (0, 0)),
                  pl.BlockSpec((1, G), lambda r: (0, 0))],
        out_specs=pl.BlockSpec((row, G), lambda r: (r, 0)),
        compiler_params=pltpu.CompilerParams(dimension_semantics=("parallel",)),
    )(x2, lstm_params["w_ih"], lstm_params["b"])
    return out.reshape(T, B_pad, G)


# ----------------------------------------------------------------------------
# Kernel 3: time-blocked LSTM recurrence + fused output-dropout + Linear(H -> V)
#   grid = (V tiles [parallel], time blocks [arbitrary]); h/c in VMEM scratch,
#   per-block hidden rows staged in VMEM and one batched FC matmul per block.
#   PyTorch gate order (i, f, g, o).
# ----------------------------------------------------------------------------
def _lstm_fc_kernel(*refs, tt, inv_keep, has_mask):
    if has_mask:
        (gx_ref, whh_ref, hm_ref, wfc_ref, bfc_ref, o_ref,
         h_scr, c_scr, hseq_scr) = refs
    else:
        (gx_ref, whh_ref, wfc_ref, bfc_ref, o_ref,
         h_scr, c_scr, hseq_scr) = refs
    tb = pl.program_id(1)

    @pl.when(tb == 0)
    def _():
        h_scr[...] = jnp.zeros_like(h_scr)
        c_scr[...] = jnp.zeros_like(c_scr)

    Bp, Hp = h_scr.shape
    if has_mask:                                      # int8 {0,1} -> f32 * 1/keep, once
        hm = hm_ref[...].astype(jnp.float32) * inv_keep

    h = h_scr[...]
    c = c_scr[...]
    for i in range(tt):                               # static unroll over the time block
        gates = gx_ref[i].astype(jnp.float32) + jnp.dot(
            h.astype(whh_ref.dtype), whh_ref[...],
            preferred_element_type=jnp.float32)
        ig = jax.nn.sigmoid(gates[:, 0 * Hp:1 * Hp])
        fg = jax.nn.sigmoid(gates[:, 1 * Hp:2 * Hp])
        gg = jnp.tanh(gates[:, 2 * Hp:3 * Hp])
        og = jax.nn.sigmoid(gates[:, 3 * Hp:4 * Hp])
        c = fg * c + ig * gg
        h = og * jnp.tanh(c)
        hd = h * hm[i] if has_mask else h             # fused output dropout
        hseq_scr[i * Bp:(i + 1) * Bp, :] = hd
    h_scr[...] = h
    c_scr[...] = c

    # One batched FC over the whole time block: [TT*Bp, Hp] @ [Hp, tv].
    hd_all = hseq_scr[...].astype(wfc_ref.dtype)
    logits = (jnp.dot(hd_all, wfc_ref[...], preferred_element_type=jnp.float32)
              + bfc_ref[...])
    o_ref[...] = logits.reshape(tt, Bp, -1)


def lstm_fc_pallas(gates_x, h_mult, lstm_params, fcn_params, *, drop_prob, training):
    T, B_pad, G = gates_x.shape
    H_pad = lstm_params["w_hh"].shape[0]
    V_pad = fcn_params["w"].shape[1]
    tt = _time_tile(T)                 # whole T at demo sizes -> single time step
    tv = _v_tile(V_pad)                # V tiling: VMEM fit (v5e/v7x) + 2-TC sharding (v7x)
    has_mask = training and drop_prob > 0.0 and h_mult is not None
    inv_keep = 1.0 / (1.0 - drop_prob) if has_mask else 1.0

    kernel = functools.partial(_lstm_fc_kernel, tt=tt, inv_keep=inv_keep,
                               has_mask=has_mask)
    in_specs = [pl.BlockSpec((tt, B_pad, G), lambda v, t: (t, 0, 0)),
                pl.BlockSpec((H_pad, G), lambda v, t: (0, 0))]
    args = [gates_x, lstm_params["w_hh"]]
    if has_mask:
        in_specs.append(pl.BlockSpec((tt, B_pad, H_pad), lambda v, t: (t, 0, 0)))
        args.append(h_mult)
    in_specs += [pl.BlockSpec((H_pad, tv), lambda v, t: (0, v)),
                 pl.BlockSpec((1, tv), lambda v, t: (0, v))]
    args += [fcn_params["w"], fcn_params["b"]]

    # NOTE: at production vocab sizes on v5e, also set vmem_limit_bytes here (16 MiB
    # default scoped VMEM) or shrink tv; demo sizes fit with room to spare.
    return pl.pallas_call(
        kernel,
        out_shape=jax.ShapeDtypeStruct((T, B_pad, V_pad), jnp.float32),
        grid=(V_pad // tv, T // tt),
        in_specs=in_specs,
        out_specs=pl.BlockSpec((tt, B_pad, tv), lambda v, t: (t, 0, v)),
        scratch_shapes=[pltpu.VMEM((B_pad, H_pad), jnp.float32),
                        pltpu.VMEM((B_pad, H_pad), jnp.float32),
                        pltpu.VMEM((tt * B_pad, H_pad), jnp.float32)],
        compiler_params=pltpu.CompilerParams(
            dimension_semantics=("parallel", "arbitrary")),
    )(*args)


# ----------------------------------------------------------------------------
# Full EncoderDecoder_dropout forward
# ----------------------------------------------------------------------------
def encoder_decoder_forward(params, images, captions, *, drop_prob=0.3,
                            training=True, rng=None):
    if rng is None:
        rng = jax.random.PRNGKey(0)
    k_emb, k_h = jax.random.split(rng)

    B = images.shape[0]
    H_pad = params["lstm"]["w_hh"].shape[0]
    V = params["dims"]["vocab"]
    B_pad = _round_up(B, SUBLANE)
    use_drop = training and drop_prob > 0.0
    keep = 1.0 - drop_prob

    # Encoder (batch padded to a sublane multiple so all stores are dense).
    if B_pad != B:
        images = jnp.pad(images, ((0, B_pad - B), (0, 0), (0, 0), (0, 0)))
    features = encoder_pallas(images, params["enc"])              # [B_pad, E_pad]

    # Embedding lookup (gather stays in XLA glue).  Embedding dropout is applied
    # here so it fuses into the xs-construction pass -- no mask stream into the
    # matmul kernel.  It applies only to caption embeddings, not the image feature,
    # matching the reference (drop(embeddings) before the concat).
    emb = params["emb_table"][captions[:, :-1]]                   # [B, T-1, E_pad]
    if use_drop:
        m = jax.random.bernoulli(k_emb, keep, emb.shape)
        emb = emb * (m.astype(jnp.float32) * (1.0 / keep))
    if B_pad != B:
        emb = jnp.pad(emb, ((0, B_pad - B), (0, 0), (0, 0)))
    inputs = jnp.concatenate([features[:, None, :], emb], axis=1)  # [B_pad, T, E_pad]
    T = inputs.shape[1]
    xs = jnp.transpose(inputs, (1, 0, 2))                          # [T, B_pad, E_pad]

    # Output-dropout mask for the LSTM hidden states: compact int8 {0,1} stream,
    # 1/keep scale is a compile-time constant inside the kernel.
    h_mult = None
    if use_drop:
        h_mult = jax.random.bernoulli(k_h, keep, (T, B_pad, H_pad)).astype(jnp.int8)

    # Hoisted input projection, then the time-blocked recurrence with fused
    # output-dropout + batched FC.
    gates_x = gates_x_pallas(xs, params["lstm"])                   # [T,B_pad,4H] bf16
    logits_tm = lstm_fc_pallas(gates_x, h_mult, params["lstm"], params["fcn"],
                               drop_prob=drop_prob, training=training)

    # Only the small final logits are transposed / un-padded.
    return jnp.transpose(logits_tm, (1, 0, 2))[:B, :, :V]          # [B, T, vocab]


# ----------------------------------------------------------------------------
# Deterministic parameter init (shapes implied by the module __init__), with
# lane/sublane zero-padding and bf16 matmul weights.
# ----------------------------------------------------------------------------
def init_params(key, *, in_channels=3, backbone_feat=128, embed_size=32,
                hidden_size=32, vocab_size=64, matmul_dtype=jnp.bfloat16):
    E_pad = _round_up(embed_size, LANE)
    H_pad = _round_up(hidden_size, LANE)
    V_pad = _round_up(vocab_size, LANE)
    ks = jax.random.split(key, 10)
    s = 0.1

    def pad2(a, shape):
        out = jnp.zeros(shape, a.dtype)
        return out.at[:a.shape[0], :a.shape[1]].set(a)

    def pad_gates(w, rows_pad):   # per-gate padding keeps i/f/g/o slices 128-aligned
        parts = jnp.split(w, 4, axis=1)
        return jnp.concatenate([pad2(p, (rows_pad, H_pad)) for p in parts], axis=1)

    wb = s * jax.random.normal(ks[0], (in_channels, backbone_feat), jnp.float32)
    bb = s * jax.random.normal(ks[1], (1, backbone_feat), jnp.float32)
    we = s * jax.random.normal(ks[2], (backbone_feat, embed_size), jnp.float32)
    be = s * jax.random.normal(ks[3], (1, embed_size), jnp.float32)
    emb = s * jax.random.normal(ks[4], (vocab_size, embed_size), jnp.float32)
    # stored transposed relative to torch (x @ W_ih, h @ W_hh); b = b_ih + b_hh
    w_ih = s * jax.random.normal(ks[5], (embed_size, 4 * hidden_size), jnp.float32)
    w_hh = s * jax.random.normal(ks[6], (hidden_size, 4 * hidden_size), jnp.float32)
    b_l = s * jax.random.normal(ks[7], (1, 4 * hidden_size), jnp.float32)
    w_fc = s * jax.random.normal(ks[8], (hidden_size, vocab_size), jnp.float32)
    b_fc = s * jax.random.normal(ks[9], (1, vocab_size), jnp.float32)

    return {
        "enc": {
            "w_backbone": wb,                                        # f32, VPU path
            "b_backbone": bb,
            "w_embed": pad2(we, (backbone_feat, E_pad)).astype(matmul_dtype),
            "b_embed": pad2(be, (1, E_pad)),
        },
        "emb_table": pad2(emb, (vocab_size, E_pad)),
        "lstm": {
            "w_ih": pad_gates(w_ih, E_pad).astype(matmul_dtype),
            "w_hh": pad_gates(w_hh, H_pad).astype(matmul_dtype),
            "b": pad_gates(b_l, 1),
        },
        "fcn": {
            "w": pad2(w_fc, (H_pad, V_pad)).astype(matmul_dtype),
            "b": pad2(b_fc, (1, V_pad)),
        },
        "dims": {"embed": embed_size, "hidden": hidden_size, "vocab": vocab_size},
    }


if __name__ == "__main__":
    B, C, HW = 2, 3, 16
    embed_size, hidden_size, vocab_size, seq_len = 32, 32, 64, 8

    key = jax.random.PRNGKey(0)
    kp, ki, kc, kd = jax.random.split(key, 4)
    params = init_params(kp, in_channels=C, embed_size=embed_size,
                         hidden_size=hidden_size, vocab_size=vocab_size)

    images = jax.random.normal(ki, (B, C, HW, HW), jnp.float32)          # NCHW
    captions = jax.random.randint(kc, (B, seq_len), 0, vocab_size, dtype=jnp.int32)

    out = encoder_decoder_forward(params, images, captions,
                                  drop_prob=0.3, training=True, rng=kd)
    out = jax.block_until_ready(out)
    assert out.shape == (B, seq_len, vocab_size), out.shape
    assert bool(jnp.all(jnp.isfinite(out)))

    # Inference path (no dropout masks streamed at all).
    out_eval = encoder_decoder_forward(params, images, captions,
                                       drop_prob=0.3, training=False, rng=kd)
    out_eval = jax.block_until_ready(out_eval)
    assert out_eval.shape == (B, seq_len, vocab_size), out_eval.shape
    assert bool(jnp.all(jnp.isfinite(out_eval)))
    print("KERNEL_OK")
</pallas_src>

<mosaic_0001>
module attributes {stable_mosaic.version = 11 : i64} {
  func.func @_encoder_kernel(%arg0: i32, %arg1: memref<8x128x3xf32, #tpu.memory_space<vmem>>, %arg2: memref<3x128xf32, #tpu.memory_space<vmem>>, %arg3: memref<1x128xf32, #tpu.memory_space<vmem>>, %arg4: memref<128x128xbf16, #tpu.memory_space<vmem>>, %arg5: memref<1x128xf32, #tpu.memory_space<vmem>>, %arg6: memref<8x128xf32, #tpu.memory_space<vmem>>, %arg7: memref<8x128xf32, #tpu.memory_space<vmem>>) attributes {dimension_semantics = [#tpu.dimension_semantics<arbitrary>], iteration_bounds = array<i64: 2>, scalar_prefetch = 0 : i64, scratch_operands = 1 : i64, tpu.core_type = #tpu.core_type<tc>, window_params = [{transform_indices = @transform_0, window_bounds = array<i64: 8, 128, 3>}, {pipeline_mode = #tpu.pipeline_mode<synchronous>, transform_indices = @transform_1, window_bounds = array<i64: 3, 128>}, {pipeline_mode = #tpu.pipeline_mode<synchronous>, transform_indices = @transform_2, window_bounds = array<i64: 1, 128>}, {pipeline_mode = #tpu.pipeline_mode<synchronous>, transform_indices = @transform_3, window_bounds = array<i64: 128, 128>}, {pipeline_mode = #tpu.pipeline_mode<synchronous>, transform_indices = @transform_4, window_bounds = array<i64: 1, 128>}, {pipeline_mode = #tpu.pipeline_mode<synchronous>, transform_indices = @transform_5, window_bounds = array<i64: 8, 128>}]} {
    %c0_i32 = arith.constant 0 : i32
    %0 = arith.cmpi eq, %arg0, %c0_i32 : i32
    %1 = arith.extui %0 : i1 to i32
    %c0_i32_0 = arith.constant 0 : i32
    %2 = arith.cmpi ne, %1, %c0_i32_0 : i32
    scf.if %2 {
      %cst_15 = arith.constant 0.000000e+00 : f32
      %37 = vector.broadcast %cst_15 : f32 to vector<8x128xf32>
      %c0_16 = arith.constant 0 : index
      %c0_17 = arith.constant 0 : index
      %38 = vector.load %arg7[%c0_16, %c0_17] : memref<8x128xf32, #tpu.memory_space<vmem>>, vector<8x128xf32>
      tpu.vector_store %arg7[%c0_16, %c0_17], %37 {strides = array<i32>} : memref<8x128xf32, #tpu.memory_space<vmem>>, vector<8x128xf32>,
    } else {
    }
    %c0 = arith.constant 0 : index
    %c0_1 = arith.constant 0 : index
    %c0_2 = arith.constant 0 : index
    %3 = vector.load %arg1[%c0, %c0_1, %c0_2] : memref<8x128x3xf32, #tpu.memory_space<vmem>>, vector<8x128x3xf32>
    %4 = vector.extract_strided_slice %3 {offsets = [0, 0, 0], sizes = [8, 128, 1], strides = [1, 1, 1]} : vector<8x128x3xf32> to vector<8x128x1xf32>
    %c0_3 = arith.constant 0 : index
    %c0_4 = arith.constant 0 : index
    %5 = vector.load %arg2[%c0_3, %c0_4] : memref<3x128xf32, #tpu.memory_space<vmem>>, vector<1x128xf32>
    %6 = vector.shape_cast %5 : vector<1x128xf32> to vector<1x1x128xf32>
    %7 = vector.broadcast %4 : vector<8x128x1xf32> to vector<8x128x128xf32>
    %8 = vector.broadcast %6 : vector<1x1x128xf32> to vector<8x128x128xf32>
    %9 = arith.mulf %7, %8 : vector<8x128x128xf32>
    %c0_5 = arith.constant 0 : index
    %c0_6 = arith.constant 0 : index
    %10 = vector.load %arg3[%c0_5, %c0_6] : memref<1x128xf32, #tpu.memory_space<vmem>>, vector<1x128xf32>
    %11 = vector.shape_cast %10 : vector<1x128xf32> to vector<1x1x128xf32>
    %12 = vector.broadcast %11 : vector<1x1x128xf32> to vector<8x128x128xf32>
    %13 = arith.addf %9, %12 : vector<8x128x128xf32>
    %14 = vector.extract_strided_slice %3 {offsets = [0, 0, 1], sizes = [8, 128, 1], strides = [1, 1, 1]} : vector<8x128x3xf32> to vector<8x128x1xf32>
    %c1 = arith.constant 1 : index
    %c0_7 = arith.constant 0 : index
    %15 = vector.load %arg2[%c1, %c0_7] : memref<3x128xf32, #tpu.memory_space<vmem>>, vector<1x128xf32>
    %16 = vector.shape_cast %15 : vector<1x128xf32> to vector<1x1x128xf32>
    %17 = vector.broadcast %14 : vector<8x128x1xf32> to vector<8x128x128xf32>
    %18 = vector.broadcast %16 : vector<1x1x128xf32> to vector<8x128x128xf32>
    %19 = arith.mulf %17, %18 : vector<8x128x128xf32>
    %20 = arith.addf %13, %19 : vector<8x128x128xf32>
    %21 = vector.extract_strided_slice %3 {offsets = [0, 0, 2], sizes = [8, 128, 1], strides = [1, 1, 1]} : vector<8x128x3xf32> to vector<8x128x1xf32>
    %c2 = arith.constant 2 : index
    %c0_8 = arith.constant 0 : index
    %22 = vector.load %arg2[%c2, %c0_8] : memref<3x128xf32, #tpu.memory_space<vmem>>, vector<1x128xf32>
    %23 = vector.shape_cast %22 : vector<1x128xf32> to vector<1x1x128xf32>
    %24 = vector.broadcast %21 : vector<8x128x1xf32> to vector<8x128x128xf32>
    %25 = vector.broadcast %23 : vector<1x1x128xf32> to vector<8x128x128xf32>
    %26 = arith.mulf %24, %25 : vector<8x128x128xf32>
    %27 = arith.addf %20, %26 : vector<8x128x128xf32>
    %cst = arith.constant 0.000000e+00 : f32
    %28 = vector.broadcast %cst : f32 to vector<8x128x128xf32>
    %29 = arith.maximumf %27, %28 : vector<8x128x128xf32>
    %c0_9 = arith.constant 0 : index
    %c0_10 = arith.constant 0 : index
    %30 = vector.load %arg7[%c0_9, %c0_10] : memref<8x128xf32, #tpu.memory_space<vmem>>, vector<8x128xf32>
    %cst_11 = arith.constant dense<0.000000e+00> : vector<8x128xf32>
    %31 = vector.multi_reduction <add>, %29, %cst_11 [1] : vector<8x128x128xf32> to vector<8x128xf32>
    %32 = arith.addf %30, %31 : vector<8x128xf32>
    %c0_12 = arith.constant 0 : index
    %c0_13 = arith.constant 0 : index
    %33 = vector.load %arg7[%c0_12, %c0_13] : memref<8x128xf32, #tpu.memory_space<vmem>>, vector<8x128xf32>
    tpu.vector_store %arg7[%c0_12, %c0_13], %32 {strides = array<i32>} : memref<8x128xf32, #tpu.memory_space<vmem>>, vector<8x128xf32>,
    %c1_i32 = arith.constant 1 : i32
    %34 = arith.cmpi eq, %arg0, %c1_i32 : i32
    %35 = arith.extui %34 : i1 to i32
    %c0_i32_14 = arith.constant 0 : i32
    %36 = arith.cmpi ne, %35, %c0_i32_14 : i32
    scf.if %36 {
      %c0_15 = arith.constant 0 : index
      %c0_16 = arith.constant 0 : index
      %37 = vector.load %arg7[%c0_15, %c0_16] : memref<8x128xf32, #tpu.memory_space<vmem>>, vector<8x128xf32>
      %cst_17 = arith.constant 3.906250e-03 : f32
      %38 = vector.broadcast %cst_17 : f32 to vector<8x128xf32>
      %39 = arith.mulf %37, %38 : vector<8x128xf32>
      %40 = arith.truncf %39 : vector<8x128xf32> to vector<8x128xbf16>
      %c0_18 = arith.constant 0 : index
      %c0_19 = arith.constant 0 : index
      %41 = vector.load %arg4[%c0_18, %c0_19] : memref<128x128xbf16, #tpu.memory_space<vmem>>, vector<128x128xbf16>
      %cst_20 = arith.constant dense<0.000000e+00> : vector<8x128xf32>
      %42 = tpu.matmul %40, %41, %cst_20 {dimension_numbers = #tpu.dot_dimension_numbers<[1], [0], [0], [1], [0, 0, 1, 1], [], []>} : vector<8x128xbf16>, vector<128x128xbf16>, vector<8x128xf32> -> vector<8x128xf32>
      %c0_21 = arith.constant 0 : index
      %c0_22 = arith.constant 0 : index
      %43 = vector.load %arg5[%c0_21, %c0_22] : memref<1x128xf32, #tpu.memory_space<vmem>>, vector<1x128xf32>
      %44 = vector.broadcast %43 : vector<1x128xf32> to vector<8x128xf32>
      %45 = arith.addf %42, %44 : vector<8x128xf32>
      %c0_23 = arith.constant 0 : index
      %c0_24 = arith.constant 0 : index
      %46 = vector.load %arg6[%c0_23, %c0_24] : memref<8x128xf32, #tpu.memory_space<vmem>>, vector<8x128xf32>
      tpu.vector_store %arg6[%c0_23, %c0_24], %45 {strides = array<i32>} : memref<8x128xf32, #tpu.memory_space<vmem>>, vector<8x128xf32>,
    } else {
    }
    return
  }
  func.func @transform_0(%arg0: i32) -> (i32, i32, i32) {
    %c0_i32 = arith.constant 0 : i32
    %c0_i32_0 = arith.constant 0 : i32
    %c0_i32_1 = arith.constant 0 : i32
    return %c0_i32, %arg0, %c0_i32_0 : i32, i32, i32
  }
  func.func @transform_1(%arg0: i32) -> (i32, i32) {
    %c0_i32 = arith.constant 0 : i32
    %c0_i32_0 = arith.constant 0 : i32
    %c0_i32_1 = arith.constant 0 : i32
    return %c0_i32, %c0_i32_0 : i32, i32
  }
  func.func @transform_2(%arg0: i32) -> (i32, i32) {
    %c0_i32 = arith.constant 0 : i32
    %c0_i32_0 = arith.constant 0 : i32
    %c0_i32_1 = arith.constant 0 : i32
    return %c0_i32, %c0_i32_0 : i32, i32
  }
  func.func @transform_3(%arg0: i32) -> (i32, i32) {
    %c0_i32 = arith.constant 0 : i32
    %c0_i32_0 = arith.constant 0 : i32
    %c0_i32_1 = arith.constant 0 : i32
    return %c0_i32, %c0_i32_0 : i32, i32
  }
  func.func @transform_4(%arg0: i32) -> (i32, i32) {
    %c0_i32 = arith.constant 0 : i32
    %c0_i32_0 = arith.constant 0 : i32
    %c0_i32_1 = arith.constant 0 : i32
    return %c0_i32, %c0_i32_0 : i32, i32
  }
  func.func @transform_5(%arg0: i32) -> (i32, i32) {
    %c0_i32 = arith.constant 0 : i32
    %c0_i32_0 = arith.constant 0 : i32
    %c0_i32_1 = arith.constant 0 : i32
    return %c0_i32, %c0_i32_0 : i32, i32
  }
}

</mosaic_0001>

<llo_original>
// kernel: tpu_custom_call.1
$region0: #{tpu_custom_call.1}
  #allocation0 [shape = 'u32[]', space=smem, size = 0x4, offset = 0x4, fixed_abs, tag = 'smem constant byte address 0x4 - core index']
  #allocation1 [shape = 'u32[144,128]{1,0:T(1,128)}', space=vmem, size = 0x12000, scoped, tag = 'internal scratch']
  #allocation2 [shape = 'f32[8,128]{1,0:T(8,128)}', space=vmem, size = 0x1000, scoped, tag = 'scratch operand']
  %s0 = inlined_call_operand.vmem [shape: f32[8,256,3], index: 0, kind: input, shape index: {}]
  %s1 = inlined_call_operand.vmem [shape: f32[3,128], index: 1, kind: input, shape index: {}]
  %s2 = inlined_call_operand.vmem [shape: f32[1,128], index: 2, kind: input, shape index: {}]
  %s3 = inlined_call_operand.vmem [shape: bf16[128,128], index: 3, kind: input, shape index: {}]
  %s4 = inlined_call_operand.vmem [shape: f32[1,128], index: 4, kind: input, shape index: {}]
  %s5 = inlined_call_operand.hbm [shape: f32[8,128], index: 5, kind: output, shape index: {}]
  %s6 = sld [smem:[#allocation0]]
  $region99: #{tpu_custom_call.1} parent=0
    _
  %s8 = ssub.s32 1, %s6
  %s9 = scalar_select 0, %s8, %s6
  $region1: #{tpu_custom_call.1} parent=0
    #allocation3 [shape = 'u8[1048576]{0}', space=vmem, size = 0x100000, scoped, tag = 'input window, operand 0']
    #allocation4 [shape = 'u8[4096]{0}', space=vmem, size = 0x1000, scoped, tag = 'output window, operand 0, single buffered']
    #allocation5 [shape = 's32[2]{0}', space=sflag, size = 0x8, scoped, tag = 'scoped memory for tpu_custom_call.1']
    %10 = vsyncpa [#allocation5], 0
    loop: start=0, step=1, limit=4
    $region2: #{tpu_custom_call.1} parent=1 // loop_pre_header
      _
    $region3: #{tpu_custom_call.1} parent=1 // loop_header
      %s12 = sphi 0, %s16
      %p13 = scmp.ge.s32.totalorder %s12, 4
      %s22 = sphi 0, %s24
      %s25 = sphi 0, %s22
      %s26 = sphi 0, %s25
      %s42 = sphi 0, %s26
      %s46 = sphi 0, %s46
      %s48 = sphi 0, %s46
      %s49 = sphi 0, %s48
      %s63 = sphi 0, %s49
      %s67 = sphi 0, %s67
      %s69 = sphi 0, %s67
      %s70 = sphi 0, %s69
      %s84 = sphi 0, %s70
      %s88 = sphi 0, %s88
      %s90 = sphi 0, %s88
      %s91 = sphi 0, %s90
      %s105 = sphi 0, %s91
      %s109 = sphi 0, %s109
      %s111 = sphi 0, %s109
      %s112 = sphi 0, %s111
      %s126 = sphi 0, %s112
      %s130 = sphi 0, %s130
      %s132 = sphi 0, %s130
      %s133 = sphi 0, %s132
      %s147 = sphi 0, %s133
    $region4: #{tpu_custom_call.1} parent=1 // loop_header_branch
      %15 = sbr.rel (%p13) target = $region8
    $region5: #{tpu_custom_call.1} parent=1 // loop_body
      %s17 = ssub.s32 %s12, 1
      %s18 = ssub.s32 %s12, 2
      %s19 = sadd.s32 %s12, 1
      %s20 = ssub.s32 %s12, %s19
      %p21 = scmp.eq.s32.totalorder %s20, 0
      %s23 = sadd.s32 %s22, 1
      %s24 = scalar_select %p21, %s22, %s23
      %p27 = pneg %p21
      %p28 = scmp.eq.s32.totalorder %s12, 1
      %p29 = por %p27, %p28
      %p30 = scmp.ne.s32.totalorder %s22, %s25
      %p31 = scmp.eq.s32.totalorder %s12, 0
      %p32 = por %p30, %p31
      %p33 = scmp.ne.s32.totalorder %s22, %s25
      %p34 = scmp.eq.s32.totalorder %s17, 1
      %p35 = por %p33, %p34
      %p36 = scmp.ne.s32.totalorder %s25, %s26
      %p37 = scmp.eq.s32.totalorder %s17, 0
      %p38 = por %p36, %p37
      %p39 = scmp.ne.s32.totalorder %s25, %s26
      %p40 = scmp.eq.s32.totalorder %s18, 1
      %p41 = por %p39, %p40
      %p43 = scmp.ne.s32.totalorder %s26, %s42
      %p44 = scmp.eq.s32.totalorder %s18, 0
      %p45 = por %p43, %p44
      %s47 = sadd.s32 %s46, 1
      %p50 = scmp.eq.s32.totalorder %s12, 1
      %p51 = scmp.ne.s32.totalorder %s46, %s48
      %p52 = scmp.eq.s32.totalorder %s12, 0
      %p53 = por %p51, %p52
      %p54 = scmp.ne.s32.totalorder %s46, %s48
      %p55 = scmp.eq.s32.totalorder %s17, 1
      %p56 = por %p54, %p55
      %p57 = scmp.ne.s32.totalorder %s48, %s49
      %p58 = scmp.eq.s32.totalorder %s17, 0
      %p59 = por %p57, %p58
      %p60 = scmp.ne.s32.totalorder %s48, %s49
      %p61 = scmp.eq.s32.totalorder %s18, 1
      %p62 = por %p60, %p61
      %p64 = scmp.ne.s32.totalorder %s49, %s63
      %p65 = scmp.eq.s32.totalorder %s18, 0
      %p66 = por %p64, %p65
      %s68 = sadd.s32 %s67, 1
      %p71 = scmp.eq.s32.totalorder %s12, 1
      %p72 = scmp.ne.s32.totalorder %s67, %s69
      %p73 = scmp.eq.s32.totalorder %s12, 0
      %p74 = por %p72, %p73
      %p75 = scmp.ne.s32.totalorder %s67, %s69
      %p76 = scmp.eq.s32.totalorder %s17, 1
      %p77 = por %p75, %p76
      %p78 = scmp.ne.s32.totalorder %s69, %s70
      %p79 = scmp.eq.s32.totalorder %s17, 0
      %p80 = por %p78, %p79
      %p81 = scmp.ne.s32.totalorder %s69, %s70
      %p82 = scmp.eq.s32.totalorder %s18, 1
      %p83 = por %p81, %p82
      %p85 = scmp.ne.s32.totalorder %s70, %s84
      %p86 = scmp.eq.s32.totalorder %s18, 0
      %p87 = por %p85, %p86
      %s89 = sadd.s32 %s88, 1
      %p92 = scmp.eq.s32.totalorder %s12, 1
      %p93 = scmp.ne.s32.totalorder %s88, %s90
      %p94 = scmp.eq.s32.totalorder %s12, 0
      %p95 = por %p93, %p94
      %p96 = scmp.ne.s32.totalorder %s88, %s90
      %p97 = scmp.eq.s32.totalorder %s17, 1
      %p98 = por %p96, %p97
      %p99 = scmp.ne.s32.totalorder %s90, %s91
      %p100 = scmp.eq.s32.totalorder %s17, 0
      %p101 = por %p99, %p100
      %p102 = scmp.ne.s32.totalorder %s90, %s91
      %p103 = scmp.eq.s32.totalorder %s18, 1
      %p104 = por %p102, %p103
      %p106 = scmp.ne.s32.totalorder %s91, %s105
      %p107 = scmp.eq.s32.totalorder %s18, 0
      %p108 = por %p106, %p107
      %s110 = sadd.s32 %s109, 1
      %p113 = scmp.eq.s32.totalorder %s12, 1
      %p114 = scmp.ne.s32.totalorder %s109, %s111
      %p115 = scmp.eq.s32.totalorder %s12, 0
      %p116 = por %p114, %p115
      %p117 = scmp.ne.s32.totalorder %s109, %s111
      %p118 = scmp.eq.s32.totalorder %s17, 1
      %p119 = por %p117, %p118
      %p120 = scmp.ne.s32.totalorder %s111, %s112
      %p121 = scmp.eq.s32.totalorder %s17, 0
      %p122 = por %p120, %p121
      %p123 = scmp.ne.s32.totalorder %s111, %s112
      %p124 = scmp.eq.s32.totalorder %s18, 1
      %p125 = por %p123, %p124
      %p127 = scmp.ne.s32.totalorder %s112, %s126
      %p128 = scmp.eq.s32.totalorder %s18, 0
      %p129 = por %p127, %p128
      %s131 = sadd.s32 %s130, 1
      %p134 = scmp.eq.s32.totalorder %s12, 1
      %p135 = scmp.ne.s32.totalorder %s130, %s132
      %p136 = scmp.eq.s32.totalorder %s12, 0
      %p137 = por %p135, %p136
      %p138 = scmp.ne.s32.totalorder %s130, %s132
      %p139 = scmp.eq.s32.totalorder %s17, 1
      %p140 = por %p138, %p139
      %p141 = scmp.ne.s32.totalorder %s132, %s133
      %p142 = scmp.eq.s32.totalorder %s17, 0
      %p143 = por %p141, %p142
      %p144 = scmp.ne.s32.totalorder %s132, %s133
      %p145 = scmp.eq.s32.totalorder %s18, 1
      %p146 = por %p144, %p145
      %p148 = scmp.ne.s32.totalorder %s133, %s147
      %p149 = scmp.eq.s32.totalorder %s18, 0
      %p150 = por %p148, %p149
      %p151 = scmp.le.s32.totalorder 1, %s12
      %p152 = scmp.lt.s32.totalorder %s12, 3
      %p153 = pnand %p151, %p152
      %p154 = pneg %p153
      // Predicated region
      $region9: #{tpu_custom_call.1} parent=5 // pred_check
        _
      $region10: #{tpu_custom_call.1} parent=5 // pred_check_branch
        %156 = sbr.rel (%p153) target = $region12
      $region11: #{tpu_custom_call.1} parent=5 // pred_region
        %s157 = ssub.s32 %s12, 1
        // Predicated region
        $region13: #{tpu_custom_call.1} parent=11 // pred_check
          %p158 = pneg %p59
        $region14: #{tpu_custom_call.1} parent=11 // pred_check_branch
          %160 = sbr.rel (%p158) target = $region16
        $region15: #{tpu_custom_call.1} parent=11 // pred_region
          _
        $region16: #{tpu_custom_call.1} parent=11 // pred_fallthru
          _
        // Predicated region
        $region17: #{tpu_custom_call.1} parent=11 // pred_check
          %p161 = pneg %p80
        $region18: #{tpu_custom_call.1} parent=11 // pred_check_branch
          %163 = sbr.rel (%p161) target = $region20
        $region19: #{tpu_custom_call.1} parent=11 // pred_region
          _
        $region20: #{tpu_custom_call.1} parent=11 // pred_fallthru
          _
        // Predicated region
        $region21: #{tpu_custom_call.1} parent=11 // pred_check
          %p164 = pneg %p101
        $region22: #{tpu_custom_call.1} parent=11 // pred_check_branch
          %166 = sbr.rel (%p164) target = $region24
        $region23: #{tpu_custom_call.1} parent=11 // pred_region
          _
        $region24: #{tpu_custom_call.1} parent=11 // pred_fallthru
          _
        // Predicated region
        $region25: #{tpu_custom_call.1} parent=11 // pred_check
          %p167 = pneg %p122
        $region26: #{tpu_custom_call.1} parent=11 // pred_check_branch
          %169 = sbr.rel (%p167) target = $region28
        $region27: #{tpu_custom_call.1} parent=11 // pred_region
          _
        $region28: #{tpu_custom_call.1} parent=11 // pred_fallthru
          _
      $region12: #{tpu_custom_call.1} parent=5 // pred_fallthru
        _
      %p170 = scmp.lt.s32.totalorder %s12, 2
      // Predicated region
      $region29: #{tpu_custom_call.1} parent=5 // pred_check
        %p171 = pneg %p170
      $region30: #{tpu_custom_call.1} parent=5 // pred_check_branch
        %173 = sbr.rel (%p171) target = $region32
      $region31: #{tpu_custom_call.1} parent=5 // pred_region
        // Predicated region
        $region33: #{tpu_custom_call.1} parent=31 // pred_check
          %p174 = pneg %p32
        $region34: #{tpu_custom_call.1} parent=31 // pred_check_branch
          %176 = sbr.rel (%p174) target = $region36
        $region35: #{tpu_custom_call.1} parent=31 // pred_region
          %s177 = sand.u32 %s22, 1
          %s178 = sand.u32 %s22, 1
          %s179 = smul.addr %s178, 1024
          %s180 = scalar_lea.vmem [#allocation3], %s179
          %s181 = smul.u32 16, %s12
          %s182 = smul.addr %s181, 8
          %s183 = scalar_lea.vmem %s0, %s182
          // Predicated region
          $region37: #{tpu_custom_call.1} parent=35 // pred_check
            _
          $region38: #{tpu_custom_call.1} parent=35 // pred_check_branch
            %185 = sbr.rel (0) target = $region40
          $region39: #{tpu_custom_call.1} parent=35 // pred_region
            // Predicated region
            $region41: #{tpu_custom_call.1} parent=39 // pred_check
              _
            $region42: #{tpu_custom_call.1} parent=39 // pred_check_branch
              %187 = sbr.rel (0) target = $region44
            $region43: #{tpu_custom_call.1} parent=39 // pred_region
              // Predicated region
              $region56: #{tpu_custom_call.1} parent=43 // pred_check
                _
              $region57: #{tpu_custom_call.1} parent=43 // pred_check_branch
                %456 = sbr.rel (0) target = $region59
              $region58: #{tpu_custom_call.1} parent=43 // pred_region
                loop: start=0, step=1, limit=1
                $region60: #{tpu_custom_call.1} parent=58 // loop_pre_header
                  _
                $region61: #{tpu_custom_call.1} parent=58 // loop_header
                  %s458 = sphi 0, %s462
                  %p459 = scmp.ge.s32.totalorder %s458, 1
                  %s463 = sphi %s183, %s183
                  %s464 = sphi %s180, %s180
                $region62: #{tpu_custom_call.1} parent=58 // loop_header_branch
                  %461 = sbr.rel (%p459) target = $region66
                $region63: #{tpu_custom_call.1} parent=58 // loop_body
                  %v465 = vld [vmem:[%s463] sm:$0xff]
                  %466 = vst [vmem:[%s464] sm:$0xff] %v465
                  %v467 = vld [vmem:[%s463 + $0x8] sm:$0xff]
                  %468 = vst [vmem:[%s464 + $0x8] sm:$0xff] %v467
                  %v469 = vld [vmem:[%s463 + $0x10] sm:$0xff]
                  %470 = vst [vmem:[%s464 + $0x10] sm:$0xff] %v469
                  %v471 = vld [vmem:[%s463 + $0x18] sm:$0xff]
                  %472 = vst [vmem:[%s464 + $0x18] sm:$0xff] %v471
                  %v473 = vld [vmem:[%s463 + $0x20] sm:$0xff]
                  %474 = vst [vmem:[%s464 + $0x20] sm:$0xff] %v473
                  %v475 = vld [vmem:[%s463 + $0x28] sm:$0xff]
                  %476 = vst [vmem:[%s464 + $0x28] sm:$0xff] %v475
                  %v477 = vld [vmem:[%s463 + $0x30] sm:$0xff]
                  %478 = vst [vmem:[%s464 + $0x30] sm:$0xff] %v477
                  %v479 = vld [vmem:[%s463 + $0x38] sm:$0xff]
                  %480 = vst [vmem:[%s464 + $0x38] sm:$0xff] %v479
                  %v481 = vld [vmem:[%s463 + $0x40] sm:$0xff]
                  %482 = vst [vmem:[%s464 + $0x40] sm:$0xff] %v481
                  %v483 = vld [vmem:[%s463 + $0x48] sm:$0xff]
                  %484 = vst [vmem:[%s464 + $0x48] sm:$0xff] %v483
                  %v485 = vld [vmem:[%s463 + $0x50] sm:$0xff]
                  %486 = vst [vmem:[%s464 + $0x50] sm:$0xff] %v485
                  %v487 = vld [vmem:[%s463 + $0x58] sm:$0xff]
                  %488 = vst [vmem:[%s464 + $0x58] sm:$0xff] %v487
                  %v489 = vld [vmem:[%s463 + $0x60] sm:$0xff]
                  %490 = vst [vmem:[%s464 + $0x60] sm:$0xff] %v489
                  %v491 = vld [vmem:[%s463 + $0x68] sm:$0xff]
                  %492 = vst [vmem:[%s464 + $0x68] sm:$0xff] %v491
                  %v493 = vld [vmem:[%s463 + $0x70] sm:$0xff]
                  %494 = vst [vmem:[%s464 + $0x70] sm:$0xff] %v493
                  %v495 = vld [vmem:[%s463 + $0x78] sm:$0xff]
                  %496 = vst [vmem:[%s464 + $0x78] sm:$0xff] %v495
                  %v497 = vld [vmem:[%s463 + $0x100] sm:$0xff]
                  %498 = vst [vmem:[%s464 + $0x80] sm:$0xff] %v497
                  %v499 = vld [vmem:[%s463 + $0x108] sm:$0xff]
                  %500 = vst [vmem:[%s464 + $0x88] sm:$0xff] %v499
                  %v501 = vld [vmem:[%s463 + $0x110] sm:$0xff]
                  %502 = vst [vmem:[%s464 + $0x90] sm:$0xff] %v501
                  %v503 = vld [vmem:[%s463 + $0x118] sm:$0xff]
                  %504 = vst [vmem:[%s464 + $0x98] sm:$0xff] %v503
                  %v505 = vld [vmem:[%s463 + $0x120] sm:$0xff]
                  %506 = vst [vmem:[%s464 + $0xa0] sm:$0xff] %v505
                  %v507 = vld [vmem:[%s463 + $0x128] sm:$0xff]
                  %508 = vst [vmem:[%s464 + $0xa8] sm:$0xff] %v507
                  %v509 = vld [vmem:[%s463 + $0x130] sm:$0xff]
                  %510 = vst [vmem:[%s464 + $0xb0] sm:$0xff] %v509
                  %v511 = vld [vmem:[%s463 + $0x138] sm:$0xff]
                  %512 = vst [vmem:[%s464 + $0xb8] sm:$0xff] %v511
                  %v513 = vld [vmem:[%s463 + $0x140] sm:$0xff]
                  %514 = vst [vmem:[%s464 + $0xc0] sm:$0xff] %v513
                  %v515 = vld [vmem:[%s463 + $0x148] sm:$0xff]
                  %516 = vst [vmem:[%s464 + $0xc8] sm:$0xff] %v515
                  %v517 = vld [vmem:[%s463 + $0x150] sm:$0xff]
                  %518 = vst [vmem:[%s464 + $0xd0] sm:$0xff] %v517
                  %v519 = vld [vmem:[%s463 + $0x158] sm:$0xff]
                  %520 = vst [vmem:[%s464 + $0xd8] sm:$0xff] %v519
                  %v521 = vld [vmem:[%s463 + $0x160] sm:$0xff]
                  %522 = vst [vmem:[%s464 + $0xe0] sm:$0xff] %v521
                  %v523 = vld [vmem:[%s463 + $0x168] sm:$0xff]
                  %524 = vst [vmem:[%s464 + $0xe8] sm:$0xff] %v523
                  %v525 = vld [vmem:[%s463 + $0x170] sm:$0xff]
                  %526 = vst [vmem:[%s464 + $0xf0] sm:$0xff] %v525
                  %v527 = vld [vmem:[%s463 + $0x178] sm:$0xff]
                  %528 = vst [vmem:[%s464 + $0xf8] sm:$0xff] %v527
                  %v529 = vld [vmem:[%s463 + $0x200] sm:$0xff]
                  %530 = vst [vmem:[%s464 + $0x100] sm:$0xff] %v529
                  %v531 = vld [vmem:[%s463 + $0x208] sm:$0xff]
                  %532 = vst [vmem:[%s464 + $0x108] sm:$0xff] %v531
                  %v533 = vld [vmem:[%s463 + $0x210] sm:$0xff]
                  %534 = vst [vmem:[%s464 + $0x110] sm:$0xff] %v533
                  %v535 = vld [vmem:[%s463 + $0x218] sm:$0xff]
                  %536 = vst [vmem:[%s464 + $0x118] sm:$0xff] %v535
                  %v537 = vld [vmem:[%s463 + $0x220] sm:$0xff]
                  %538 = vst [vmem:[%s464 + $0x120] sm:$0xff] %v537
                  %v539 = vld [vmem:[%s463 + $0x228] sm:$0xff]
                  %540 = vst [vmem:[%s464 + $0x128] sm:$0xff] %v539
                  %v541 = vld [vmem:[%s463 + $0x230] sm:$0xff]
                  %542 = vst [vmem:[%s464 + $0x130] sm:$0xff] %v541
                  %v543 = vld [vmem:[%s463 + $0x238] sm:$0xff]
                  %544 = vst [vmem:[%s464 + $0x138] sm:$0xff] %v543
                  %v545 = vld [vmem:[%s463 + $0x240] sm:$0xff]
                  %546 = vst [vmem:[%s464 + $0x140] sm:$0xff] %v545
                  %v547 = vld [vmem:[%s463 + $0x248] sm:$0xff]
                  %548 = vst [vmem:[%s464 + $0x148] sm:$0xff] %v547
                  %v549 = vld [vmem:[%s463 + $0x250] sm:$0xff]
                  %550 = vst [vmem:[%s464 + $0x150] sm:$0xff] %v549
                  %v551 = vld [vmem:[%s463 + $0x258] sm:$0xff]
                  %552 = vst [vmem:[%s464 + $0x158] sm:$0xff] %v551
                  %v553 = vld [vmem:[%s463 + $0x260] sm:$0xff]
                  %554 = vst [vmem:[%s464 + $0x160] sm:$0xff] %v553
                  %v555 = vld [vmem:[%s463 + $0x268] sm:$0xff]
                  %556 = vst [vmem:[%s464 + $0x168] sm:$0xff] %v555
                  %v557 = vld [vmem:[%s463 + $0x270] sm:$0xff]
                  %558 = vst [vmem:[%s464 + $0x170] sm:$0xff] %v557
                  %v559 = vld [vmem:[%s463 + $0x278] sm:$0xff]
                  %560 = vst [vmem:[%s464 + $0x178] sm:$0xff] %v559
                  %v561 = vld [vmem:[%s463 + $0x300] sm:$0xff]
                  %562 = vst [vmem:[%s464 + $0x180] sm:$0xff] %v561
                  %v563 = vld [vmem:[%s463 + $0x308] sm:$0xff]
                  %564 = vst [vmem:[%s464 + $0x188] sm:$0xff] %v563
                  %v565 = vld [vmem:[%s463 + $0x310] sm:$0xff]
                  %566 = vst [vmem:[%s464 + $0x190] sm:$0xff] %v565
                  %v567 = vld [vmem:[%s463 + $0x318] sm:$0xff]
                  %568 = vst [vmem:[%s464 + $0x198] sm:$0xff] %v567
                  %v569 = vld [vmem:[%s463 + $0x320] sm:$0xff]
                  %570 = vst [vmem:[%s464 + $0x1a0] sm:$0xff] %v569
                  %v571 = vld [vmem:[%s463 + $0x328] sm:$0xff]
                  %572 = vst [vmem:[%s464 + $0x1a8] sm:$0xff] %v571
                  %v573 = vld [vmem:[%s463 + $0x330] sm:$0xff]
                  %574 = vst [vmem:[%s464 + $0x1b0] sm:$0xff] %v573
                  %v575 = vld [vmem:[%s463 + $0x338] sm:$0xff]
                  %576 = vst [vmem:[%s464 + $0x1b8] sm:$0xff] %v575
                  %v577 = vld [vmem:[%s463 + $0x340] sm:$0xff]
                  %578 = vst [vmem:[%s464 + $0x1c0] sm:$0xff] %v577
                  %v579 = vld [vmem:[%s463 + $0x348] sm:$0xff]
                  %580 = vst [vmem:[%s464 + $0x1c8] sm:$0xff] %v579
                  %v581 = vld [vmem:[%s463 + $0x350] sm:$0xff]
                  %582 = vst [vmem:[%s464 + $0x1d0] sm:$0xff] %v581
                  %v583 = vld [vmem:[%s463 + $0x358] sm:$0xff]
                  %584 = vst [vmem:[%s464 + $0x1d8] sm:$0xff] %v583
                  %v585 = vld [vmem:[%s463 + $0x360] sm:$0xff]
                  %586 = vst [vmem:[%s464 + $0x1e0] sm:$0xff] %v585
                  %v587 = vld [vmem:[%s463 + $0x368] sm:$0xff]
                  %588 = vst [vmem:[%s464 + $0x1e8] sm:$0xff] %v587
                  %v589 = vld [vmem:[%s463 + $0x370] sm:$0xff]
                  %590 = vst [vmem:[%s464 + $0x1f0] sm:$0xff] %v589
                  %v591 = vld [vmem:[%s463 + $0x378] sm:$0xff]
                  %592 = vst [vmem:[%s464 + $0x1f8] sm:$0xff] %v591
                  %v593 = vld [vmem:[%s463 + $0x400] sm:$0xff]
                  %594 = vst [vmem:[%s464 + $0x200] sm:$0xff] %v593
                  %v595 = vld [vmem:[%s463 + $0x408] sm:$0xff]
                  %596 = vst [vmem:[%s464 + $0x208] sm:$0xff] %v595
                  %v597 = vld [vmem:[%s463 + $0x410] sm:$0xff]
                  %598 = vst [vmem:[%s464 + $0x210] sm:$0xff] %v597
                  %v599 = vld [vmem:[%s463 + $0x418] sm:$0xff]
                  %600 = vst [vmem:[%s464 + $0x218] sm:$0xff] %v599
                  %v601 = vld [vmem:[%s463 + $0x420] sm:$0xff]
                  %602 = vst [vmem:[%s464 + $0x220] sm:$0xff] %v601
                  %v603 = vld [vmem:[%s463 + $0x428] sm:$0xff]
                  %604 = vst [vmem:[%s464 + $0x228] sm:$0xff] %v603
                  %v605 = vld [vmem:[%s463 + $0x430] sm:$0xff]
                  %606 = vst [vmem:[%s464 + $0x230] sm:$0xff] %v605
                  %v607 = vld [vmem:[%s463 + $0x438] sm:$0xff]
                  %608 = vst [vmem:[%s464 + $0x238] sm:$0xff] %v607
                  %v609 = vld [vmem:[%s463 + $0x440] sm:$0xff]
                  %610 = vst [vmem:[%s464 + $0x240] sm:$0xff] %v609
                  %v611 = vld [vmem:[%s463 + $0x448] sm:$0xff]
                  %612 = vst [vmem:[%s464 + $0x248] sm:$0xff] %v611
                  %v613 = vld [vmem:[%s463 + $0x450] sm:$0xff]
                  %614 = vst [vmem:[%s464 + $0x250] sm:$0xff] %v613
                  %v615 = vld [vmem:[%s463 + $0x458] sm:$0xff]
                  %616 = vst [vmem:[%s464 + $0x258] sm:$0xff] %v615
                  %v617 = vld [vmem:[%s463 + $0x460] sm:$0xff]
                  %618 = vst [vmem:[%s464 + $0x260] sm:$0xff] %v617
                  %v619 = vld [vmem:[%s463 + $0x468] sm:$0xff]
                  %620 = vst [vmem:[%s464 + $0x268] sm:$0xff] %v619
                  %v621 = vld [vmem:[%s463 + $0x470] sm:$0xff]
                  %622 = vst [vmem:[%s464 + $0x270] sm:$0xff] %v621
                  %v623 = vld [vmem:[%s463 + $0x478] sm:$0xff]
                  %624 = vst [vmem:[%s464 + $0x278] sm:$0xff] %v623
                  %v625 = vld [vmem:[%s463 + $0x500] sm:$0xff]
                  %626 = vst [vmem:[%s464 + $0x280] sm:$0xff] %v625
                  %v627 = vld [vmem:[%s463 + $0x508] sm:$0xff]
                  %628 = vst [vmem:[%s464 + $0x288] sm:$0xff] %v627
                  %v629 = vld [vmem:[%s463 + $0x510] sm:$0xff]
                  %630 = vst [vmem:[%s464 + $0x290] sm:$0xff] %v629
                  %v631 = vld [vmem:[%s463 + $0x518] sm:$0xff]
                  %632 = vst [vmem:[%s464 + $0x298] sm:$0xff] %v631
                  %v633 = vld [vmem:[%s463 + $0x520] sm:$0xff]
                  %634 = vst [vmem:[%s464 + $0x2a0] sm:$0xff] %v633
                  %v635 = vld [vmem:[%s463 + $0x528] sm:$0xff]
                  %636 = vst [vmem:[%s464 + $0x2a8] sm:$0xff] %v635
                  %v637 = vld [vmem:[%s463 + $0x530] sm:$0xff]
                  %638 = vst [vmem:[%s464 + $0x2b0] sm:$0xff] %v637
                  %v639 = vld [vmem:[%s463 + $0x538] sm:$0xff]
                  %640 = vst [vmem:[%s464 + $0x2b8] sm:$0xff] %v639
                  %v641 = vld [vmem:[%s463 + $0x540] sm:$0xff]
                  %642 = vst [vmem:[%s464 + $0x2c0] sm:$0xff] %v641
                  %v643 = vld [vmem:[%s463 + $0x548] sm:$0xff]
                  %644 = vst [vmem:[%s464 + $0x2c8] sm:$0xff] %v643
                  %v645 = vld [vmem:[%s463 + $0x550] sm:$0xff]
                  %646 = vst [vmem:[%s464 + $0x2d0] sm:$0xff] %v645
                  %v647 = vld [vmem:[%s463 + $0x558] sm:$0xff]
                  %648 = vst [vmem:[%s464 + $0x2d8] sm:$0xff] %v647
                  %v649 = vld [vmem:[%s463 + $0x560] sm:$0xff]
                  %650 = vst [vmem:[%s464 + $0x2e0] sm:$0xff] %v649
                  %v651 = vld [vmem:[%s463 + $0x568] sm:$0xff]
                  %652 = vst [vmem:[%s464 + $0x2e8] sm:$0xff] %v651
                  %v653 = vld [vmem:[%s463 + $0x570] sm:$0xff]
                  %654 = vst [vmem:[%s464 + $0x2f0] sm:$0xff] %v653
                  %v655 = vld [vmem:[%s463 + $0x578] sm:$0xff]
                  %656 = vst [vmem:[%s464 + $0x2f8] sm:$0xff] %v655
                  %v657 = vld [vmem:[%s463 + $0x600] sm:$0xff]
                  %658 = vst [vmem:[%s464 + $0x300] sm:$0xff] %v657
                  %v659 = vld [vmem:[%s463 + $0x608] sm:$0xff]
                  %660 = vst [vmem:[%s464 + $0x308] sm:$0xff] %v659
                  %v661 = vld [vmem:[%s463 + $0x610] sm:$0xff]
                  %662 = vst [vmem:[%s464 + $0x310] sm:$0xff] %v661
                  %v663 = vld [vmem:[%s463 + $0x618] sm:$0xff]
                  %664 = vst [vmem:[%s464 + $0x318] sm:$0xff] %v663
                  %v665 = vld [vmem:[%s463 + $0x620] sm:$0xff]
                  %666 = vst [vmem:[%s464 + $0x320] sm:$0xff] %v665
                  %v667 = vld [vmem:[%s463 + $0x628] sm:$0xff]
                  %668 = vst [vmem:[%s464 + $0x328] sm:$0xff] %v667
                  %v669 = vld [vmem:[%s463 + $0x630] sm:$0xff]
                  %670 = vst [vmem:[%s464 + $0x330] sm:$0xff] %v669
                  %v671 = vld [vmem:[%s463 + $0x638] sm:$0xff]
                  %672 = vst [vmem:[%s464 + $0x338] sm:$0xff] %v671
                  %v673 = vld [vmem:[%s463 + $0x640] sm:$0xff]
                  %674 = vst [vmem:[%s464 + $0x340] sm:$0xff] %v673
                  %v675 = vld [vmem:[%s463 + $0x648] sm:$0xff]
                  %676 = vst [vmem:[%s464 + $0x348] sm:$0xff] %v675
                  %v677 = vld [vmem:[%s463 + $0x650] sm:$0xff]
                  %678 = vst [vmem:[%s464 + $0x350] sm:$0xff] %v677
                  %v679 = vld [vmem:[%s463 + $0x658] sm:$0xff]
                  %680 = vst [vmem:[%s464 + $0x358] sm:$0xff] %v679
                  %v681 = vld [vmem:[%s463 + $0x660] sm:$0xff]
                  %682 = vst [vmem:[%s464 + $0x360] sm:$0xff] %v681
                  %v683 = vld [vmem:[%s463 + $0x668] sm:$0xff]
                  %684 = vst [vmem:[%s464 + $0x368] sm:$0xff] %v683
                  %v685 = vld [vmem:[%s463 + $0x670] sm:$0xff]
                  %686 = vst [vmem:[%s464 + $0x370] sm:$0xff] %v685
                  %v687 = vld [vmem:[%s463 + $0x678] sm:$0xff]
                  %688 = vst [vmem:[%s464 + $0x378] sm:$0xff] %v687
                  %v689 = vld [vmem:[%s463 + $0x700] sm:$0xff]
                  %690 = vst [vmem:[%s464 + $0x380] sm:$0xff] %v689
                  %v691 = vld [vmem:[%s463 + $0x708] sm:$0xff]
                  %692 = vst [vmem:[%s464 + $0x388] sm:$0xff] %v691
                  %v693 = vld [vmem:[%s463 + $0x710] sm:$0xff]
                  %694 = vst [vmem:[%s464 + $0x390] sm:$0xff] %v693
                  %v695 = vld [vmem:[%s463 + $0x718] sm:$0xff]
                  %696 = vst [vmem:[%s464 + $0x398] sm:$0xff] %v695
                  %v697 = vld [vmem:[%s463 + $0x720] sm:$0xff]
                  %698 = vst [vmem:[%s464 + $0x3a0] sm:$0xff] %v697
                  %v699 = vld [vmem:[%s463 + $0x728] sm:$0xff]
                  %700 = vst [vmem:[%s464 + $0x3a8] sm:$0xff] %v699
                  %v701 = vld [vmem:[%s463 + $0x730] sm:$0xff]
                  %702 = vst [vmem:[%s464 + $0x3b0] sm:$0xff] %v701
                  %v703 = vld [vmem:[%s463 + $0x738] sm:$0xff]
                  %704 = vst [vmem:[%s464 + $0x3b8] sm:$0xff] %v703
                  %v705 = vld [vmem:[%s463 + $0x740] sm:$0xff]
                  %706 = vst [vmem:[%s464 + $0x3c0] sm:$0xff] %v705
                  %v707 = vld [vmem:[%s463 + $0x748] sm:$0xff]
                  %708 = vst [vmem:[%s464 + $0x3c8] sm:$0xff] %v707
                  %v709 = vld [vmem:[%s463 + $0x750] sm:$0xff]
                  %710 = vst [vmem:[%s464 + $0x3d0] sm:$0xff] %v709
                  %v711 = vld [vmem:[%s463 + $0x758] sm:$0xff]
                  %712 = vst [vmem:[%s464 + $0x3d8] sm:$0xff] %v711
                  %v713 = vld [vmem:[%s463 + $0x760] sm:$0xff]
                  %714 = vst [vmem:[%s464 + $0x3e0] sm:$0xff] %v713
                  %v715 = vld [vmem:[%s463 + $0x768] sm:$0xff]
                  %716 = vst [vmem:[%s464 + $0x3e8] sm:$0xff] %v715
                  %v717 = vld [vmem:[%s463 + $0x770] sm:$0xff]
                  %718 = vst [vmem:[%s464 + $0x3f0] sm:$0xff] %v717
                  %v719 = vld [vmem:[%s463 + $0x778] sm:$0xff]
                  %720 = vst [vmem:[%s464 + $0x3f8] sm:$0xff] %v719
                $region64: #{tpu_custom_call.1} parent=58 // loop_footer
                  %s462 = sadd.s32 1, %s458
                $region65: #{tpu_custom_call.1} parent=58 // loop_footer_branch
                  %457 = sbr.rel target = $region61
                $region66: #{tpu_custom_call.1} parent=58 // loop_exit
                  _
              $region59: #{tpu_custom_call.1} parent=43 // pred_fallthru
                _
              // Predicated region
              $region67: #{tpu_custom_call.1} parent=43 // pred_check
                _
              $region68: #{tpu_custom_call.1} parent=43 // pred_check_branch
                %722 = sbr.rel target = $region70
              $region69: #{tpu_custom_call.1} parent=43 // pred_region
                _
              $region70: #{tpu_custom_call.1} parent=43 // pred_fallthru
                _
            $region44: #{tpu_custom_call.1} parent=39 // pred_fallthru
              _
            // Predicated region
            $region45: #{tpu_custom_call.1} parent=39 // pred_check
              _
            $region46: #{tpu_custom_call.1} parent=39 // pred_check_branch
              %189 = sbr.rel target = $region48
            $region47: #{tpu_custom_call.1} parent=39 // pred_region
              loop: start=0, step=1, limit=1
              $region49: #{tpu_custom_call.1} parent=47 // loop_pre_header
                _
              $region50: #{tpu_custom_call.1} parent=47 // loop_header
                %s192 = sphi 0, %s196
                %p193 = scmp.ge.s32.totalorder %s192, 1
                %s197 = sphi %s183, %s183
                %s198 = sphi %s180, %s180
              $region51: #{tpu_custom_call.1} parent=47 // loop_header_branch
                %195 = sbr.rel (%p193) target = $region55
              $region52: #{tpu_custom_call.1} parent=47 // loop_body
                %v199 = vld [vmem:[%s197] sm:$0xff]
                %200 = vst [vmem:[%s198] sm:$0xff] %v199
                %v201 = vld [vmem:[%s197 + $0x8] sm:$0xff]
                %202 = vst [vmem:[%s198 + $0x8] sm:$0xff] %v201
                %v203 = vld [vmem:[%s197 + $0x10] sm:$0xff]
                %204 = vst [vmem:[%s198 + $0x10] sm:$0xff] %v203
                %v205 = vld [vmem:[%s197 + $0x18] sm:$0xff]
                %206 = vst [vmem:[%s198 + $0x18] sm:$0xff] %v205
                %v207 = vld [vmem:[%s197 + $0x20] sm:$0xff]
                %208 = vst [vmem:[%s198 + $0x20] sm:$0xff] %v207
                %v209 = vld [vmem:[%s197 + $0x28] sm:$0xff]
                %210 = vst [vmem:[%s198 + $0x28] sm:$0xff] %v209
                %v211 = vld [vmem:[%s197 + $0x30] sm:$0xff]
                %212 = vst [vmem:[%s198 + $0x30] sm:$0xff] %v211
                %v213 = vld [vmem:[%s197 + $0x38] sm:$0xff]
                %214 = vst [vmem:[%s198 + $0x38] sm:$0xff] %v213
                %v215 = vld [vmem:[%s197 + $0x40] sm:$0xff]
                %216 = vst [vmem:[%s198 + $0x40] sm:$0xff] %v215
                %v217 = vld [vmem:[%s197 + $0x48] sm:$0xff]
                %218 = vst [vmem:[%s198 + $0x48] sm:$0xff] %v217
                %v219 = vld [vmem:[%s197 + $0x50] sm:$0xff]
                %220 = vst [vmem:[%s198 + $0x50] sm:$0xff] %v219
                %v221 = vld [vmem:[%s197 + $0x58] sm:$0xff]
                %222 = vst [vmem:[%s198 + $0x58] sm:$0xff] %v221
                %v223 = vld [vmem:[%s197 + $0x60] sm:$0xff]
                %224 = vst [vmem:[%s198 + $0x60] sm:$0xff] %v223
                %v225 = vld [vmem:[%s197 + $0x68] sm:$0xff]
                %226 = vst [vmem:[%s198 + $0x68] sm:$0xff] %v225
                %v227 = vld [vmem:[%s197 + $0x70] sm:$0xff]
                %228 = vst [vmem:[%s198 + $0x70] sm:$0xff] %v227
                %v229 = vld [vmem:[%s197 + $0x78] sm:$0xff]
                %230 = vst [vmem:[%s198 + $0x78] sm:$0xff] %v229
                %v231 = vld [vmem:[%s197 + $0x100] sm:$0xff]
                %232 = vst [vmem:[%s198 + $0x80] sm:$0xff] %v231
                %v233 = vld [vmem:[%s197 + $0x108] sm:$0xff]
                %234 = vst [vmem:[%s198 + $0x88] sm:$0xff] %v233
                %v235 = vld [vmem:[%s197 + $0x110] sm:$0xff]
                %236 = vst [vmem:[%s198 + $0x90] sm:$0xff] %v235
                %v237 = vld [vmem:[%s197 + $0x118] sm:$0xff]
                %238 = vst [vmem:[%s198 + $0x98] sm:$0xff] %v237
                %v239 = vld [vmem:[%s197 + $0x120] sm:$0xff]
                %240 = vst [vmem:[%s198 + $0xa0] sm:$0xff] %v239
                %v241 = vld [vmem:[%s197 + $0x128] sm:$0xff]
                %242 = vst [vmem:[%s198 + $0xa8] sm:$0xff] %v241
                %v243 = vld [vmem:[%s197 + $0x130] sm:$0xff]
                %244 = vst [vmem:[%s198 + $0xb0] sm:$0xff] %v243
                %v245 = vld [vmem:[%s197 + $0x138] sm:$0xff]
                %246 = vst [vmem:[%s198 + $0xb8] sm:$0xff] %v245
                %v247 = vld [vmem:[%s197 + $0x140] sm:$0xff]
                %248 = vst [vmem:[%s198 + $0xc0] sm:$0xff] %v247
                %v249 = vld [vmem:[%s197 + $0x148] sm:$0xff]
                %250 = vst [vmem:[%s198 + $0xc8] sm:$0xff] %v249
                %v251 = vld [vmem:[%s197 + $0x150] sm:$0xff]
                %252 = vst [vmem:[%s198 + $0xd0] sm:$0xff] %v251
                %v253 = vld [vmem:[%s197 + $0x158] sm:$0xff]
                %254 = vst [vmem:[%s198 + $0xd8] sm:$0xff] %v253
                %v255 = vld [vmem:[%s197 + $0x160] sm:$0xff]
                %256 = vst [vmem:[%s198 + $0xe0] sm:$0xff] %v255
                %v257 = vld [vmem:[%s197 + $0x168] sm:$0xff]
                %258 = vst [vmem:[%s198 + $0xe8] sm:$0xff] %v257
                %v259 = vld [vmem:[%s197 + $0x170] sm:$0xff]
                %260 = vst [vmem:[%s198 + $0xf0] sm:$0xff] %v259
                %v261 = vld [vmem:[%s197 + $0x178] sm:$0xff]
                %262 = vst [vmem:[%s198 + $0xf8] sm:$0xff] %v261
                %v263 = vld [vmem:[%s197 + $0x200] sm:$0xff]
                %264 = vst [vmem:[%s198 + $0x100] sm:$0xff] %v263
                %v265 = vld [vmem:[%s197 + $0x208] sm:$0xff]
                %266 = vst [vmem:[%s198 + $0x108] sm:$0xff] %v265
                %v267 = vld [vmem:[%s197 + $0x210] sm:$0xff]
                %268 = vst [vmem:[%s198 + $0x110] sm:$0xff] %v267
                %v269 = vld [vmem:[%s197 + $0x218] sm:$0xff]
                %270 = vst [vmem:[%s198 + $0x118] sm:$0xff] %v269
                %v271 = vld [vmem:[%s197 + $0x220] sm:$0xff]
                %272 = vst [vmem:[%s198 + $0x120] sm:$0xff] %v271
                %v273 = vld [vmem:[%s197 + $0x228] sm:$0xff]
                %274 = vst [vmem:[%s198 + $0x128] sm:$0xff] %v273
                %v275 = vld [vmem:[%s197 + $0x230] sm:$0xff]
                %276 = vst [vmem:[%s198 + $0x130] sm:$0xff] %v275
                %v277 = vld [vmem:[%s197 + $0x238] sm:$0xff]
                %278 = vst [vmem:[%s198 + $0x138] sm:$0xff] %v277
                %v279 = vld [vmem:[%s197 + $0x240] sm:$0xff]
                %280 = vst [vmem:[%s198 + $0x140] sm:$0xff] %v279
                %v281 = vld [vmem:[%s197 + $0x248] sm:$0xff]
                %282 = vst [vmem:[%s198 + $0x148] sm:$0xff] %v281
                %v283 = vld [vmem:[%s197 + $0x250] sm:$0xff]
                %284 = vst [vmem:[%s198 + $0x150] sm:$0xff] %v283
                %v285 = vld [vmem:[%s197 + $0x258] sm:$0xff]
                %286 = vst [vmem:[%s198 + $0x158] sm:$0xff] %v285
                %v287 = vld [vmem:[%s197 + $0x260] sm:$0xff]
                %288 = vst [vmem:[%s198 + $0x160] sm:$0xff] %v287
                %v289 = vld [vmem:[%s197 + $0x268] sm:$0xff]
                %290 = vst [vmem:[%s198 + $0x168] sm:$0xff] %v289
                %v291 = vld [vmem:[%s197 + $0x270] sm:$0xff]
                %292 = vst [vmem:[%s198 + $0x170] sm:$0xff] %v291
                %v293 = vld [vmem:[%s197 + $0x278] sm:$0xff]
                %294 = vst [vmem:[%s198 + $0x178] sm:$0xff] %v293
                %v295 = vld [vmem:[%s197 + $0x300] sm:$0xff]
                %296 = vst [vmem:[%s198 + $0x180] sm:$0xff] %v295
                %v297 = vld [vmem:[%s197 + $0x308] sm:$0xff]
                %298 = vst [vmem:[%s198 + $0x188] sm:$0xff] %v297
                %v299 = vld [vmem:[%s197 + $0x310] sm:$0xff]
                %300 = vst [vmem:[%s198 + $0x190] sm:$0xff] %v299
                %v301 = vld [vmem:[%s197 + $0x318] sm:$0xff]
                %302 = vst [vmem:[%s198 + $0x198] sm:$0xff] %v301
                %v303 = vld [vmem:[%s197 + $0x320] sm:$0xff]
                %304 = vst [vmem:[%s198 + $0x1a0] sm:$0xff] %v303
                %v305 = vld [vmem:[%s197 + $0x328] sm:$0xff]
                %306 = vst [vmem:[%s198 + $0x1a8] sm:$0xff] %v305
                %v307 = vld [vmem:[%s197 + $0x330] sm:$0xff]
                %308 = vst [vmem:[%s198 + $0x1b0] sm:$0xff] %v307
                %v309 = vld [vmem:[%s197 + $0x338] sm:$0xff]
                %310 = vst [vmem:[%s198 + $0x1b8] sm:$0xff] %v309
                %v311 = vld [vmem:[%s197 + $0x340] sm:$0xff]
                %312 = vst [vmem:[%s198 + $0x1c0] sm:$0xff] %v311
                %v313 = vld [vmem:[%s197 + $0x348] sm:$0xff]
                %314 = vst [vmem:[%s198 + $0x1c8] sm:$0xff] %v313
                %v315 = vld [vmem:[%s197 + $0x350] sm:$0xff]
                %316 = vst [vmem:[%s198 + $0x1d0] sm:$0xff] %v315
                %v317 = vld [vmem:[%s197 + $0x358] sm:$0xff]
                %318 = vst [vmem:[%s198 + $0x1d8] sm:$0xff] %v317
                %v319 = vld [vmem:[%s197 + $0x360] sm:$0xff]
                %320 = vst [vmem:[%s198 + $0x1e0] sm:$0xff] %v319
                %v321 = vld [vmem:[%s197 + $0x368] sm:$0xff]
                %322 = vst [vmem:[%s198 + $0x1e8] sm:$0xff] %v321
                %v323 = vld [vmem:[%s197 + $0x370] sm:$0xff]
                %324 = vst [vmem:[%s198 + $0x1f0] sm:$0xff] %v323
                %v325 = vld [vmem:[%s197 + $0x378] sm:$0xff]
                %326 = vst [vmem:[%s198 + $0x1f8] sm:$0xff] %v325
                %v327 = vld [vmem:[%s197 + $0x400] sm:$0xff]
                %328 = vst [vmem:[%s198 + $0x200] sm:$0xff] %v327
                %v329 = vld [vmem:[%s197 + $0x408] sm:$0xff]
                %330 = vst [vmem:[%s198 + $0x208] sm:$0xff] %v329
                %v331 = vld [vmem:[%s197 + $0x410] sm:$0xff]
                %332 = vst [vmem:[%s198 + $0x210] sm:$0xff] %v331
                %v333 = vld [vmem:[%s197 + $0x418] sm:$0xff]
                %334 = vst [vmem:[%s198 + $0x218] sm:$0xff] %v333
                %v335 = vld [vmem:[%s197 + $0x420] sm:$0xff]
                %336 = vst [vmem:[%s198 + $0x220] sm:$0xff] %v335
                %v337 = vld [vmem:[%s197 + $0x428] sm:$0xff]
                %338 = vst [vmem:[%s198 + $0x228] sm:$0xff] %v337
                %v339 = vld [vmem:[%s197 + $0x430] sm:$0xff]
                %340 = vst [vmem:[%s198 + $0x230] sm:$0xff] %v339
                %v341 = vld [vmem:[%s197 + $0x438] sm:$0xff]
                %342 = vst [vmem:[%s198 + $0x238] sm:$0xff] %v341
                %v343 = vld [vmem:[%s197 + $0x440] sm:$0xff]
                %344 = vst [vmem:[%s198 + $0x240] sm:$0xff] %v343
                %v345 = vld [vmem:[%s197 + $0x448] sm:$0xff]
                %346 = vst [vmem:[%s198 + $0x248] sm:$0xff] %v345
                %v347 = vld [vmem:[%s197 + $0x450] sm:$0xff]
                %348 = vst [vmem:[%s198 + $0x250] sm:$0xff] %v347
                %v349 = vld [vmem:[%s197 + $0x458] sm:$0xff]
                %350 = vst [vmem:[%s198 + $0x258] sm:$0xff] %v349
                %v351 = vld [vmem:[%s197 + $0x460] sm:$0xff]
                %352 = vst [vmem:[%s198 + $0x260] sm:$0xff] %v351
                %v353 = vld [vmem:[%s197 + $0x468] sm:$0xff]
                %354 = vst [vmem:[%s198 + $0x268] sm:$0xff] %v353
                %v355 = vld [vmem:[%s197 + $0x470] sm:$0xff]
                %356 = vst [vmem:[%s198 + $0x270] sm:$0xff] %v355
                %v357 = vld [vmem:[%s197 + $0x478] sm:$0xff]
                %358 = vst [vmem:[%s198 + $0x278] sm:$0xff] %v357
                %v359 = vld [vmem:[%s197 + $0x500] sm:$0xff]
                %360 = vst [vmem:[%s198 + $0x280] sm:$0xff] %v359
                %v361 = vld [vmem:[%s197 + $0x508] sm:$0xff]
                %362 = vst [vmem:[%s198 + $0x288] sm:$0xff] %v361
                %v363 = vld [vmem:[%s197 + $0x510] sm:$0xff]
                %364 = vst [vmem:[%s198 + $0x290] sm:$0xff] %v363
                %v365 = vld [vmem:[%s197 + $0x518] sm:$0xff]
                %366 = vst [vmem:[%s198 + $0x298] sm:$0xff] %v365
                %v367 = vld [vmem:[%s197 + $0x520] sm:$0xff]
                %368 = vst [vmem:[%s198 + $0x2a0] sm:$0xff] %v367
                %v369 = vld [vmem:[%s197 + $0x528] sm:$0xff]
                %370 = vst [vmem:[%s198 + $0x2a8] sm:$0xff] %v369
                %v371 = vld [vmem:[%s197 + $0x530] sm:$0xff]
                %372 = vst [vmem:[%s198 + $0x2b0] sm:$0xff] %v371
                %v373 = vld [vmem:[%s197 + $0x538] sm:$0xff]
                %374 = vst [vmem:[%s198 + $0x2b8] sm:$0xff] %v373
                %v375 = vld [vmem:[%s197 + $0x540] sm:$0xff]
                %376 = vst [vmem:[%s198 + $0x2c0] sm:$0xff] %v375
                %v377 = vld [vmem:[%s197 + $0x548] sm:$0xff]
                %378 = vst [vmem:[%s198 + $0x2c8] sm:$0xff] %v377
                %v379 = vld [vmem:[%s197 + $0x550] sm:$0xff]
                %380 = vst [vmem:[%s198 + $0x2d0] sm:$0xff] %v379
                %v381 = vld [vmem:[%s197 + $0x558] sm:$0xff]
                %382 = vst [vmem:[%s198 + $0x2d8] sm:$0xff] %v381
                %v383 = vld [vmem:[%s197 + $0x560] sm:$0xff]
                %384 = vst [vmem:[%s198 + $0x2e0] sm:$0xff] %v383
                %v385 = vld [vmem:[%s197 + $0x568] sm:$0xff]
                %386 = vst [vmem:[%s198 + $0x2e8] sm:$0xff] %v385
                %v387 = vld [vmem:[%s197 + $0x570] sm:$0xff]
                %388 = vst [vmem:[%s198 + $0x2f0] sm:$0xff] %v387
                %v389 = vld [vmem:[%s197 + $0x578] sm:$0xff]
                %390 = vst [vmem:[%s198 + $0x2f8] sm:$0xff] %v389
                %v391 = vld [vmem:[%s197 + $0x600] sm:$0xff]
                %392 = vst [vmem:[%s198 + $0x300] sm:$0xff] %v391
                %v393 = vld [vmem:[%s197 + $0x608] sm:$0xff]
                %394 = vst [vmem:[%s198 + $0x308] sm:$0xff] %v393
                %v395 = vld [vmem:[%s197 + $0x610] sm:$0xff]
                %396 = vst [vmem:[%s198 + $0x310] sm:$0xff] %v395
                %v397 = vld [vmem:[%s197 + $0x618] sm:$0xff]
                %398 = vst [vmem:[%s198 + $0x318] sm:$0xff] %v397
                %v399 = vld [vmem:[%s197 + $0x620] sm:$0xff]
                %400 = vst [vmem:[%s198 + $0x320] sm:$0xff] %v399
                %v401 = vld [vmem:[%s197 + $0x628] sm:$0xff]
                %402 = vst [vmem:[%s198 + $0x328] sm:$0xff] %v401
                %v403 = vld [vmem:[%s197 + $0x630] sm:$0xff]
                %404 = vst [vmem:[%s198 + $0x330] sm:$0xff] %v403
                %v405 = vld [vmem:[%s197 + $0x638] sm:$0xff]
                %406 = vst [vmem:[%s198 + $0x338] sm:$0xff] %v405
                %v407 = vld [vmem:[%s197 + $0x640] sm:$0xff]
                %408 = vst [vmem:[%s198 + $0x340] sm:$0xff] %v407
                %v409 = vld [vmem:[%s197 + $0x648] sm:$0xff]
                %410 = vst [vmem:[%s198 + $0x348] sm:$0xff] %v409
                %v411 = vld [vmem:[%s197 + $0x650] sm:$0xff]
                %412 = vst [vmem:[%s198 + $0x350] sm:$0xff] %v411
                %v413 = vld [vmem:[%s197 + $0x658] sm:$0xff]
                %414 = vst [vmem:[%s198 + $0x358] sm:$0xff] %v413
                %v415 = vld [vmem:[%s197 + $0x660] sm:$0xff]
                %416 = vst [vmem:[%s198 + $0x360] sm:$0xff] %v415
                %v417 = vld [vmem:[%s197 + $0x668] sm:$0xff]
                %418 = vst [vmem:[%s198 + $0x368] sm:$0xff] %v417
                %v419 = vld [vmem:[%s197 + $0x670] sm:$0xff]
                %420 = vst [vmem:[%s198 + $0x370] sm:$0xff] %v419
                %v421 = vld [vmem:[%s197 + $0x678] sm:$0xff]
                %422 = vst [vmem:[%s198 + $0x378] sm:$0xff] %v421
                %v423 = vld [vmem:[%s197 + $0x700] sm:$0xff]
                %424 = vst [vmem:[%s198 + $0x380] sm:$0xff] %v423
                %v425 = vld [vmem:[%s197 + $0x708] sm:$0xff]
                %426 = vst [vmem:[%s198 + $0x388] sm:$0xff] %v425
                %v427 = vld [vmem:[%s197 + $0x710] sm:$0xff]
                %428 = vst [vmem:[%s198 + $0x390] sm:$0xff] %v427
                %v429 = vld [vmem:[%s197 + $0x718] sm:$0xff]
                %430 = vst [vmem:[%s198 + $0x398] sm:$0xff] %v429
                %v431 = vld [vmem:[%s197 + $0x720] sm:$0xff]
                %432 = vst [vmem:[%s198 + $0x3a0] sm:$0xff] %v431
                %v433 = vld [vmem:[%s197 + $0x728] sm:$0xff]
                %434 = vst [vmem:[%s198 + $0x3a8] sm:$0xff] %v433
                %v435 = vld [vmem:[%s197 + $0x730] sm:$0xff]
                %436 = vst [vmem:[%s198 + $0x3b0] sm:$0xff] %v435
                %v437 = vld [vmem:[%s197 + $0x738] sm:$0xff]
                %438 = vst [vmem:[%s198 + $0x3b8] sm:$0xff] %v437
                %v439 = vld [vmem:[%s197 + $0x740] sm:$0xff]
                %440 = vst [vmem:[%s198 + $0x3c0] sm:$0xff] %v439
                %v441 = vld [vmem:[%s197 + $0x748] sm:$0xff]
                %442 = vst [vmem:[%s198 + $0x3c8] sm:$0xff] %v441
                %v443 = vld [vmem:[%s197 + $0x750] sm:$0xff]
                %444 = vst [vmem:[%s198 + $0x3d0] sm:$0xff] %v443
                %v445 = vld [vmem:[%s197 + $0x758] sm:$0xff]
                %446 = vst [vmem:[%s198 + $0x3d8] sm:$0xff] %v445
                %v447 = vld [vmem:[%s197 + $0x760] sm:$0xff]
                %448 = vst [vmem:[%s198 + $0x3e0] sm:$0xff] %v447
                %v449 = vld [vmem:[%s197 + $0x768] sm:$0xff]
                %450 = vst [vmem:[%s198 + $0x3e8] sm:$0xff] %v449
                %v451 = vld [vmem:[%s197 + $0x770] sm:$0xff]
                %452 = vst [vmem:[%s198 + $0x3f0] sm:$0xff] %v451
                %v453 = vld [vmem:[%s197 + $0x778] sm:$0xff]
                %454 = vst [vmem:[%s198 + $0x3f8] sm:$0xff] %v453
              $region53: #{tpu_custom_call.1} parent=47 // loop_footer
                %s196 = sadd.s32 1, %s192
              $region54: #{tpu_custom_call.1} parent=47 // loop_footer_branch
                %191 = sbr.rel target = $region50
              $region55: #{tpu_custom_call.1} parent=47 // loop_exit
                _
            $region48: #{tpu_custom_call.1} parent=39 // pred_fallthru
              _
          $region40: #{tpu_custom_call.1} parent=35 // pred_fallthru
            _
          %723 = vnop
        $region36: #{tpu_custom_call.1} parent=31 // pred_fallthru
          _
      $region32: #{tpu_custom_call.1} parent=5 // pred_fallthru
        _
      %p724 = scmp.le.s32.totalorder 1, %s12
      %p725 = scmp.lt.s32.totalorder %s12, 3
      %p726 = pnand %p724, %p725
      %p727 = pneg %p726
      // Predicated region
      $region71: #{tpu_custom_call.1} parent=5 // pred_check
        _
      $region72: #{tpu_custom_call.1} parent=5 // pred_check_branch
        %729 = sbr.rel (%p726) target = $region74
      $region73: #{tpu_custom_call.1} parent=5 // pred_region
        %s730 = ssub.s32 %s12, 1
        %s731 = sand.u32 %s25, 1
        %s732 = sand.u32 %s25, 1
        %s733 = smul.addr %s732, 1024
        %s734 = scalar_lea.vmem [#allocation3], %s733
        // Predicated region
        $region75: #{tpu_custom_call.1} parent=73 // pred_check
          %p735 = pneg %p38
        $region76: #{tpu_custom_call.1} parent=73 // pred_check_branch
          %737 = sbr.rel (%p735) target = $region78
        $region77: #{tpu_custom_call.1} parent=73 // pred_region
          _
        $region78: #{tpu_custom_call.1} parent=73 // pred_fallthru
          _
        %s738 = sand.u32 %s25, 1
        %s739 = sand.u32 %s25, 1
        %s740 = smul.addr %s739, 1024
        %s741 = scalar_lea.vmem [#allocation3], %s740
        %p742 = pneg %p38
        %p743 = pneg %p35
        %p744 = pneg %p59
        %p745 = pneg %p56
        %p746 = pneg %p80
        %p747 = pneg %p77
        %p748 = pneg %p101
        %p749 = pneg %p98
        %p750 = pneg %p122
        %p751 = pneg %p119
        %p752 = pneg %p143
        %p753 = pneg %p140
        %s754 = smul.u32 16, %s17
        %p756 = scmp.eq.s32.totalorder %s17, 0
        // Predicated region
        $region79: #{tpu_custom_call.1} parent=73 // pred_check
          %p757 = pneg %p756
        $region80: #{tpu_custom_call.1} parent=73 // pred_check_branch
          %759 = sbr.rel (%p757) target = $region82
        $region81: #{tpu_custom_call.1} parent=73 // pred_region
          %760 = vst [vmem:[#allocation2] sm:$0xff] 0.0
        $region82: #{tpu_custom_call.1} parent=73 // pred_fallthru
          _
        %v761 = vld [vmem:[%s734] sm:$0xff]
        %v762 = vld [vmem:[%s734 + $0x8] sm:$0xff]
        %v763 = vld [vmem:[%s734 + $0x10] sm:$0xff]
        %v764 = vld [vmem:[%s734 + $0x18] sm:$0xff]
        %v765 = vld [vmem:[%s734 + $0x20] sm:$0xff]
        %v766 = vld [vmem:[%s734 + $0x28] sm:$0xff]
        %v767 = vld [vmem:[%s734 + $0x30] sm:$0xff]
        %v768 = vld [vmem:[%s734 + $0x38] sm:$0xff]
        %v769 = vld [vmem:[%s734 + $0x40] sm:$0xff]
        %v770 = vld [vmem:[%s734 + $0x48] sm:$0xff]
        %v771 = vld [vmem:[%s734 + $0x50] sm:$0xff]
        %v772 = vld [vmem:[%s734 + $0x58] sm:$0xff]
        %v773 = vld [vmem:[%s734 + $0x60] sm:$0xff]
        %v774 = vld [vmem:[%s734 + $0x68] sm:$0xff]
        %v775 = vld [vmem:[%s734 + $0x70] sm:$0xff]
        %v776 = vld [vmem:[%s734 + $0x78] sm:$0xff]
        %v777 = vld [vmem:[%s734 + $0x80] sm:$0xff]
        %v778 = vld [vmem:[%s734 + $0x88] sm:$0xff]
        %v779 = vld [vmem:[%s734 + $0x90] sm:$0xff]
        %v780 = vld [vmem:[%s734 + $0x98] sm:$0xff]
        %v781 = vld [vmem:[%s734 + $0xa0] sm:$0xff]
        %v782 = vld [vmem:[%s734 + $0xa8] sm:$0xff]
        %v783 = vld [vmem:[%s734 + $0xb0] sm:$0xff]
        %v784 = vld [vmem:[%s734 + $0xb8] sm:$0xff]
        %v785 = vld [vmem:[%s734 + $0xc0] sm:$0xff]
        %v786 = vld [vmem:[%s734 + $0xc8] sm:$0xff]
        %v787 = vld [vmem:[%s734 + $0xd0] sm:$0xff]
        %v788 = vld [vmem:[%s734 + $0xd8] sm:$0xff]
        %v789 = vld [vmem:[%s734 + $0xe0] sm:$0xff]
        %v790 = vld [vmem:[%s734 + $0xe8] sm:$0xff]
        %v791 = vld [vmem:[%s734 + $0xf0] sm:$0xff]
        %v792 = vld [vmem:[%s734 + $0xf8] sm:$0xff]
        %v793 = vld [vmem:[%s734 + $0x100] sm:$0xff]
        %v794 = vld [vmem:[%s734 + $0x108] sm:$0xff]
        %v795 = vld [vmem:[%s734 + $0x110] sm:$0xff]
        %v796 = vld [vmem:[%s734 + $0x118] sm:$0xff]
        %v797 = vld [vmem:[%s734 + $0x120] sm:$0xff]
        %v798 = vld [vmem:[%s734 + $0x128] sm:$0xff]
        %v799 = vld [vmem:[%s734 + $0x130] sm:$0xff]
        %v800 = vld [vmem:[%s734 + $0x138] sm:$0xff]
        %v801 = vld [vmem:[%s734 + $0x140] sm:$0xff]
        %v802 = vld [vmem:[%s734 + $0x148] sm:$0xff]
        %v803 = vld [vmem:[%s734 + $0x150] sm:$0xff]
        %v804 = vld [vmem:[%s734 + $0x158] sm:$0xff]
        %v805 = vld [vmem:[%s734 + $0x160] sm:$0xff]
        %v806 = vld [vmem:[%s734 + $0x168] sm:$0xff]
        %v807 = vld [vmem:[%s734 + $0x170] sm:$0xff]
        %v808 = vld [vmem:[%s734 + $0x178] sm:$0xff]
        %v809 = vld [vmem:[%s734 + $0x180] sm:$0xff]
        %v810 = vld [vmem:[%s734 + $0x188] sm:$0xff]
        %v811 = vld [vmem:[%s734 + $0x190] sm:$0xff]
        %v812 = vld [vmem:[%s734 + $0x198] sm:$0xff]
        %v813 = vld [vmem:[%s734 + $0x1a0] sm:$0xff]
        %v814 = vld [vmem:[%s734 + $0x1a8] sm:$0xff]
        %v815 = vld [vmem:[%s734 + $0x1b0] sm:$0xff]
        %v816 = vld [vmem:[%s734 + $0x1b8] sm:$0xff]
        %v817 = vld [vmem:[%s734 + $0x1c0] sm:$0xff]
        %v818 = vld [vmem:[%s734 + $0x1c8] sm:$0xff]
        %v819 = vld [vmem:[%s734 + $0x1d0] sm:$0xff]
        %v820 = vld [vmem:[%s734 + $0x1d8] sm:$0xff]
        %v821 = vld [vmem:[%s734 + $0x1e0] sm:$0xff]
        %v822 = vld [vmem:[%s734 + $0x1e8] sm:$0xff]
        %v823 = vld [vmem:[%s734 + $0x1f0] sm:$0xff]
        %v824 = vld [vmem:[%s734 + $0x1f8] sm:$0xff]
        %v825 = vld [vmem:[%s734 + $0x200] sm:$0xff]
        %v826 = vld [vmem:[%s734 + $0x208] sm:$0xff]
        %v827 = vld [vmem:[%s734 + $0x210] sm:$0xff]
        %v828 = vld [vmem:[%s734 + $0x218] sm:$0xff]
        %v829 = vld [vmem:[%s734 + $0x220] sm:$0xff]
        %v830 = vld [vmem:[%s734 + $0x228] sm:$0xff]
        %v831 = vld [vmem:[%s734 + $0x230] sm:$0xff]
        %v832 = vld [vmem:[%s734 + $0x238] sm:$0xff]
        %v833 = vld [vmem:[%s734 + $0x240] sm:$0xff]
        %v834 = vld [vmem:[%s734 + $0x248] sm:$0xff]
        %v835 = vld [vmem:[%s734 + $0x250] sm:$0xff]
        %v836 = vld [vmem:[%s734 + $0x258] sm:$0xff]
        %v837 = vld [vmem:[%s734 + $0x260] sm:$0xff]
        %v838 = vld [vmem:[%s734 + $0x268] sm:$0xff]
        %v839 = vld [vmem:[%s734 + $0x270] sm:$0xff]
        %v840 = vld [vmem:[%s734 + $0x278] sm:$0xff]
        %v841 = vld [vmem:[%s734 + $0x280] sm:$0xff]
        %v842 = vld [vmem:[%s734 + $0x288] sm:$0xff]
        %v843 = vld [vmem:[%s734 + $0x290] sm:$0xff]
        %v844 = vld [vmem:[%s734 + $0x298] sm:$0xff]
        %v845 = vld [vmem:[%s734 + $0x2a0] sm:$0xff]
        %v846 = vld [vmem:[%s734 + $0x2a8] sm:$0xff]
        %v847 = vld [vmem:[%s734 + $0x2b0] sm:$0xff]
        %v848 = vld [vmem:[%s734 + $0x2b8] sm:$0xff]
        %v849 = vld [vmem:[%s734 + $0x2c0] sm:$0xff]
        %v850 = vld [vmem:[%s734 + $0x2c8] sm:$0xff]
        %v851 = vld [vmem:[%s734 + $0x2d0] sm:$0xff]
        %v852 = vld [vmem:[%s734 + $0x2d8] sm:$0xff]
        %v853 = vld [vmem:[%s734 + $0x2e0] sm:$0xff]
        %v854 = vld [vmem:[%s734 + $0x2e8] sm:$0xff]
        %v855 = vld [vmem:[%s734 + $0x2f0] sm:$0xff]
        %v856 = vld [vmem:[%s734 + $0x2f8] sm:$0xff]
        %v857 = vld [vmem:[%s734 + $0x300] sm:$0xff]
        %v858 = vld [vmem:[%s734 + $0x308] sm:$0xff]
        %v859 = vld [vmem:[%s734 + $0x310] sm:$0xff]
        %v860 = vld [vmem:[%s734 + $0x318] sm:$0xff]
        %v861 = vld [vmem:[%s734 + $0x320] sm:$0xff]
        %v862 = vld [vmem:[%s734 + $0x328] sm:$0xff]
        %v863 = vld [vmem:[%s734 + $0x330] sm:$0xff]
        %v864 = vld [vmem:[%s734 + $0x338] sm:$0xff]
        %v865 = vld [vmem:[%s734 + $0x340] sm:$0xff]
        %v866 = vld [vmem:[%s734 + $0x348] sm:$0xff]
        %v867 = vld [vmem:[%s734 + $0x350] sm:$0xff]
        %v868 = vld [vmem:[%s734 + $0x358] sm:$0xff]
        %v869 = vld [vmem:[%s734 + $0x360] sm:$0xff]
        %v870 = vld [vmem:[%s734 + $0x368] sm:$0xff]
        %v871 = vld [vmem:[%s734 + $0x370] sm:$0xff]
        %v872 = vld [vmem:[%s734 + $0x378] sm:$0xff]
        %v873 = vld [vmem:[%s734 + $0x380] sm:$0xff]
        %v874 = vld [vmem:[%s734 + $0x388] sm:$0xff]
        %v875 = vld [vmem:[%s734 + $0x390] sm:$0xff]
        %v876 = vld [vmem:[%s734 + $0x398] sm:$0xff]
        %v877 = vld [vmem:[%s734 + $0x3a0] sm:$0xff]
        %v878 = vld [vmem:[%s734 + $0x3a8] sm:$0xff]
        %v879 = vld [vmem:[%s734 + $0x3b0] sm:$0xff]
        %v880 = vld [vmem:[%s734 + $0x3b8] sm:$0xff]
        %v881 = vld [vmem:[%s734 + $0x3c0] sm:$0xff]
        %v882 = vld [vmem:[%s734 + $0x3c8] sm:$0xff]
        %v883 = vld [vmem:[%s734 + $0x3d0] sm:$0xff]
        %v884 = vld [vmem:[%s734 + $0x3d8] sm:$0xff]
        %v885 = vld [vmem:[%s734 + $0x3e0] sm:$0xff]
        %v886 = vld [vmem:[%s734 + $0x3e8] sm:$0xff]
        %v887 = vld [vmem:[%s734 + $0x3f0] sm:$0xff]
        %v888 = vld [vmem:[%s734 + $0x3f8] sm:$0xff]
        %v889 = vld [vmem:[%s1] sm:$0x1]
        %891 = vset.pattern.permute.xlu0 0
        %892 = vperm.xlu0 %891, %v761
        %v893 = vpop.permute.xlu0 %892
        %896 = vset.pattern.permute.xlu0 0
        %897 = vperm.xlu0 %896, %v762
        %v898 = vpop.permute.xlu0 %897
        %901 = vset.pattern.permute.xlu0 0
        %902 = vperm.xlu0 %901, %v763
        %v903 = vpop.permute.xlu0 %902
        %906 = vset.pattern.permute.xlu0 0
        %907 = vperm.xlu0 %906, %v764
        %v908 = vpop.permute.xlu0 %907
        %911 = vset.pattern.permute.xlu0 0
        %912 = vperm.xlu0 %911, %v765
        %v913 = vpop.permute.xlu0 %912
        %916 = vset.pattern.permute.xlu0 0
        %917 = vperm.xlu0 %916, %v766
        %v918 = vpop.permute.xlu0 %917
        %921 = vset.pattern.permute.xlu0 0
        %922 = vperm.xlu0 %921, %v767
        %v923 = vpop.permute.xlu0 %922
        %926 = vset.pattern.permute.xlu0 0
        %927 = vperm.xlu0 %926, %v768
        %v928 = vpop.permute.xlu0 %927
        %931 = vset.pattern.permute.xlu0 0
        %932 = vperm.xlu0 %931, %v769
        %v933 = vpop.permute.xlu0 %932
        %936 = vset.pattern.permute.xlu0 0
        %937 = vperm.xlu0 %936, %v770
        %v938 = vpop.permute.xlu0 %937
        %941 = vset.pattern.permute.xlu0 0
        %942 = vperm.xlu0 %941, %v771
        %v943 = vpop.permute.xlu0 %942
        %946 = vset.pattern.permute.xlu0 0
        %947 = vperm.xlu0 %946, %v772
        %v948 = vpop.permute.xlu0 %947
        %951 = vset.pattern.permute.xlu0 0
        %952 = vperm.xlu0 %951, %v773
        %v953 = vpop.permute.xlu0 %952
        %956 = vset.pattern.permute.xlu0 0
        %957 = vperm.xlu0 %956, %v774
        %v958 = vpop.permute.xlu0 %957
        %961 = vset.pattern.permute.xlu0 0
        %962 = vperm.xlu0 %961, %v775
        %v963 = vpop.permute.xlu0 %962
        %966 = vset.pattern.permute.xlu0 0
        %967 = vperm.xlu0 %966, %v776
        %v968 = vpop.permute.xlu0 %967
        %971 = vset.pattern.permute.xlu0 0
        %972 = vperm.xlu0 %971, %v777
        %v973 = vpop.permute.xlu0 %972
        %976 = vset.pattern.permute.xlu0 0
        %977 = vperm.xlu0 %976, %v778
        %v978 = vpop.permute.xlu0 %977
        %981 = vset.pattern.permute.xlu0 0
        %982 = vperm.xlu0 %981, %v779
        %v983 = vpop.permute.xlu0 %982
        %986 = vset.pattern.permute.xlu0 0
        %987 = vperm.xlu0 %986, %v780
        %v988 = vpop.permute.xlu0 %987
        %991 = vset.pattern.permute.xlu0 0
        %992 = vperm.xlu0 %991, %v781
        %v993 = vpop.permute.xlu0 %992
        %996 = vset.pattern.permute.xlu0 0
        %997 = vperm.xlu0 %996, %v782
        %v998 = vpop.permute.xlu0 %997
        %1001 = vset.pattern.permute.xlu0 0
        %1002 = vperm.xlu0 %1001, %v783
        %v1003 = vpop.permute.xlu0 %1002
        %1006 = vset.pattern.permute.xlu0 0
        %1007 = vperm.xlu0 %1006, %v784
        %v1008 = vpop.permute.xlu0 %1007
        %1011 = vset.pattern.permute.xlu0 0
        %1012 = vperm.xlu0 %1011, %v785
        %v1013 = vpop.permute.xlu0 %1012
        %1016 = vset.pattern.permute.xlu0 0
        %1017 = vperm.xlu0 %1016, %v786
        %v1018 = vpop.permute.xlu0 %1017
        %1021 = vset.pattern.permute.xlu0 0
        %1022 = vperm.xlu0 %1021, %v787
        %v1023 = vpop.permute.xlu0 %1022
        %1026 = vset.pattern.permute.xlu0 0
        %1027 = vperm.xlu0 %1026, %v788
        %v1028 = vpop.permute.xlu0 %1027
        %1031 = vset.pattern.permute.xlu0 0
        %1032 = vperm.xlu0 %1031, %v789
        %v1033 = vpop.permute.xlu0 %1032
        %1036 = vset.pattern.permute.xlu0 0
        %1037 = vperm.xlu0 %1036, %v790
        %v1038 = vpop.permute.xlu0 %1037
        %1041 = vset.pattern.permute.xlu0 0
        %1042 = vperm.xlu0 %1041, %v791
        %v1043 = vpop.permute.xlu0 %1042
        %1046 = vset.pattern.permute.xlu0 0
        %1047 = vperm.xlu0 %1046, %v792
        %v1048 = vpop.permute.xlu0 %1047
        %1051 = vset.pattern.permute.xlu0 0
        %1052 = vperm.xlu0 %1051, %v793
        %v1053 = vpop.permute.xlu0 %1052
        %1056 = vset.pattern.permute.xlu0 0
        %1057 = vperm.xlu0 %1056, %v794
        %v1058 = vpop.permute.xlu0 %1057
        %1061 = vset.pattern.permute.xlu0 0
        %1062 = vperm.xlu0 %1061, %v795
        %v1063 = vpop.permute.xlu0 %1062
        %1066 = vset.pattern.permute.xlu0 0
        %1067 = vperm.xlu0 %1066, %v796
        %v1068 = vpop.permute.xlu0 %1067
        %1071 = vset.pattern.permute.xlu0 0
        %1072 = vperm.xlu0 %1071, %v797
        %v1073 = vpop.permute.xlu0 %1072
        %1076 = vset.pattern.permute.xlu0 0
        %1077 = vperm.xlu0 %1076, %v798
        %v1078 = vpop.permute.xlu0 %1077
        %1081 = vset.pattern.permute.xlu0 0
        %1082 = vperm.xlu0 %1081, %v799
        %v1083 = vpop.permute.xlu0 %1082
        %1086 = vset.pattern.permute.xlu0 0
        %1087 = vperm.xlu0 %1086, %v800
        %v1088 = vpop.permute.xlu0 %1087
        %1091 = vset.pattern.permute.xlu0 0
        %1092 = vperm.xlu0 %1091, %v801
        %v1093 = vpop.permute.xlu0 %1092
        %1096 = vset.pattern.permute.xlu0 0
        %1097 = vperm.xlu0 %1096, %v802
        %v1098 = vpop.permute.xlu0 %1097
        %1101 = vset.pattern.permute.xlu0 0
        %1102 = vperm.xlu0 %1101, %v803
        %v1103 = vpop.permute.xlu0 %1102
        %1106 = vset.pattern.permute.xlu0 0
        %1107 = vperm.xlu0 %1106, %v804
        %v1108 = vpop.permute.xlu0 %1107
        %1111 = vset.pattern.permute.xlu0 0
        %1112 = vperm.xlu0 %1111, %v805
        %v1113 = vpop.permute.xlu0 %1112
        %1116 = vset.pattern.permute.xlu0 0
        %1117 = vperm.xlu0 %1116, %v806
        %v1118 = vpop.permute.xlu0 %1117
        %1121 = vset.pattern.permute.xlu0 0
        %1122 = vperm.xlu0 %1121, %v807
        %v1123 = vpop.permute.xlu0 %1122
        %1126 = vset.pattern.permute.xlu0 0
        %1127 = vperm.xlu0 %1126, %v808
        %v1128 = vpop.permute.xlu0 %1127
        %1131 = vset.pattern.permute.xlu0 0
        %1132 = vperm.xlu0 %1131, %v809
        %v1133 = vpop.permute.xlu0 %1132
        %1136 = vset.pattern.permute.xlu0 0
        %1137 = vperm.xlu0 %1136, %v810
        %v1138 = vpop.permute.xlu0 %1137
        %1141 = vset.pattern.permute.xlu0 0
        %1142 = vperm.xlu0 %1141, %v811
        %v1143 = vpop.permute.xlu0 %1142
        %1146 = vset.pattern.permute.xlu0 0
        %1147 = vperm.xlu0 %1146, %v812
        %v1148 = vpop.permute.xlu0 %1147
        %1151 = vset.pattern.permute.xlu0 0
        %1152 = vperm.xlu0 %1151, %v813
        %v1153 = vpop.permute.xlu0 %1152
        %1156 = vset.pattern.permute.xlu0 0
        %1157 = vperm.xlu0 %1156, %v814
        %v1158 = vpop.permute.xlu0 %1157
        %1161 = vset.pattern.permute.xlu0 0
        %1162 = vperm.xlu0 %1161, %v815
        %v1163 = vpop.permute.xlu0 %1162
        %1166 = vset.pattern.permute.xlu0 0
        %1167 = vperm.xlu0 %1166, %v816
        %v1168 = vpop.permute.xlu0 %1167
        %1171 = vset.pattern.permute.xlu0 0
        %1172 = vperm.xlu0 %1171, %v817
        %v1173 = vpop.permute.xlu0 %1172
        %1176 = vset.pattern.permute.xlu0 0
        %1177 = vperm.xlu0 %1176, %v818
        %v1178 = vpop.permute.xlu0 %1177
        %1181 = vset.pattern.permute.xlu0 0
        %1182 = vperm.xlu0 %1181, %v819
        %v1183 = vpop.permute.xlu0 %1182
        %1186 = vset.pattern.permute.xlu0 0
        %1187 = vperm.xlu0 %1186, %v820
        %v1188 = vpop.permute.xlu0 %1187
        %1191 = vset.pattern.permute.xlu0 0
        %1192 = vperm.xlu0 %1191, %v821
        %v1193 = vpop.permute.xlu0 %1192
        %1196 = vset.pattern.permute.xlu0 0
        %1197 = vperm.xlu0 %1196, %v822
        %v1198 = vpop.permute.xlu0 %1197
        %1201 = vset.pattern.permute.xlu0 0
        %1202 = vperm.xlu0 %1201, %v823
        %v1203 = vpop.permute.xlu0 %1202
        %1206 = vset.pattern.permute.xlu0 0
        %1207 = vperm.xlu0 %1206, %v824
        %v1208 = vpop.permute.xlu0 %1207
        %1211 = vset.pattern.permute.xlu0 0
        %1212 = vperm.xlu0 %1211, %v825
        %v1213 = vpop.permute.xlu0 %1212
        %1216 = vset.pattern.permute.xlu0 0
        %1217 = vperm.xlu0 %1216, %v826
        %v1218 = vpop.permute.xlu0 %1217
        %1221 = vset.pattern.permute.xlu0 0
        %1222 = vperm.xlu0 %1221, %v827
        %v1223 = vpop.permute.xlu0 %1222
        %1226 = vset.pattern.permute.xlu0 0
        %1227 = vperm.xlu0 %1226, %v828
        %v1228 = vpop.permute.xlu0 %1227
        %1231 = vset.pattern.permute.xlu0 0
        %1232 = vperm.xlu0 %1231, %v829
        %v1233 = vpop.permute.xlu0 %1232
        %1236 = vset.pattern.permute.xlu0 0
        %1237 = vperm.xlu0 %1236, %v830
        %v1238 = vpop.permute.xlu0 %1237
        %1241 = vset.pattern.permute.xlu0 0
        %1242 = vperm.xlu0 %1241, %v831
        %v1243 = vpop.permute.xlu0 %1242
        %1246 = vset.pattern.permute.xlu0 0
        %1247 = vperm.xlu0 %1246, %v832
        %v1248 = vpop.permute.xlu0 %1247
        %1251 = vset.pattern.permute.xlu0 0
        %1252 = vperm.xlu0 %1251, %v833
        %v1253 = vpop.permute.xlu0 %1252
        %1256 = vset.pattern.permute.xlu0 0
        %1257 = vperm.xlu0 %1256, %v834
        %v1258 = vpop.permute.xlu0 %1257
        %1261 = vset.pattern.permute.xlu0 0
        %1262 = vperm.xlu0 %1261, %v835
        %v1263 = vpop.permute.xlu0 %1262
        %1266 = vset.pattern.permute.xlu0 0
        %1267 = vperm.xlu0 %1266, %v836
        %v1268 = vpop.permute.xlu0 %1267
        %1271 = vset.pattern.permute.xlu0 0
        %1272 = vperm.xlu0 %1271, %v837
        %v1273 = vpop.permute.xlu0 %1272
        %1276 = vset.pattern.permute.xlu0 0
        %1277 = vperm.xlu0 %1276, %v838
        %v1278 = vpop.permute.xlu0 %1277
        %1281 = vset.pattern.permute.xlu0 0
        %1282 = vperm.xlu0 %1281, %v839
        %v1283 = vpop.permute.xlu0 %1282
        %1286 = vset.pattern.permute.xlu0 0
        %1287 = vperm.xlu0 %1286, %v840
        %v1288 = vpop.permute.xlu0 %1287
        %1291 = vset.pattern.permute.xlu0 0
        %1292 = vperm.xlu0 %1291, %v841
        %v1293 = vpop.permute.xlu0 %1292
        %1296 = vset.pattern.permute.xlu0 0
        %1297 = vperm.xlu0 %1296, %v842
        %v1298 = vpop.permute.xlu0 %1297
        %1301 = vset.pattern.permute.xlu0 0
        %1302 = vperm.xlu0 %1301, %v843
        %v1303 = vpop.permute.xlu0 %1302
        %1306 = vset.pattern.permute.xlu0 0
        %1307 = vperm.xlu0 %1306, %v844
        %v1308 = vpop.permute.xlu0 %1307
        %1311 = vset.pattern.permute.xlu0 0
        %1312 = vperm.xlu0 %1311, %v845
        %v1313 = vpop.permute.xlu0 %1312
        %1316 = vset.pattern.permute.xlu0 0
        %1317 = vperm.xlu0 %1316, %v846
        %v1318 = vpop.permute.xlu0 %1317
        %1321 = vset.pattern.permute.xlu0 0
        %1322 = vperm.xlu0 %1321, %v847
        %v1323 = vpop.permute.xlu0 %1322
        %1326 = vset.pattern.permute.xlu0 0
        %1327 = vperm.xlu0 %1326, %v848
        %v1328 = vpop.permute.xlu0 %1327
        %1331 = vset.pattern.permute.xlu0 0
        %1332 = vperm.xlu0 %1331, %v849
        %v1333 = vpop.permute.xlu0 %1332
        %1336 = vset.pattern.permute.xlu0 0
        %1337 = vperm.xlu0 %1336, %v850
        %v1338 = vpop.permute.xlu0 %1337
        %1341 = vset.pattern.permute.xlu0 0
        %1342 = vperm.xlu0 %1341, %v851
        %v1343 = vpop.permute.xlu0 %1342
        %1346 = vset.pattern.permute.xlu0 0
        %1347 = vperm.xlu0 %1346, %v852
        %v1348 = vpop.permute.xlu0 %1347
        %1351 = vset.pattern.permute.xlu0 0
        %1352 = vperm.xlu0 %1351, %v853
        %v1353 = vpop.permute.xlu0 %1352
        %1356 = vset.pattern.permute.xlu0 0
        %1357 = vperm.xlu0 %1356, %v854
        %v1358 = vpop.permute.xlu0 %1357
        %1361 = vset.pattern.permute.xlu0 0
        %1362 = vperm.xlu0 %1361, %v855
        %v1363 = vpop.permute.xlu0 %1362
        %1366 = vset.pattern.permute.xlu0 0
        %1367 = vperm.xlu0 %1366, %v856
        %v1368 = vpop.permute.xlu0 %1367
        %1371 = vset.pattern.permute.xlu0 0
        %1372 = vperm.xlu0 %1371, %v857
        %v1373 = vpop.permute.xlu0 %1372
        %1376 = vset.pattern.permute.xlu0 0
        %1377 = vperm.xlu0 %1376, %v858
        %v1378 = vpop.permute.xlu0 %1377
        %1381 = vset.pattern.permute.xlu0 0
        %1382 = vperm.xlu0 %1381, %v859
        %v1383 = vpop.permute.xlu0 %1382
        %1386 = vset.pattern.permute.xlu0 0
        %1387 = vperm.xlu0 %1386, %v860
        %v1388 = vpop.permute.xlu0 %1387
        %1391 = vset.pattern.permute.xlu0 0
        %1392 = vperm.xlu0 %1391, %v861
        %v1393 = vpop.permute.xlu0 %1392
        %1396 = vset.pattern.permute.xlu0 0
        %1397 = vperm.xlu0 %1396, %v862
        %v1398 = vpop.permute.xlu0 %1397
        %1401 = vset.pattern.permute.xlu0 0
        %1402 = vperm.xlu0 %1401, %v863
        %v1403 = vpop.permute.xlu0 %1402
        %1406 = vset.pattern.permute.xlu0 0
        %1407 = vperm.xlu0 %1406, %v864
        %v1408 = vpop.permute.xlu0 %1407
        %1411 = vset.pattern.permute.xlu0 0
        %1412 = vperm.xlu0 %1411, %v865
        %v1413 = vpop.permute.xlu0 %1412
        %1416 = vset.pattern.permute.xlu0 0
        %1417 = vperm.xlu0 %1416, %v866
        %v1418 = vpop.permute.xlu0 %1417
        %1421 = vset.pattern.permute.xlu0 0
        %1422 = vperm.xlu0 %1421, %v867
        %v1423 = vpop.permute.xlu0 %1422
        %1426 = vset.pattern.permute.xlu0 0
        %1427 = vperm.xlu0 %1426, %v868
        %v1428 = vpop.permute.xlu0 %1427
        %1431 = vset.pattern.permute.xlu0 0
        %1432 = vperm.xlu0 %1431, %v869
        %v1433 = vpop.permute.xlu0 %1432
        %1436 = vset.pattern.permute.xlu0 0
        %1437 = vperm.xlu0 %1436, %v870
        %v1438 = vpop.permute.xlu0 %1437
        %1441 = vset.pattern.permute.xlu0 0
        %1442 = vperm.xlu0 %1441, %v871
        %v1443 = vpop.permute.xlu0 %1442
        %1446 = vset.pattern.permute.xlu0 0
        %1447 = vperm.xlu0 %1446, %v872
        %v1448 = vpop.permute.xlu0 %1447
        %1451 = vset.pattern.permute.xlu0 0
        %1452 = vperm.xlu0 %1451, %v873
        %v1453 = vpop.permute.xlu0 %1452
        %1456 = vset.pattern.permute.xlu0 0
        %1457 = vperm.xlu0 %1456, %v874
        %v1458 = vpop.permute.xlu0 %1457
        %1461 = vset.pattern.permute.xlu0 0
        %1462 = vperm.xlu0 %1461, %v875
        %v1463 = vpop.permute.xlu0 %1462
        %1466 = vset.pattern.permute.xlu0 0
        %1467 = vperm.xlu0 %1466, %v876
        %v1468 = vpop.permute.xlu0 %1467
        %1471 = vset.pattern.permute.xlu0 0
        %1472 = vperm.xlu0 %1471, %v877
        %v1473 = vpop.permute.xlu0 %1472
        %1476 = vset.pattern.permute.xlu0 0
        %1477 = vperm.xlu0 %1476, %v878
        %v1478 = vpop.permute.xlu0 %1477
        %1481 = vset.pattern.permute.xlu0 0
        %1482 = vperm.xlu0 %1481, %v879
        %v1483 = vpop.permute.xlu0 %1482
        %1486 = vset.pattern.permute.xlu0 0
        %1487 = vperm.xlu0 %1486, %v880
        %v1488 = vpop.permute.xlu0 %1487
        %1491 = vset.pattern.permute.xlu0 0
        %1492 = vperm.xlu0 %1491, %v881
        %v1493 = vpop.permute.xlu0 %1492
        %1496 = vset.pattern.permute.xlu0 0
        %1497 = vperm.xlu0 %1496, %v882
        %v1498 = vpop.permute.xlu0 %1497
        %1501 = vset.pattern.permute.xlu0 0
        %1502 = vperm.xlu0 %1501, %v883
        %v1503 = vpop.permute.xlu0 %1502
        %1506 = vset.pattern.permute.xlu0 0
        %1507 = vperm.xlu0 %1506, %v884
        %v1508 = vpop.permute.xlu0 %1507
        %1511 = vset.pattern.permute.xlu0 0
        %1512 = vperm.xlu0 %1511, %v885
        %v1513 = vpop.permute.xlu0 %1512
        %1516 = vset.pattern.permute.xlu0 0
        %1517 = vperm.xlu0 %1516, %v886
        %v1518 = vpop.permute.xlu0 %1517
        %1521 = vset.pattern.permute.xlu0 0
        %1522 = vperm.xlu0 %1521, %v887
        %v1523 = vpop.permute.xlu0 %1522
        %1526 = vset.pattern.permute.xlu0 0
        %1527 = vperm.xlu0 %1526, %v888
        %v1528 = vpop.permute.xlu0 %1527
        %v1530 = vlaneseq
        %v1531 = vshrl.u32 %v1530, 7
        %v1532 = vsub.s32 0, %v1531
        %v1533 = vrot.slane %v889, %v1532
        %v1534 = vmul.f32 %v893, %v1533
        %v1535 = vmul.f32 %v898, %v1533
        %v1536 = vmul.f32 %v903, %v1533
        %v1537 = vmul.f32 %v908, %v1533
        %v1538 = vmul.f32 %v913, %v1533
        %v1539 = vmul.f32 %v918, %v1533
        %v1540 = vmul.f32 %v923, %v1533
        %v1541 = vmul.f32 %v928, %v1533
        %v1542 = vmul.f32 %v933, %v1533
        %v1543 = vmul.f32 %v938, %v1533
        %v1544 = vmul.f32 %v943, %v1533
        %v1545 = vmul.f32 %v948, %v1533
        %v1546 = vmul.f32 %v953, %v1533
        %v1547 = vmul.f32 %v958, %v1533
        %v1548 = vmul.f32 %v963, %v1533
        %v1549 = vmul.f32 %v968, %v1533
        %v1550 = vmul.f32 %v973, %v1533
        %v1551 = vmul.f32 %v978, %v1533
        %v1552 = vmul.f32 %v983, %v1533
        %v1553 = vmul.f32 %v988, %v1533
        %v1554 = vmul.f32 %v993, %v1533
        %v1555 = vmul.f32 %v998, %v1533
        %v1556 = vmul.f32 %v1003, %v1533
        %v1557 = vmul.f32 %v1008, %v1533
        %v1558 = vmul.f32 %v1013, %v1533
        %v1559 = vmul.f32 %v1018, %v1533
        %v1560 = vmul.f32 %v1023, %v1533
        %v1561 = vmul.f32 %v1028, %v1533
        %v1562 = vmul.f32 %v1033, %v1533
        %v1563 = vmul.f32 %v1038, %v1533
        %v1564 = vmul.f32 %v1043, %v1533
        %v1565 = vmul.f32 %v1048, %v1533
        %v1566 = vmul.f32 %v1053, %v1533
        %v1567 = vmul.f32 %v1058, %v1533
        %v1568 = vmul.f32 %v1063, %v1533
        %v1569 = vmul.f32 %v1068, %v1533
        %v1570 = vmul.f32 %v1073, %v1533
        %v1571 = vmul.f32 %v1078, %v1533
        %v1572 = vmul.f32 %v1083, %v1533
        %v1573 = vmul.f32 %v1088, %v1533
        %v1574 = vmul.f32 %v1093, %v1533
        %v1575 = vmul.f32 %v1098, %v1533
        %v1576 = vmul.f32 %v1103, %v1533
        %v1577 = vmul.f32 %v1108, %v1533
        %v1578 = vmul.f32 %v1113, %v1533
        %v1579 = vmul.f32 %v1118, %v1533
        %v1580 = vmul.f32 %v1123, %v1533
        %v1581 = vmul.f32 %v1128, %v1533
        %v1582 = vmul.f32 %v1133, %v1533
        %v1583 = vmul.f32 %v1138, %v1533
        %v1584 = vmul.f32 %v1143, %v1533
        %v1585 = vmul.f32 %v1148, %v1533
        %v1586 = vmul.f32 %v1153, %v1533
        %v1587 = vmul.f32 %v1158, %v1533
        %v1588 = vmul.f32 %v1163, %v1533
        %v1589 = vmul.f32 %v1168, %v1533
        %v1590 = vmul.f32 %v1173, %v1533
        %v1591 = vmul.f32 %v1178, %v1533
        %v1592 = vmul.f32 %v1183, %v1533
        %v1593 = vmul.f32 %v1188, %v1533
        %v1594 = vmul.f32 %v1193, %v1533
        %v1595 = vmul.f32 %v1198, %v1533
        %v1596 = vmul.f32 %v1203, %v1533
        %v1597 = vmul.f32 %v1208, %v1533
        %v1598 = vmul.f32 %v1213, %v1533
        %v1599 = vmul.f32 %v1218, %v1533
        %v1600 = vmul.f32 %v1223, %v1533
        %v1601 = vmul.f32 %v1228, %v1533
        %v1602 = vmul.f32 %v1233, %v1533
        %v1603 = vmul.f32 %v1238, %v1533
        %v1604 = vmul.f32 %v1243, %v1533
        %v1605 = vmul.f32 %v1248, %v1533
        %v1606 = vmul.f32 %v1253, %v1533
        %v1607 = vmul.f32 %v1258, %v1533
        %v1608 = vmul.f32 %v1263, %v1533
        %v1609 = vmul.f32 %v1268, %v1533
        %v1610 = vmul.f32 %v1273, %v1533
        %v1611 = vmul.f32 %v1278, %v1533
        %v1612 = vmul.f32 %v1283, %v1533
        %v1613 = vmul.f32 %v1288, %v1533
        %v1614 = vmul.f32 %v1293, %v1533
        %v1615 = vmul.f32 %v1298, %v1533
        %v1616 = vmul.f32 %v1303, %v1533
        %v1617 = vmul.f32 %v1308, %v1533
        %v1618 = vmul.f32 %v1313, %v1533
        %v1619 = vmul.f32 %v1318, %v1533
        %v1620 = vmul.f32 %v1323, %v1533
        %v1621 = vmul.f32 %v1328, %v1533
        %v1622 = vmul.f32 %v1333, %v1533
        %v1623 = vmul.f32 %v1338, %v1533
        %v1624 = vmul.f32 %v1343, %v1533
        %v1625 = vmul.f32 %v1348, %v1533
        %v1626 = vmul.f32 %v1353, %v1533
        %v1627 = vmul.f32 %v1358, %v1533
        %v1628 = vmul.f32 %v1363, %v1533
        %v1629 = vmul.f32 %v1368, %v1533
        %v1630 = vmul.f32 %v1373, %v1533
        %v1631 = vmul.f32 %v1378, %v1533
        %v1632 = vmul.f32 %v1383, %v1533
        %v1633 = vmul.f32 %v1388, %v1533
        %v1634 = vmul.f32 %v1393, %v1533
        %v1635 = vmul.f32 %v1398, %v1533
        %v1636 = vmul.f32 %v1403, %v1533
        %v1637 = vmul.f32 %v1408, %v1533
        %v1638 = vmul.f32 %v1413, %v1533
        %v1639 = vmul.f32 %v1418, %v1533
        %v1640 = vmul.f32 %v1423, %v1533
        %v1641 = vmul.f32 %v1428, %v1533
        %v1642 = vmul.f32 %v1433, %v1533
        %v1643 = vmul.f32 %v1438, %v1533
        %v1644 = vmul.f32 %v1443, %v1533
        %v1645 = vmul.f32 %v1448, %v1533
        %v1646 = vmul.f32 %v1453, %v1533
        %v1647 = vmul.f32 %v1458, %v1533
        %v1648 = vmul.f32 %v1463, %v1533
        %v1649 = vmul.f32 %v1468, %v1533
        %v1650 = vmul.f32 %v1473, %v1533
        %v1651 = vmul.f32 %v1478, %v1533
        %v1652 = vmul.f32 %v1483, %v1533
        %v1653 = vmul.f32 %v1488, %v1533
        %v1654 = vmul.f32 %v1493, %v1533
        %v1655 = vmul.f32 %v1498, %v1533
        %v1656 = vmul.f32 %v1503, %v1533
        %v1657 = vmul.f32 %v1508, %v1533
        %v1658 = vmul.f32 %v1513, %v1533
        %v1659 = vmul.f32 %v1518, %v1533
        %v1660 = vmul.f32 %v1523, %v1533
        %v1661 = vmul.f32 %v1528, %v1533
        %v1662 = vld [vmem:[%s2] sm:$0x1]
        %v1664 = vlaneseq
        %v1665 = vshrl.u32 %v1664, 7
        %v1666 = vsub.s32 0, %v1665
        %v1667 = vrot.slane %v1662, %v1666
        %v1669 = vadd.f32 %v1534, %v1667
        %v1670 = vadd.f32 %v1535, %v1667
        %v1671 = vadd.f32 %v1536, %v1667
        %v1672 = vadd.f32 %v1537, %v1667
        %v1673 = vadd.f32 %v1538, %v1667
        %v1674 = vadd.f32 %v1539, %v1667
        %v1675 = vadd.f32 %v1540, %v1667
        %v1676 = vadd.f32 %v1541, %v1667
        %v1677 = vadd.f32 %v1542, %v1667
        %v1678 = vadd.f32 %v1543, %v1667
        %v1679 = vadd.f32 %v1544, %v1667
        %v1680 = vadd.f32 %v1545, %v1667
        %v1681 = vadd.f32 %v1546, %v1667
        %v1682 = vadd.f32 %v1547, %v1667
        %v1683 = vadd.f32 %v1548, %v1667
        %v1684 = vadd.f32 %v1549, %v1667
        %v1685 = vadd.f32 %v1550, %v1667
        %v1686 = vadd.f32 %v1551, %v1667
        %v1687 = vadd.f32 %v1552, %v1667
        %v1688 = vadd.f32 %v1553, %v1667
        %v1689 = vadd.f32 %v1554, %v1667
        %v1690 = vadd.f32 %v1555, %v1667
        %v1691 = vadd.f32 %v1556, %v1667
        %v1692 = vadd.f32 %v1557, %v1667
        %v1693 = vadd.f32 %v1558, %v1667
        %v1694 = vadd.f32 %v1559, %v1667
        %v1695 = vadd.f32 %v1560, %v1667
        %v1696 = vadd.f32 %v1561, %v1667
        %v1697 = vadd.f32 %v1562, %v1667
        %v1698 = vadd.f32 %v1563, %v1667
        %v1699 = vadd.f32 %v1564, %v1667
        %v1700 = vadd.f32 %v1565, %v1667
        %v1701 = vadd.f32 %v1566, %v1667
        %v1702 = vadd.f32 %v1567, %v1667
        %v1703 = vadd.f32 %v1568, %v1667
        %v1704 = vadd.f32 %v1569, %v1667
        %v1705 = vadd.f32 %v1570, %v1667
        %v1706 = vadd.f32 %v1571, %v1667
        %v1707 = vadd.f32 %v1572, %v1667
        %v1708 = vadd.f32 %v1573, %v1667
        %v1709 = vadd.f32 %v1574, %v1667
        %v1710 = vadd.f32 %v1575, %v1667
        %v1711 = vadd.f32 %v1576, %v1667
        %v1712 = vadd.f32 %v1577, %v1667
        %v1713 = vadd.f32 %v1578, %v1667
        %v1714 = vadd.f32 %v1579, %v1667
        %v1715 = vadd.f32 %v1580, %v1667
        %v1716 = vadd.f32 %v1581, %v1667
        %v1717 = vadd.f32 %v1582, %v1667
        %v1718 = vadd.f32 %v1583, %v1667
        %v1719 = vadd.f32 %v1584, %v1667
        %v1720 = vadd.f32 %v1585, %v1667
        %v1721 = vadd.f32 %v1586, %v1667
        %v1722 = vadd.f32 %v1587, %v1667
        %v1723 = vadd.f32 %v1588, %v1667
        %v1724 = vadd.f32 %v1589, %v1667
        %v1725 = vadd.f32 %v1590, %v1667
        %v1726 = vadd.f32 %v1591, %v1667
        %v1727 = vadd.f32 %v1592, %v1667
        %v1728 = vadd.f32 %v1593, %v1667
        %v1729 = vadd.f32 %v1594, %v1667
        %v1730 = vadd.f32 %v1595, %v1667
        %v1731 = vadd.f32 %v1596, %v1667
        %v1732 = vadd.f32 %v1597, %v1667
        %v1733 = vadd.f32 %v1598, %v1667
        %v1734 = vadd.f32 %v1599, %v1667
        %v1735 = vadd.f32 %v1600, %v1667
        %v1736 = vadd.f32 %v1601, %v1667
        %v1737 = vadd.f32 %v1602, %v1667
        %v1738 = vadd.f32 %v1603, %v1667
        %v1739 = vadd.f32 %v1604, %v1667
        %v1740 = vadd.f32 %v1605, %v1667
        %v1741 = vadd.f32 %v1606, %v1667
        %v1742 = vadd.f32 %v1607, %v1667
        %v1743 = vadd.f32 %v1608, %v1667
        %v1744 = vadd.f32 %v1609, %v1667
        %v1745 = vadd.f32 %v1610, %v1667
        %v1746 = vadd.f32 %v1611, %v1667
        %v1747 = vadd.f32 %v1612, %v1667
        %v1748 = vadd.f32 %v1613, %v1667
        %v1749 = vadd.f32 %v1614, %v1667
        %v1750 = vadd.f32 %v1615, %v1667
        %v1751 = vadd.f32 %v1616, %v1667
        %v1752 = vadd.f32 %v1617, %v1667
        %v1753 = vadd.f32 %v1618, %v1667
        %v1754 = vadd.f32 %v1619, %v1667
        %v1755 = vadd.f32 %v1620, %v1667
        %v1756 = vadd.f32 %v1621, %v1667
        %v1757 = vadd.f32 %v1622, %v1667
        %v1758 = vadd.f32 %v1623, %v1667
        %v1759 = vadd.f32 %v1624, %v1667
        %v1760 = vadd.f32 %v1625, %v1667
        %v1761 = vadd.f32 %v1626, %v1667
        %v1762 = vadd.f32 %v1627, %v1667
        %v1763 = vadd.f32 %v1628, %v1667
        %v1764 = vadd.f32 %v1629, %v1667
        %v1765 = vadd.f32 %v1630, %v1667
        %v1766 = vadd.f32 %v1631, %v1667
        %v1767 = vadd.f32 %v1632, %v1667
        %v1768 = vadd.f32 %v1633, %v1667
        %v1769 = vadd.f32 %v1634, %v1667
        %v1770 = vadd.f32 %v1635, %v1667
        %v1771 = vadd.f32 %v1636, %v1667
        %v1772 = vadd.f32 %v1637, %v1667
        %v1773 = vadd.f32 %v1638, %v1667
        %v1774 = vadd.f32 %v1639, %v1667
        %v1775 = vadd.f32 %v1640, %v1667
        %v1776 = vadd.f32 %v1641, %v1667
        %v1777 = vadd.f32 %v1642, %v1667
        %v1778 = vadd.f32 %v1643, %v1667
        %v1779 = vadd.f32 %v1644, %v1667
        %v1780 = vadd.f32 %v1645, %v1667
        %v1781 = vadd.f32 %v1646, %v1667
        %v1782 = vadd.f32 %v1647, %v1667
        %v1783 = vadd.f32 %v1648, %v1667
        %v1784 = vadd.f32 %v1649, %v1667
        %v1785 = vadd.f32 %v1650, %v1667
        %v1786 = vadd.f32 %v1651, %v1667
        %v1787 = vadd.f32 %v1652, %v1667
        %v1788 = vadd.f32 %v1653, %v1667
        %v1789 = vadd.f32 %v1654, %v1667
        %v1790 = vadd.f32 %v1655, %v1667
        %v1791 = vadd.f32 %v1656, %v1667
        %v1792 = vadd.f32 %v1657, %v1667
        %v1793 = vadd.f32 %v1658, %v1667
        %v1794 = vadd.f32 %v1659, %v1667
        %v1795 = vadd.f32 %v1660, %v1667
        %v1796 = vadd.f32 %v1661, %v1667
        %v1797 = vld [vmem:[%s1 + $0x1] sm:$0x1]
        %1798 = vset.pattern.permute.xlu0 1
        %1799 = vperm.xlu0 %1798, %v761
        %v1800 = vpop.permute.xlu0 %1799
        %1802 = vset.pattern.permute.xlu0 1
        %1803 = vperm.xlu0 %1802, %v762
        %v1804 = vpop.permute.xlu0 %1803
        %1806 = vset.pattern.permute.xlu0 1
        %1807 = vperm.xlu0 %1806, %v763
        %v1808 = vpop.permute.xlu0 %1807
        %1810 = vset.pattern.permute.xlu0 1
        %1811 = vperm.xlu0 %1810, %v764
        %v1812 = vpop.permute.xlu0 %1811
        %1814 = vset.pattern.permute.xlu0 1
        %1815 = vperm.xlu0 %1814, %v765
        %v1816 = vpop.permute.xlu0 %1815
        %1818 = vset.pattern.permute.xlu0 1
        %1819 = vperm.xlu0 %1818, %v766
        %v1820 = vpop.permute.xlu0 %1819
        %1822 = vset.pattern.permute.xlu0 1
        %1823 = vperm.xlu0 %1822, %v767
        %v1824 = vpop.permute.xlu0 %1823
        %1826 = vset.pattern.permute.xlu0 1
        %1827 = vperm.xlu0 %1826, %v768
        %v1828 = vpop.permute.xlu0 %1827
        %1830 = vset.pattern.permute.xlu0 1
        %1831 = vperm.xlu0 %1830, %v769
        %v1832 = vpop.permute.xlu0 %1831
        %1834 = vset.pattern.permute.xlu0 1
        %1835 = vperm.xlu0 %1834, %v770
        %v1836 = vpop.permute.xlu0 %1835
        %1838 = vset.pattern.permute.xlu0 1
        %1839 = vperm.xlu0 %1838, %v771
        %v1840 = vpop.permute.xlu0 %1839
        %1842 = vset.pattern.permute.xlu0 1
        %1843 = vperm.xlu0 %1842, %v772
        %v1844 = vpop.permute.xlu0 %1843
        %1846 = vset.pattern.permute.xlu0 1
        %1847 = vperm.xlu0 %1846, %v773
        %v1848 = vpop.permute.xlu0 %1847
        %1850 = vset.pattern.permute.xlu0 1
        %1851 = vperm.xlu0 %1850, %v774
        %v1852 = vpop.permute.xlu0 %1851
        %1854 = vset.pattern.permute.xlu0 1
        %1855 = vperm.xlu0 %1854, %v775
        %v1856 = vpop.permute.xlu0 %1855
        %1858 = vset.pattern.permute.xlu0 1
        %1859 = vperm.xlu0 %1858, %v776
        %v1860 = vpop.permute.xlu0 %1859
        %1862 = vset.pattern.permute.xlu0 1
        %1863 = vperm.xlu0 %1862, %v777
        %v1864 = vpop.permute.xlu0 %1863
        %1866 = vset.pattern.permute.xlu0 1
        %1867 = vperm.xlu0 %1866, %v778
        %v1868 = vpop.permute.xlu0 %1867
        %1870 = vset.pattern.permute.xlu0 1
        %1871 = vperm.xlu0 %1870, %v779
        %v1872 = vpop.permute.xlu0 %1871
        %1874 = vset.pattern.permute.xlu0 1
        %1875 = vperm.xlu0 %1874, %v780
        %v1876 = vpop.permute.xlu0 %1875
        %1878 = vset.pattern.permute.xlu0 1
        %1879 = vperm.xlu0 %1878, %v781
        %v1880 = vpop.permute.xlu0 %1879
        %1882 = vset.pattern.permute.xlu0 1
        %1883 = vperm.xlu0 %1882, %v782
        %v1884 = vpop.permute.xlu0 %1883
        %1886 = vset.pattern.permute.xlu0 1
        %1887 = vperm.xlu0 %1886, %v783
        %v1888 = vpop.permute.xlu0 %1887
        %1890 = vset.pattern.permute.xlu0 1
        %1891 = vperm.xlu0 %1890, %v784
        %v1892 = vpop.permute.xlu0 %1891
        %1894 = vset.pattern.permute.xlu0 1
        %1895 = vperm.xlu0 %1894, %v785
        %v1896 = vpop.permute.xlu0 %1895
        %1898 = vset.pattern.permute.xlu0 1
        %1899 = vperm.xlu0 %1898, %v786
        %v1900 = vpop.permute.xlu0 %1899
        %1902 = vset.pattern.permute.xlu0 1
        %1903 = vperm.xlu0 %1902, %v787
        %v1904 = vpop.permute.xlu0 %1903
        %1906 = vset.pattern.permute.xlu0 1
        %1907 = vperm.xlu0 %1906, %v788
        %v1908 = vpop.permute.xlu0 %1907
        %1910 = vset.pattern.permute.xlu0 1
        %1911 = vperm.xlu0 %1910, %v789
        %v1912 = vpop.permute.xlu0 %1911
        %1914 = vset.pattern.permute.xlu0 1
        %1915 = vperm.xlu0 %1914, %v790
        %v1916 = vpop.permute.xlu0 %1915
        %1918 = vset.pattern.permute.xlu0 1
        %1919 = vperm.xlu0 %1918, %v791
        %v1920 = vpop.permute.xlu0 %1919
        %1922 = vset.pattern.permute.xlu0 1
        %1923 = vperm.xlu0 %1922, %v792
        %v1924 = vpop.permute.xlu0 %1923
        %1926 = vset.pattern.permute.xlu0 1
        %1927 = vperm.xlu0 %1926, %v793
        %v1928 = vpop.permute.xlu0 %1927
        %1930 = vset.pattern.permute.xlu0 1
        %1931 = vperm.xlu0 %1930, %v794
        %v1932 = vpop.permute.xlu0 %1931
        %1934 = vset.pattern.permute.xlu0 1
        %1935 = vperm.xlu0 %1934, %v795
        %v1936 = vpop.permute.xlu0 %1935
        %1938 = vset.pattern.permute.xlu0 1
        %1939 = vperm.xlu0 %1938, %v796
        %v1940 = vpop.permute.xlu0 %1939
        %1942 = vset.pattern.permute.xlu0 1
        %1943 = vperm.xlu0 %1942, %v797
        %v1944 = vpop.permute.xlu0 %1943
        %1946 = vset.pattern.permute.xlu0 1
        %1947 = vperm.xlu0 %1946, %v798
        %v1948 = vpop.permute.xlu0 %1947
        %1950 = vset.pattern.permute.xlu0 1
        %1951 = vperm.xlu0 %1950, %v799
        %v1952 = vpop.permute.xlu0 %1951
        %1954 = vset.pattern.permute.xlu0 1
        %1955 = vperm.xlu0 %1954, %v800
        %v1956 = vpop.permute.xlu0 %1955
        %1958 = vset.pattern.permute.xlu0 1
        %1959 = vperm.xlu0 %1958, %v801
        %v1960 = vpop.permute.xlu0 %1959
        %1962 = vset.pattern.permute.xlu0 1
        %1963 = vperm.xlu0 %1962, %v802
        %v1964 = vpop.permute.xlu0 %1963
        %1966 = vset.pattern.permute.xlu0 1
        %1967 = vperm.xlu0 %1966, %v803
        %v1968 = vpop.permute.xlu0 %1967
        %1970 = vset.pattern.permute.xlu0 1
        %1971 = vperm.xlu0 %1970, %v804
        %v1972 = vpop.permute.xlu0 %1971
        %1974 = vset.pattern.permute.xlu0 1
        %1975 = vperm.xlu0 %1974, %v805
        %v1976 = vpop.permute.xlu0 %1975
        %1978 = vset.pattern.permute.xlu0 1
        %1979 = vperm.xlu0 %1978, %v806
        %v1980 = vpop.permute.xlu0 %1979
        %1982 = vset.pattern.permute.xlu0 1
        %1983 = vperm.xlu0 %1982, %v807
        %v1984 = vpop.permute.xlu0 %1983
        %1986 = vset.pattern.permute.xlu0 1
        %1987 = vperm.xlu0 %1986, %v808
        %v1988 = vpop.permute.xlu0 %1987
        %1990 = vset.pattern.permute.xlu0 1
        %1991 = vperm.xlu0 %1990, %v809
        %v1992 = vpop.permute.xlu0 %1991
        %1994 = vset.pattern.permute.xlu0 1
        %1995 = vperm.xlu0 %1994, %v810
        %v1996 = vpop.permute.xlu0 %1995
        %1998 = vset.pattern.permute.xlu0 1
        %1999 = vperm.xlu0 %1998, %v811
        %v2000 = vpop.permute.xlu0 %1999
        %2002 = vset.pattern.permute.xlu0 1
        %2003 = vperm.xlu0 %2002, %v812
        %v2004 = vpop.permute.xlu0 %2003
        %2006 = vset.pattern.permute.xlu0 1
        %2007 = vperm.xlu0 %2006, %v813
        %v2008 = vpop.permute.xlu0 %2007
        %2010 = vset.pattern.permute.xlu0 1
        %2011 = vperm.xlu0 %2010, %v814
        %v2012 = vpop.permute.xlu0 %2011
        %2014 = vset.pattern.permute.xlu0 1
        %2015 = vperm.xlu0 %2014, %v815
        %v2016 = vpop.permute.xlu0 %2015
        %2018 = vset.pattern.permute.xlu0 1
        %2019 = vperm.xlu0 %2018, %v816
        %v2020 = vpop.permute.xlu0 %2019
        %2022 = vset.pattern.permute.xlu0 1
        %2023 = vperm.xlu0 %2022, %v817
        %v2024 = vpop.permute.xlu0 %2023
        %2026 = vset.pattern.permute.xlu0 1
        %2027 = vperm.xlu0 %2026, %v818
        %v2028 = vpop.permute.xlu0 %2027
        %2030 = vset.pattern.permute.xlu0 1
        %2031 = vperm.xlu0 %2030, %v819
        %v2032 = vpop.permute.xlu0 %2031
        %2034 = vset.pattern.permute.xlu0 1
        %2035 = vperm.xlu0 %2034, %v820
        %v2036 = vpop.permute.xlu0 %2035
        %2038 = vset.pattern.permute.xlu0 1
        %2039 = vperm.xlu0 %2038, %v821
        %v2040 = vpop.permute.xlu0 %2039
        %2042 = vset.pattern.permute.xlu0 1
        %2043 = vperm.xlu0 %2042, %v822
        %v2044 = vpop.permute.xlu0 %2043
        %2046 = vset.pattern.permute.xlu0 1
        %2047 = vperm.xlu0 %2046, %v823
        %v2048 = vpop.permute.xlu0 %2047
        %2050 = vset.pattern.permute.xlu0 1
        %2051 = vperm.xlu0 %2050, %v824
        %v2052 = vpop.permute.xlu0 %2051
        %2054 = vset.pattern.permute.xlu0 1
        %2055 = vperm.xlu0 %2054, %v825
        %v2056 = vpop.permute.xlu0 %2055
        %2058 = vset.pattern.permute.xlu0 1
        %2059 = vperm.xlu0 %2058, %v826
        %v2060 = vpop.permute.xlu0 %2059
        %2062 = vset.pattern.permute.xlu0 1
        %2063 = vperm.xlu0 %2062, %v827
        %v2064 = vpop.permute.xlu0 %2063
        %2066 = vset.pattern.permute.xlu0 1
        %2067 = vperm.xlu0 %2066, %v828
        %v2068 = vpop.permute.xlu0 %2067
        %2070 = vset.pattern.permute.xlu0 1
        %2071 = vperm.xlu0 %2070, %v829
        %v2072 = vpop.permute.xlu0 %2071
        %2074 = vset.pattern.permute.xlu0 1
        %2075 = vperm.xlu0 %2074, %v830
        %v2076 = vpop.permute.xlu0 %2075
        %2078 = vset.pattern.permute.xlu0 1
        %2079 = vperm.xlu0 %2078, %v831
        %v2080 = vpop.permute.xlu0 %2079
        %2082 = vset.pattern.permute.xlu0 1
        %2083 = vperm.xlu0 %2082, %v832
        %v2084 = vpop.permute.xlu0 %2083
        %2086 = vset.pattern.permute.xlu0 1
        %2087 = vperm.xlu0 %2086, %v833
        %v2088 = vpop.permute.xlu0 %2087
        %2090 = vset.pattern.permute.xlu0 1
        %2091 = vperm.xlu0 %2090, %v834
        %v2092 = vpop.permute.xlu0 %2091
        %2094 = vset.pattern.permute.xlu0 1
        %2095 = vperm.xlu0 %2094, %v835
        %v2096 = vpop.permute.xlu0 %2095
        %2098 = vset.pattern.permute.xlu0 1
        %2099 = vperm.xlu0 %2098, %v836
        %v2100 = vpop.permute.xlu0 %2099
        %2102 = vset.pattern.permute.xlu0 1
        %2103 = vperm.xlu0 %2102, %v837
        %v2104 = vpop.permute.xlu0 %2103
        %2106 = vset.pattern.permute.xlu0 1
        %2107 = vperm.xlu0 %2106, %v838
        %v2108 = vpop.permute.xlu0 %2107
        %2110 = vset.pattern.permute.xlu0 1
        %2111 = vperm.xlu0 %2110, %v839
        %v2112 = vpop.permute.xlu0 %2111
        %2114 = vset.pattern.permute.xlu0 1
        %2115 = vperm.xlu0 %2114, %v840
        %v2116 = vpop.permute.xlu0 %2115
        %2118 = vset.pattern.permute.xlu0 1
        %2119 = vperm.xlu0 %2118, %v841
        %v2120 = vpop.permute.xlu0 %2119
        %2122 = vset.pattern.permute.xlu0 1
        %2123 = vperm.xlu0 %2122, %v842
        %v2124 = vpop.permute.xlu0 %2123
        %2126 = vset.pattern.permute.xlu0 1
        %2127 = vperm.xlu0 %2126, %v843
        %v2128 = vpop.permute.xlu0 %2127
        %2130 = vset.pattern.permute.xlu0 1
        %2131 = vperm.xlu0 %2130, %v844
        %v2132 = vpop.permute.xlu0 %2131
        %2134 = vset.pattern.permute.xlu0 1
        %2135 = vperm.xlu0 %2134, %v845
        %v2136 = vpop.permute.xlu0 %2135
        %2138 = vset.pattern.permute.xlu0 1
        %2139 = vperm.xlu0 %2138, %v846
        %v2140 = vpop.permute.xlu0 %2139
        %2142 = vset.pattern.permute.xlu0 1
        %2143 = vperm.xlu0 %2142, %v847
        %v2144 = vpop.permute.xlu0 %2143
        %2146 = vset.pattern.permute.xlu0 1
        %2147 = vperm.xlu0 %2146, %v848
        %v2148 = vpop.permute.xlu0 %2147
        %2150 = vset.pattern.permute.xlu0 1
        %2151 = vperm.xlu0 %2150, %v849
        %v2152 = vpop.permute.xlu0 %2151
        %2154 = vset.pattern.permute.xlu0 1
        %2155 = vperm.xlu0 %2154, %v850
        %v2156 = vpop.permute.xlu0 %2155
        %2158 = vset.pattern.permute.xlu0 1
        %2159 = vperm.xlu0 %2158, %v851
        %v2160 = vpop.permute.xlu0 %2159
        %2162 = vset.pattern.permute.xlu0 1
        %2163 = vperm.xlu0 %2162, %v852
        %v2164 = vpop.permute.xlu0 %2163
        %2166 = vset.pattern.permute.xlu0 1
        %2167 = vperm.xlu0 %2166, %v853
        %v2168 = vpop.permute.xlu0 %2167
        %2170 = vset.pattern.permute.xlu0 1
        %2171 = vperm.xlu0 %2170, %v854
        %v2172 = vpop.permute.xlu0 %2171
        %2174 = vset.pattern.permute.xlu0 1
        %2175 = vperm.xlu0 %2174, %v855
        %v2176 = vpop.permute.xlu0 %2175
        %2178 = vset.pattern.permute.xlu0 1
        %2179 = vperm.xlu0 %2178, %v856
        %v2180 = vpop.permute.xlu0 %2179
        %2182 = vset.pattern.permute.xlu0 1
        %2183 = vperm.xlu0 %2182, %v857
        %v2184 = vpop.permute.xlu0 %2183
        %2186 = vset.pattern.permute.xlu0 1
        %2187 = vperm.xlu0 %2186, %v858
        %v2188 = vpop.permute.xlu0 %2187
        %2190 = vset.pattern.permute.xlu0 1
        %2191 = vperm.xlu0 %2190, %v859
        %v2192 = vpop.permute.xlu0 %2191
        %2194 = vset.pattern.permute.xlu0 1
        %2195 = vperm.xlu0 %2194, %v860
        %v2196 = vpop.permute.xlu0 %2195
        %2198 = vset.pattern.permute.xlu0 1
        %2199 = vperm.xlu0 %2198, %v861
        %v2200 = vpop.permute.xlu0 %2199
        %2202 = vset.pattern.permute.xlu0 1
        %2203 = vperm.xlu0 %2202, %v862
        %v2204 = vpop.permute.xlu0 %2203
        %2206 = vset.pattern.permute.xlu0 1
        %2207 = vperm.xlu0 %2206, %v863
        %v2208 = vpop.permute.xlu0 %2207
        %2210 = vset.pattern.permute.xlu0 1
        %2211 = vperm.xlu0 %2210, %v864
        %v2212 = vpop.permute.xlu0 %2211
        %2214 = vset.pattern.permute.xlu0 1
        %2215 = vperm.xlu0 %2214, %v865
        %v2216 = vpop.permute.xlu0 %2215
        %2218 = vset.pattern.permute.xlu0 1
        %2219 = vperm.xlu0 %2218, %v866
        %v2220 = vpop.permute.xlu0 %2219
        %2222 = vset.pattern.permute.xlu0 1
        %2223 = vperm.xlu0 %2222, %v867
        %v2224 = vpop.permute.xlu0 %2223
        %2226 = vset.pattern.permute.xlu0 1
        %2227 = vperm.xlu0 %2226, %v868
        %v2228 = vpop.permute.xlu0 %2227
        %2230 = vset.pattern.permute.xlu0 1
        %2231 = vperm.xlu0 %2230, %v869
        %v2232 = vpop.permute.xlu0 %2231
        %2234 = vset.pattern.permute.xlu0 1
        %2235 = vperm.xlu0 %2234, %v870
        %v2236 = vpop.permute.xlu0 %2235
        %2238 = vset.pattern.permute.xlu0 1
        %2239 = vperm.xlu0 %2238, %v871
        %v2240 = vpop.permute.xlu0 %2239
        %2242 = vset.pattern.permute.xlu0 1
        %2243 = vperm.xlu0 %2242, %v872
        %v2244 = vpop.permute.xlu0 %2243
        %2246 = vset.pattern.permute.xlu0 1
        %2247 = vperm.xlu0 %2246, %v873
        %v2248 = vpop.permute.xlu0 %2247
        %2250 = vset.pattern.permute.xlu0 1
        %2251 = vperm.xlu0 %2250, %v874
        %v2252 = vpop.permute.xlu0 %2251
        %2254 = vset.pattern.permute.xlu0 1
        %2255 = vperm.xlu0 %2254, %v875
        %v2256 = vpop.permute.xlu0 %2255
        %2258 = vset.pattern.permute.xlu0 1
        %2259 = vperm.xlu0 %2258, %v876
        %v2260 = vpop.permute.xlu0 %2259
        %2262 = vset.pattern.permute.xlu0 1
        %2263 = vperm.xlu0 %2262, %v877
        %v2264 = vpop.permute.xlu0 %2263
        %2266 = vset.pattern.permute.xlu0 1
        %2267 = vperm.xlu0 %2266, %v878
        %v2268 = vpop.permute.xlu0 %2267
        %2270 = vset.pattern.permute.xlu0 1
        %2271 = vperm.xlu0 %2270, %v879
        %v2272 = vpop.permute.xlu0 %2271
        %2274 = vset.pattern.permute.xlu0 1
        %2275 = vperm.xlu0 %2274, %v880
        %v2276 = vpop.permute.xlu0 %2275
        %2278 = vset.pattern.permute.xlu0 1
        %2279 = vperm.xlu0 %2278, %v881
        %v2280 = vpop.permute.xlu0 %2279
        %2282 = vset.pattern.permute.xlu0 1
        %2283 = vperm.xlu0 %2282, %v882
        %v2284 = vpop.permute.xlu0 %2283
        %2286 = vset.pattern.permute.xlu0 1
        %2287 = vperm.xlu0 %2286, %v883
        %v2288 = vpop.permute.xlu0 %2287
        %2290 = vset.pattern.permute.xlu0 1
        %2291 = vperm.xlu0 %2290, %v884
        %v2292 = vpop.permute.xlu0 %2291
        %2294 = vset.pattern.permute.xlu0 1
        %2295 = vperm.xlu0 %2294, %v885
        %v2296 = vpop.permute.xlu0 %2295
        %2298 = vset.pattern.permute.xlu0 1
        %2299 = vperm.xlu0 %2298, %v886
        %v2300 = vpop.permute.xlu0 %2299
        %2302 = vset.pattern.permute.xlu0 1
        %2303 = vperm.xlu0 %2302, %v887
        %v2304 = vpop.permute.xlu0 %2303
        %2306 = vset.pattern.permute.xlu0 1
        %2307 = vperm.xlu0 %2306, %v888
        %v2308 = vpop.permute.xlu0 %2307
        %v2310 = vlaneseq
        %v2311 = vshrl.u32 %v2310, 7
        %v2312 = vsub.s32 0, %v2311
        %v2313 = vrot.slane %v1797, %v2312
        %v2314 = vmul.f32 %v1800, %v2313
        %v2315 = vmul.f32 %v1804, %v2313
        %v2316 = vmul.f32 %v1808, %v2313
        %v2317 = vmul.f32 %v1812, %v2313
        %v2318 = vmul.f32 %v1816, %v2313
        %v2319 = vmul.f32 %v1820, %v2313
        %v2320 = vmul.f32 %v1824, %v2313
        %v2321 = vmul.f32 %v1828, %v2313
        %v2322 = vmul.f32 %v1832, %v2313
        %v2323 = vmul.f32 %v1836, %v2313
        %v2324 = vmul.f32 %v1840, %v2313
        %v2325 = vmul.f32 %v1844, %v2313
        %v2326 = vmul.f32 %v1848, %v2313
        %v2327 = vmul.f32 %v1852, %v2313
        %v2328 = vmul.f32 %v1856, %v2313
        %v2329 = vmul.f32 %v1860, %v2313
        %v2330 = vmul.f32 %v1864, %v2313
        %v2331 = vmul.f32 %v1868, %v2313
        %v2332 = vmul.f32 %v1872, %v2313
        %v2333 = vmul.f32 %v1876, %v2313
        %v2334 = vmul.f32 %v1880, %v2313
        %v2335 = vmul.f32 %v1884, %v2313
        %v2336 = vmul.f32 %v1888, %v2313
        %v2337 = vmul.f32 %v1892, %v2313
        %v2338 = vmul.f32 %v1896, %v2313
        %v2339 = vmul.f32 %v1900, %v2313
        %v2340 = vmul.f32 %v1904, %v2313
        %v2341 = vmul.f32 %v1908, %v2313
        %v2342 = vmul.f32 %v1912, %v2313
        %v2343 = vmul.f32 %v1916, %v2313
        %v2344 = vmul.f32 %v1920, %v2313
        %v2345 = vmul.f32 %v1924, %v2313
        %v2346 = vmul.f32 %v1928, %v2313
        %v2347 = vmul.f32 %v1932, %v2313
        %v2348 = vmul.f32 %v1936, %v2313
        %v2349 = vmul.f32 %v1940, %v2313
        %v2350 = vmul.f32 %v1944, %v2313
        %v2351 = vmul.f32 %v1948, %v2313
        %v2352 = vmul.f32 %v1952, %v2313
        %v2353 = vmul.f32 %v1956, %v2313
        %v2354 = vmul.f32 %v1960, %v2313
        %v2355 = vmul.f32 %v1964, %v2313
        %v2356 = vmul.f32 %v1968, %v2313
        %v2357 = vmul.f32 %v1972, %v2313
        %v2358 = vmul.f32 %v1976, %v2313
        %v2359 = vmul.f32 %v1980, %v2313
        %v2360 = vmul.f32 %v1984, %v2313
        %v2361 = vmul.f32 %v1988, %v2313
        %v2362 = vmul.f32 %v1992, %v2313
        %v2363 = vmul.f32 %v1996, %v2313
        %v2364 = vmul.f32 %v2000, %v2313
        %v2365 = vmul.f32 %v2004, %v2313
        %v2366 = vmul.f32 %v2008, %v2313
        %v2367 = vmul.f32 %v2012, %v2313
        %v2368 = vmul.f32 %v2016, %v2313
        %v2369 = vmul.f32 %v2020, %v2313
        %v2370 = vmul.f32 %v2024, %v2313
        %v2371 = vmul.f32 %v2028, %v2313
        %v2372 = vmul.f32 %v2032, %v2313
        %v2373 = vmul.f32 %v2036, %v2313
        %v2374 = vmul.f32 %v2040, %v2313
        %v2375 = vmul.f32 %v2044, %v2313
        %v2376 = vmul.f32 %v2048, %v2313
        %v2377 = vmul.f32 %v2052, %v2313
        %v2378 = vmul.f32 %v2056, %v2313
        %v2379 = vmul.f32 %v2060, %v2313
        %v2380 = vmul.f32 %v2064, %v2313
        %v2381 = vmul.f32 %v2068, %v2313
        %v2382 = vmul.f32 %v2072, %v2313
        %v2383 = vmul.f32 %v2076, %v2313
        %v2384 = vmul.f32 %v2080, %v2313
        %v2385 = vmul.f32 %v2084, %v2313
        %v2386 = vmul.f32 %v2088, %v2313
        %v2387 = vmul.f32 %v2092, %v2313
        %v2388 = vmul.f32 %v2096, %v2313
        %v2389 = vmul.f32 %v2100, %v2313
        %v2390 = vmul.f32 %v2104, %v2313
        %v2391 = vmul.f32 %v2108, %v2313
        %v2392 = vmul.f32 %v2112, %v2313
        %v2393 = vmul.f32 %v2116, %v2313
        %v2394 = vmul.f32 %v2120, %v2313
        %v2395 = vmul.f32 %v2124, %v2313
        %v2396 = vmul.f32 %v2128, %v2313
        %v2397 = vmul.f32 %v2132, %v2313
        %v2398 = vmul.f32 %v2136, %v2313
        %v2399 = vmul.f32 %v2140, %v2313
        %v2400 = vmul.f32 %v2144, %v2313
        %v2401 = vmul.f32 %v2148, %v2313
        %v2402 = vmul.f32 %v2152, %v2313
        %v2403 = vmul.f32 %v2156, %v2313
        %v2404 = vmul.f32 %v2160, %v2313
        %v2405 = vmul.f32 %v2164, %v2313
        %v2406 = vmul.f32 %v2168, %v2313
        %v2407 = vmul.f32 %v2172, %v2313
        %v2408 = vmul.f32 %v2176, %v2313
        %v2409 = vmul.f32 %v2180, %v2313
        %v2410 = vmul.f32 %v2184, %v2313
        %v2411 = vmul.f32 %v2188, %v2313
        %v2412 = vmul.f32 %v2192, %v2313
        %v2413 = vmul.f32 %v2196, %v2313
        %v2414 = vmul.f32 %v2200, %v2313
        %v2415 = vmul.f32 %v2204, %v2313
        %v2416 = vmul.f32 %v2208, %v2313
        %v2417 = vmul.f32 %v2212, %v2313
        %v2418 = vmul.f32 %v2216, %v2313
        %v2419 = vmul.f32 %v2220, %v2313
        %v2420 = vmul.f32 %v2224, %v2313
        %v2421 = vmul.f32 %v2228, %v2313
        %v2422 = vmul.f32 %v2232, %v2313
        %v2423 = vmul.f32 %v2236, %v2313
        %v2424 = vmul.f32 %v2240, %v2313
        %v2425 = vmul.f32 %v2244, %v2313
        %v2426 = vmul.f32 %v2248, %v2313
        %v2427 = vmul.f32 %v2252, %v2313
        %v2428 = vmul.f32 %v2256, %v2313
        %v2429 = vmul.f32 %v2260, %v2313
        %v2430 = vmul.f32 %v2264, %v2313
        %v2431 = vmul.f32 %v2268, %v2313
        %v2432 = vmul.f32 %v2272, %v2313
        %v2433 = vmul.f32 %v2276, %v2313
        %v2434 = vmul.f32 %v2280, %v2313
        %v2435 = vmul.f32 %v2284, %v2313
        %v2436 = vmul.f32 %v2288, %v2313
        %v2437 = vmul.f32 %v2292, %v2313
        %v2438 = vmul.f32 %v2296, %v2313
        %v2439 = vmul.f32 %v2300, %v2313
        %v2440 = vmul.f32 %v2304, %v2313
        %v2441 = vmul.f32 %v2308, %v2313
        %v2442 = vadd.f32 %v1669, %v2314
        %v2443 = vadd.f32 %v1670, %v2315
        %v2444 = vadd.f32 %v1671, %v2316
        %v2445 = vadd.f32 %v1672, %v2317
        %v2446 = vadd.f32 %v1673, %v2318
        %v2447 = vadd.f32 %v1674, %v2319
        %v2448 = vadd.f32 %v1675, %v2320
        %v2449 = vadd.f32 %v1676, %v2321
        %v2450 = vadd.f32 %v1677, %v2322
        %v2451 = vadd.f32 %v1678, %v2323
        %v2452 = vadd.f32 %v1679, %v2324
        %v2453 = vadd.f32 %v1680, %v2325
        %v2454 = vadd.f32 %v1681, %v2326
        %v2455 = vadd.f32 %v1682, %v2327
        %v2456 = vadd.f32 %v1683, %v2328
        %v2457 = vadd.f32 %v1684, %v2329
        %v2458 = vadd.f32 %v1685, %v2330
        %v2459 = vadd.f32 %v1686, %v2331
        %v2460 = vadd.f32 %v1687, %v2332
        %v2461 = vadd.f32 %v1688, %v2333
        %v2462 = vadd.f32 %v1689, %v2334
        %v2463 = vadd.f32 %v1690, %v2335
        %v2464 = vadd.f32 %v1691, %v2336
        %v2465 = vadd.f32 %v1692, %v2337
        %v2466 = vadd.f32 %v1693, %v2338
        %v2467 = vadd.f32 %v1694, %v2339
        %v2468 = vadd.f32 %v1695, %v2340
        %v2469 = vadd.f32 %v1696, %v2341
        %v2470 = vadd.f32 %v1697, %v2342
        %v2471 = vadd.f32 %v1698, %v2343
        %v2472 = vadd.f32 %v1699, %v2344
        %v2473 = vadd.f32 %v1700, %v2345
        %v2474 = vadd.f32 %v1701, %v2346
        %v2475 = vadd.f32 %v1702, %v2347
        %v2476 = vadd.f32 %v1703, %v2348
        %v2477 = vadd.f32 %v1704, %v2349
        %v2478 = vadd.f32 %v1705, %v2350
        %v2479 = vadd.f32 %v1706, %v2351
        %v2480 = vadd.f32 %v1707, %v2352
        %v2481 = vadd.f32 %v1708, %v2353
        %v2482 = vadd.f32 %v1709, %v2354
        %v2483 = vadd.f32 %v1710, %v2355
        %v2484 = vadd.f32 %v1711, %v2356
        %v2485 = vadd.f32 %v1712, %v2357
        %v2486 = vadd.f32 %v1713, %v2358
        %v2487 = vadd.f32 %v1714, %v2359
        %v2488 = vadd.f32 %v1715, %v2360
        %v2489 = vadd.f32 %v1716, %v2361
        %v2490 = vadd.f32 %v1717, %v2362
        %v2491 = vadd.f32 %v1718, %v2363
        %v2492 = vadd.f32 %v1719, %v2364
        %v2493 = vadd.f32 %v1720, %v2365
        %v2494 = vadd.f32 %v1721, %v2366
        %v2495 = vadd.f32 %v1722, %v2367
        %v2496 = vadd.f32 %v1723, %v2368
        %v2497 = vadd.f32 %v1724, %v2369
        %v2498 = vadd.f32 %v1725, %v2370
        %v2499 = vadd.f32 %v1726, %v2371
        %v2500 = vadd.f32 %v1727, %v2372
        %v2501 = vadd.f32 %v1728, %v2373
        %v2502 = vadd.f32 %v1729, %v2374
        %v2503 = vadd.f32 %v1730, %v2375
        %v2504 = vadd.f32 %v1731, %v2376
        %v2505 = vadd.f32 %v1732, %v2377
        %v2506 = vadd.f32 %v1733, %v2378
        %v2507 = vadd.f32 %v1734, %v2379
        %v2508 = vadd.f32 %v1735, %v2380
        %v2509 = vadd.f32 %v1736, %v2381
        %v2510 = vadd.f32 %v1737, %v2382
        %v2511 = vadd.f32 %v1738, %v2383
        %v2512 = vadd.f32 %v1739, %v2384
        %v2513 = vadd.f32 %v1740, %v2385
        %v2514 = vadd.f32 %v1741, %v2386
        %v2515 = vadd.f32 %v1742, %v2387
        %v2516 = vadd.f32 %v1743, %v2388
        %v2517 = vadd.f32 %v1744, %v2389
        %v2518 = vadd.f32 %v1745, %v2390
        %v2519 = vadd.f32 %v1746, %v2391
        %v2520 = vadd.f32 %v1747, %v2392
        %v2521 = vadd.f32 %v1748, %v2393
        %v2522 = vadd.f32 %v1749, %v2394
        %v2523 = vadd.f32 %v1750, %v2395
        %v2524 = vadd.f32 %v1751, %v2396
        %v2525 = vadd.f32 %v1752, %v2397
        %v2526 = vadd.f32 %v1753, %v2398
        %v2527 = vadd.f32 %v1754, %v2399
        %v2528 = vadd.f32 %v1755, %v2400
        %v2529 = vadd.f32 %v1756, %v2401
        %v2530 = vadd.f32 %v1757, %v2402
        %v2531 = vadd.f32 %v1758, %v2403
        %v2532 = vadd.f32 %v1759, %v2404
        %v2533 = vadd.f32 %v1760, %v2405
        %v2534 = vadd.f32 %v1761, %v2406
        %v2535 = vadd.f32 %v1762, %v2407
        %v2536 = vadd.f32 %v1763, %v2408
        %v2537 = vadd.f32 %v1764, %v2409
        %v2538 = vadd.f32 %v1765, %v2410
        %v2539 = vadd.f32 %v1766, %v2411
        %v2540 = vadd.f32 %v1767, %v2412
        %v2541 = vadd.f32 %v1768, %v2413
        %v2542 = vadd.f32 %v1769, %v2414
        %v2543 = vadd.f32 %v1770, %v2415
        %v2544 = vadd.f32 %v1771, %v2416
        %v2545 = vadd.f32 %v1772, %v2417
        %v2546 = vadd.f32 %v1773, %v2418
        %v2547 = vadd.f32 %v1774, %v2419
        %v2548 = vadd.f32 %v1775, %v2420
        %v2549 = vadd.f32 %v1776, %v2421
        %v2550 = vadd.f32 %v1777, %v2422
        %v2551 = vadd.f32 %v1778, %v2423
        %v2552 = vadd.f32 %v1779, %v2424
        %v2553 = vadd.f32 %v1780, %v2425
        %v2554 = vadd.f32 %v1781, %v2426
        %v2555 = vadd.f32 %v1782, %v2427
        %v2556 = vadd.f32 %v1783, %v2428
        %v2557 = vadd.f32 %v1784, %v2429
        %v2558 = vadd.f32 %v1785, %v2430
        %v2559 = vadd.f32 %v1786, %v2431
        %v2560 = vadd.f32 %v1787, %v2432
        %v2561 = vadd.f32 %v1788, %v2433
        %v2562 = vadd.f32 %v1789, %v2434
        %v2563 = vadd.f32 %v1790, %v2435
        %v2564 = vadd.f32 %v1791, %v2436
        %v2565 = vadd.f32 %v1792, %v2437
        %v2566 = vadd.f32 %v1793, %v2438
        %v2567 = vadd.f32 %v1794, %v2439
        %v2568 = vadd.f32 %v1795, %v2440
        %v2569 = vadd.f32 %v1796, %v2441
        %v2570 = vld [vmem:[%s1 + $0x2] sm:$0x1]
        %2571 = vset.pattern.permute.xlu0 2
        %2572 = vperm.xlu0 %2571, %v761
        %v2573 = vpop.permute.xlu0 %2572
        %2575 = vset.pattern.permute.xlu0 2
        %2576 = vperm.xlu0 %2575, %v762
        %v2577 = vpop.permute.xlu0 %2576
        %2579 = vset.pattern.permute.xlu0 2
        %2580 = vperm.xlu0 %2579, %v763
        %v2581 = vpop.permute.xlu0 %2580
        %2583 = vset.pattern.permute.xlu0 2
        %2584 = vperm.xlu0 %2583, %v764
        %v2585 = vpop.permute.xlu0 %2584
        %2587 = vset.pattern.permute.xlu0 2
        %2588 = vperm.xlu0 %2587, %v765
        %v2589 = vpop.permute.xlu0 %2588
        %2591 = vset.pattern.permute.xlu0 2
        %2592 = vperm.xlu0 %2591, %v766
        %v2593 = vpop.permute.xlu0 %2592
        %2595 = vset.pattern.permute.xlu0 2
        %2596 = vperm.xlu0 %2595, %v767
        %v2597 = vpop.permute.xlu0 %2596
        %2599 = vset.pattern.permute.xlu0 2
        %2600 = vperm.xlu0 %2599, %v768
        %v2601 = vpop.permute.xlu0 %2600
        %2603 = vset.pattern.permute.xlu0 2
        %2604 = vperm.xlu0 %2603, %v769
        %v2605 = vpop.permute.xlu0 %2604
        %2607 = vset.pattern.permute.xlu0 2
        %2608 = vperm.xlu0 %2607, %v770
        %v2609 = vpop.permute.xlu0 %2608
        %2611 = vset.pattern.permute.xlu0 2
        %2612 = vperm.xlu0 %2611, %v771
        %v2613 = vpop.permute.xlu0 %2612
        %2615 = vset.pattern.permute.xlu0 2
        %2616 = vperm.xlu0 %2615, %v772
        %v2617 = vpop.permute.xlu0 %2616
        %2619 = vset.pattern.permute.xlu0 2
        %2620 = vperm.xlu0 %2619, %v773
        %v2621 = vpop.permute.xlu0 %2620
        %2623 = vset.pattern.permute.xlu0 2
        %2624 = vperm.xlu0 %2623, %v774
        %v2625 = vpop.permute.xlu0 %2624
        %2627 = vset.pattern.permute.xlu0 2
        %2628 = vperm.xlu0 %2627, %v775
        %v2629 = vpop.permute.xlu0 %2628
        %2631 = vset.pattern.permute.xlu0 2
        %2632 = vperm.xlu0 %2631, %v776
        %v2633 = vpop.permute.xlu0 %2632
        %2635 = vset.pattern.permute.xlu0 2
        %2636 = vperm.xlu0 %2635, %v777
        %v2637 = vpop.permute.xlu0 %2636
        %2639 = vset.pattern.permute.xlu0 2
        %2640 = vperm.xlu0 %2639, %v778
        %v2641 = vpop.permute.xlu0 %2640
        %2643 = vset.pattern.permute.xlu0 2
        %2644 = vperm.xlu0 %2643, %v779
        %v2645 = vpop.permute.xlu0 %2644
        %2647 = vset.pattern.permute.xlu0 2
        %2648 = vperm.xlu0 %2647, %v780
        %v2649 = vpop.permute.xlu0 %2648
        %2651 = vset.pattern.permute.xlu0 2
        %2652 = vperm.xlu0 %2651, %v781
        %v2653 = vpop.permute.xlu0 %2652
        %2655 = vset.pattern.permute.xlu0 2
        %2656 = vperm.xlu0 %2655, %v782
        %v2657 = vpop.permute.xlu0 %2656
        %2659 = vset.pattern.permute.xlu0 2
        %2660 = vperm.xlu0 %2659, %v783
        %v2661 = vpop.permute.xlu0 %2660
        %2663 = vset.pattern.permute.xlu0 2
        %2664 = vperm.xlu0 %2663, %v784
        %v2665 = vpop.permute.xlu0 %2664
        %2667 = vset.pattern.permute.xlu0 2
        %2668 = vperm.xlu0 %2667, %v785
        %v2669 = vpop.permute.xlu0 %2668
        %2671 = vset.pattern.permute.xlu0 2
        %2672 = vperm.xlu0 %2671, %v786
        %v2673 = vpop.permute.xlu0 %2672
        %2675 = vset.pattern.permute.xlu0 2
        %2676 = vperm.xlu0 %2675, %v787
        %v2677 = vpop.permute.xlu0 %2676
        %2679 = vset.pattern.permute.xlu0 2
        %2680 = vperm.xlu0 %2679, %v788
        %v2681 = vpop.permute.xlu0 %2680
        %2683 = vset.pattern.permute.xlu0 2
        %2684 = vperm.xlu0 %2683, %v789
        %v2685 = vpop.permute.xlu0 %2684
        %2687 = vset.pattern.permute.xlu0 2
        %2688 = vperm.xlu0 %2687, %v790
        %v2689 = vpop.permute.xlu0 %2688
        %2691 = vset.pattern.permute.xlu0 2
        %2692 = vperm.xlu0 %2691, %v791
        %v2693 = vpop.permute.xlu0 %2692
        %2695 = vset.pattern.permute.xlu0 2
        %2696 = vperm.xlu0 %2695, %v792
        %v2697 = vpop.permute.xlu0 %2696
        %2699 = vset.pattern.permute.xlu0 2
        %2700 = vperm.xlu0 %2699, %v793
        %v2701 = vpop.permute.xlu0 %2700
        %2703 = vset.pattern.permute.xlu0 2
        %2704 = vperm.xlu0 %2703, %v794
        %v2705 = vpop.permute.xlu0 %2704
        %2707 = vset.pattern.permute.xlu0 2
        %2708 = vperm.xlu0 %2707, %v795
        %v2709 = vpop.permute.xlu0 %2708
        %2711 = vset.pattern.permute.xlu0 2
        %2712 = vperm.xlu0 %2711, %v796
        %v2713 = vpop.permute.xlu0 %2712
        %2715 = vset.pattern.permute.xlu0 2
        %2716 = vperm.xlu0 %2715, %v797
        %v2717 = vpop.permute.xlu0 %2716
        %2719 = vset.pattern.permute.xlu0 2
        %2720 = vperm.xlu0 %2719, %v798
        %v2721 = vpop.permute.xlu0 %2720
        %2723 = vset.pattern.permute.xlu0 2
        %2724 = vperm.xlu0 %2723, %v799
        %v2725 = vpop.permute.xlu0 %2724
        %2727 = vset.pattern.permute.xlu0 2
        %2728 = vperm.xlu0 %2727, %v800
        %v2729 = vpop.permute.xlu0 %2728
        %2731 = vset.pattern.permute.xlu0 2
        %2732 = vperm.xlu0 %2731, %v801
        %v2733 = vpop.permute.xlu0 %2732
        %2735 = vset.pattern.permute.xlu0 2
        %2736 = vperm.xlu0 %2735, %v802
        %v2737 = vpop.permute.xlu0 %2736
        %2739 = vset.pattern.permute.xlu0 2
        %2740 = vperm.xlu0 %2739, %v803
        %v2741 = vpop.permute.xlu0 %2740
        %2743 = vset.pattern.permute.xlu0 2
        %2744 = vperm.xlu0 %2743, %v804
        %v2745 = vpop.permute.xlu0 %2744
        %2747 = vset.pattern.permute.xlu0 2
        %2748 = vperm.xlu0 %2747, %v805
        %v2749 = vpop.permute.xlu0 %2748
        %2751 = vset.pattern.permute.xlu0 2
        %2752 = vperm.xlu0 %2751, %v806
        %v2753 = vpop.permute.xlu0 %2752
        %2755 = vset.pattern.permute.xlu0 2
        %2756 = vperm.xlu0 %2755, %v807
        %v2757 = vpop.permute.xlu0 %2756
        %2759 = vset.pattern.permute.xlu0 2
        %2760 = vperm.xlu0 %2759, %v808
        %v2761 = vpop.permute.xlu0 %2760
        %2763 = vset.pattern.permute.xlu0 2
        %2764 = vperm.xlu0 %2763, %v809
        %v2765 = vpop.permute.xlu0 %2764
        %2767 = vset.pattern.permute.xlu0 2
        %2768 = vperm.xlu0 %2767, %v810
        %v2769 = vpop.permute.xlu0 %2768
        %2771 = vset.pattern.permute.xlu0 2
        %2772 = vperm.xlu0 %2771, %v811
        %v2773 = vpop.permute.xlu0 %2772
        %2775 = vset.pattern.permute.xlu0 2
        %2776 = vperm.xlu0 %2775, %v812
        %v2777 = vpop.permute.xlu0 %2776
        %2779 = vset.pattern.permute.xlu0 2
        %2780 = vperm.xlu0 %2779, %v813
        %v2781 = vpop.permute.xlu0 %2780
        %2783 = vset.pattern.permute.xlu0 2
        %2784 = vperm.xlu0 %2783, %v814
        %v2785 = vpop.permute.xlu0 %2784
        %2787 = vset.pattern.permute.xlu0 2
        %2788 = vperm.xlu0 %2787, %v815
        %v2789 = vpop.permute.xlu0 %2788
        %2791 = vset.pattern.permute.xlu0 2
        %2792 = vperm.xlu0 %2791, %v816
        %v2793 = vpop.permute.xlu0 %2792
        %2795 = vset.pattern.permute.xlu0 2
        %2796 = vperm.xlu0 %2795, %v817
        %v2797 = vpop.permute.xlu0 %2796
        %2799 = vset.pattern.permute.xlu0 2
        %2800 = vperm.xlu0 %2799, %v818
        %v2801 = vpop.permute.xlu0 %2800
        %2803 = vset.pattern.permute.xlu0 2
        %2804 = vperm.xlu0 %2803, %v819
        %v2805 = vpop.permute.xlu0 %2804
        %2807 = vset.pattern.permute.xlu0 2
        %2808 = vperm.xlu0 %2807, %v820
        %v2809 = vpop.permute.xlu0 %2808
        %2811 = vset.pattern.permute.xlu0 2
        %2812 = vperm.xlu0 %2811, %v821
        %v2813 = vpop.permute.xlu0 %2812
        %2815 = vset.pattern.permute.xlu0 2
        %2816 = vperm.xlu0 %2815, %v822
        %v2817 = vpop.permute.xlu0 %2816
        %2819 = vset.pattern.permute.xlu0 2
        %2820 = vperm.xlu0 %2819, %v823
        %v2821 = vpop.permute.xlu0 %2820
        %2823 = vset.pattern.permute.xlu0 2
        %2824 = vperm.xlu0 %2823, %v824
        %v2825 = vpop.permute.xlu0 %2824
        %2827 = vset.pattern.permute.xlu0 2
        %2828 = vperm.xlu0 %2827, %v825
        %v2829 = vpop.permute.xlu0 %2828
        %2831 = vset.pattern.permute.xlu0 2
        %2832 = vperm.xlu0 %2831, %v826
        %v2833 = vpop.permute.xlu0 %2832
        %2835 = vset.pattern.permute.xlu0 2
        %2836 = vperm.xlu0 %2835, %v827
        %v2837 = vpop.permute.xlu0 %2836
        %2839 = vset.pattern.permute.xlu0 2
        %2840 = vperm.xlu0 %2839, %v828
        %v2841 = vpop.permute.xlu0 %2840
        %2843 = vset.pattern.permute.xlu0 2
        %2844 = vperm.xlu0 %2843, %v829
        %v2845 = vpop.permute.xlu0 %2844
        %2847 = vset.pattern.permute.xlu0 2
        %2848 = vperm.xlu0 %2847, %v830
        %v2849 = vpop.permute.xlu0 %2848
        %2851 = vset.pattern.permute.xlu0 2
        %2852 = vperm.xlu0 %2851, %v831
        %v2853 = vpop.permute.xlu0 %2852
        %2855 = vset.pattern.permute.xlu0 2
        %2856 = vperm.xlu0 %2855, %v832
        %v2857 = vpop.permute.xlu0 %2856
        %2859 = vset.pattern.permute.xlu0 2
        %2860 = vperm.xlu0 %2859, %v833
        %v2861 = vpop.permute.xlu0 %2860
        %2863 = vset.pattern.permute.xlu0 2
        %2864 = vperm.xlu0 %2863, %v834
        %v2865 = vpop.permute.xlu0 %2864
        %2867 = vset.pattern.permute.xlu0 2
        %2868 = vperm.xlu0 %2867, %v835
        %v2869 = vpop.permute.xlu0 %2868
        %2871 = vset.pattern.permute.xlu0 2
        %2872 = vperm.xlu0 %2871, %v836
        %v2873 = vpop.permute.xlu0 %2872
        %2875 = vset.pattern.permute.xlu0 2
        %2876 = vperm.xlu0 %2875, %v837
        %v2877 = vpop.permute.xlu0 %2876
        %2879 = vset.pattern.permute.xlu0 2
        %2880 = vperm.xlu0 %2879, %v838
        %v2881 = vpop.permute.xlu0 %2880
        %2883 = vset.pattern.permute.xlu0 2
        %2884 = vperm.xlu0 %2883, %v839
        %v2885 = vpop.permute.xlu0 %2884
        %2887 = vset.pattern.permute.xlu0 2
        %2888 = vperm.xlu0 %2887, %v840
        %v2889 = vpop.permute.xlu0 %2888
        %2891 = vset.pattern.permute.xlu0 2
        %2892 = vperm.xlu0 %2891, %v841
        %v2893 = vpop.permute.xlu0 %2892
        %2895 = vset.pattern.permute.xlu0 2
        %2896 = vperm.xlu0 %2895, %v842
        %v2897 = vpop.permute.xlu0 %2896
        %2899 = vset.pattern.permute.xlu0 2
        %2900 = vperm.xlu0 %2899, %v843
        %v2901 = vpop.permute.xlu0 %2900
        %2903 = vset.pattern.permute.xlu0 2
        %2904 = vperm.xlu0 %2903, %v844
        %v2905 = vpop.permute.xlu0 %2904
        %2907 = vset.pattern.permute.xlu0 2
        %2908 = vperm.xlu0 %2907, %v845
        %v2909 = vpop.permute.xlu0 %2908
        %2911 = vset.pattern.permute.xlu0 2
        %2912 = vperm.xlu0 %2911, %v846
        %v2913 = vpop.permute.xlu0 %2912
        %2915 = vset.pattern.permute.xlu0 2
        %2916 = vperm.xlu0 %2915, %v847
        %v2917 = vpop.permute.xlu0 %2916
        %2919 = vset.pattern.permute.xlu0 2
        %2920 = vperm.xlu0 %2919, %v848
        %v2921 = vpop.permute.xlu0 %2920
        %2923 = vset.pattern.permute.xlu0 2
        %2924 = vperm.xlu0 %2923, %v849
        %v2925 = vpop.permute.xlu0 %2924
        %2927 = vset.pattern.permute.xlu0 2
        %2928 = vperm.xlu0 %2927, %v850
        %v2929 = vpop.permute.xlu0 %2928
        %2931 = vset.pattern.permute.xlu0 2
        %2932 = vperm.xlu0 %2931, %v851
        %v2933 = vpop.permute.xlu0 %2932
        %2935 = vset.pattern.permute.xlu0 2
        %2936 = vperm.xlu0 %2935, %v852
        %v2937 = vpop.permute.xlu0 %2936
        %2939 = vset.pattern.permute.xlu0 2
        %2940 = vperm.xlu0 %2939, %v853
        %v2941 = vpop.permute.xlu0 %2940
        %2943 = vset.pattern.permute.xlu0 2
        %2944 = vperm.xlu0 %2943, %v854
        %v2945 = vpop.permute.xlu0 %2944
        %2947 = vset.pattern.permute.xlu0 2
        %2948 = vperm.xlu0 %2947, %v855
        %v2949 = vpop.permute.xlu0 %2948
        %2951 = vset.pattern.permute.xlu0 2
        %2952 = vperm.xlu0 %2951, %v856
        %v2953 = vpop.permute.xlu0 %2952
        %2955 = vset.pattern.permute.xlu0 2
        %2956 = vperm.xlu0 %2955, %v857
        %v2957 = vpop.permute.xlu0 %2956
        %2959 = vset.pattern.permute.xlu0 2
        %2960 = vperm.xlu0 %2959, %v858
        %v2961 = vpop.permute.xlu0 %2960
        %2963 = vset.pattern.permute.xlu0 2
        %2964 = vperm.xlu0 %2963, %v859
        %v2965 = vpop.permute.xlu0 %2964
        %2967 = vset.pattern.permute.xlu0 2
        %2968 = vperm.xlu0 %2967, %v860
        %v2969 = vpop.permute.xlu0 %2968
        %2971 = vset.pattern.permute.xlu0 2
        %2972 = vperm.xlu0 %2971, %v861
        %v2973 = vpop.permute.xlu0 %2972
        %2975 = vset.pattern.permute.xlu0 2
        %2976 = vperm.xlu0 %2975, %v862
        %v2977 = vpop.permute.xlu0 %2976
        %2979 = vset.pattern.permute.xlu0 2
        %2980 = vperm.xlu0 %2979, %v863
        %v2981 = vpop.permute.xlu0 %2980
        %2983 = vset.pattern.permute.xlu0 2
        %2984 = vperm.xlu0 %2983, %v864
        %v2985 = vpop.permute.xlu0 %2984
        %2987 = vset.pattern.permute.xlu0 2
        %2988 = vperm.xlu0 %2987, %v865
        %v2989 = vpop.permute.xlu0 %2988
        %2991 = vset.pattern.permute.xlu0 2
        %2992 = vperm.xlu0 %2991, %v866
        %v2993 = vpop.permute.xlu0 %2992
        %2995 = vset.pattern.permute.xlu0 2
        %2996 = vperm.xlu0 %2995, %v867
        %v2997 = vpop.permute.xlu0 %2996
        %2999 = vset.pattern.permute.xlu0 2
        %3000 = vperm.xlu0 %2999, %v868
        %v3001 = vpop.permute.xlu0 %3000
        %3003 = vset.pattern.permute.xlu0 2
        %3004 = vperm.xlu0 %3003, %v869
        %v3005 = vpop.permute.xlu0 %3004
        %3007 = vset.pattern.permute.xlu0 2
        %3008 = vperm.xlu0 %3007, %v870
        %v3009 = vpop.permute.xlu0 %3008
        %3011 = vset.pattern.permute.xlu0 2
        %3012 = vperm.xlu0 %3011, %v871
        %v3013 = vpop.permute.xlu0 %3012
        %3015 = vset.pattern.permute.xlu0 2
        %3016 = vperm.xlu0 %3015, %v872
        %v3017 = vpop.permute.xlu0 %3016
        %3019 = vset.pattern.permute.xlu0 2
        %3020 = vperm.xlu0 %3019, %v873
        %v3021 = vpop.permute.xlu0 %3020
        %3023 = vset.pattern.permute.xlu0 2
        %3024 = vperm.xlu0 %3023, %v874
        %v3025 = vpop.permute.xlu0 %3024
        %3027 = vset.pattern.permute.xlu0 2
        %3028 = vperm.xlu0 %3027, %v875
        %v3029 = vpop.permute.xlu0 %3028
        %3031 = vset.pattern.permute.xlu0 2
        %3032 = vperm.xlu0 %3031, %v876
        %v3033 = vpop.permute.xlu0 %3032
        %3035 = vset.pattern.permute.xlu0 2
        %3036 = vperm.xlu0 %3035, %v877
        %v3037 = vpop.permute.xlu0 %3036
        %3039 = vset.pattern.permute.xlu0 2
        %3040 = vperm.xlu0 %3039, %v878
        %v3041 = vpop.permute.xlu0 %3040
        %3043 = vset.pattern.permute.xlu0 2
        %3044 = vperm.xlu0 %3043, %v879
        %v3045 = vpop.permute.xlu0 %3044
        %3047 = vset.pattern.permute.xlu0 2
        %3048 = vperm.xlu0 %3047, %v880
        %v3049 = vpop.permute.xlu0 %3048
        %3051 = vset.pattern.permute.xlu0 2
        %3052 = vperm.xlu0 %3051, %v881
        %v3053 = vpop.permute.xlu0 %3052
        %3055 = vset.pattern.permute.xlu0 2
        %3056 = vperm.xlu0 %3055, %v882
        %v3057 = vpop.permute.xlu0 %3056
        %3059 = vset.pattern.permute.xlu0 2
        %3060 = vperm.xlu0 %3059, %v883
        %v3061 = vpop.permute.xlu0 %3060
        %3063 = vset.pattern.permute.xlu0 2
        %3064 = vperm.xlu0 %3063, %v884
        %v3065 = vpop.permute.xlu0 %3064
        %3067 = vset.pattern.permute.xlu0 2
        %3068 = vperm.xlu0 %3067, %v885
        %v3069 = vpop.permute.xlu0 %3068
        %3071 = vset.pattern.permute.xlu0 2
        %3072 = vperm.xlu0 %3071, %v886
        %v3073 = vpop.permute.xlu0 %3072
        %3075 = vset.pattern.permute.xlu0 2
        %3076 = vperm.xlu0 %3075, %v887
        %v3077 = vpop.permute.xlu0 %3076
        %3079 = vset.pattern.permute.xlu0 2
        %3080 = vperm.xlu0 %3079, %v888
        %v3081 = vpop.permute.xlu0 %3080
        %v3083 = vlaneseq
        %v3084 = vshrl.u32 %v3083, 7
        %v3085 = vsub.s32 0, %v3084
        %v3086 = vrot.slane %v2570, %v3085
        %v3087 = vmul.f32 %v2573, %v3086
        %v3088 = vmul.f32 %v2577, %v3086
        %v3089 = vmul.f32 %v2581, %v3086
        %v3090 = vmul.f32 %v2585, %v3086
        %v3091 = vmul.f32 %v2589, %v3086
        %v3092 = vmul.f32 %v2593, %v3086
        %v3093 = vmul.f32 %v2597, %v3086
        %v3094 = vmul.f32 %v2601, %v3086
        %v3095 = vmul.f32 %v2605, %v3086
        %v3096 = vmul.f32 %v2609, %v3086
        %v3097 = vmul.f32 %v2613, %v3086
        %v3098 = vmul.f32 %v2617, %v3086
        %v3099 = vmul.f32 %v2621, %v3086
        %v3100 = vmul.f32 %v2625, %v3086
        %v3101 = vmul.f32 %v2629, %v3086
        %v3102 = vmul.f32 %v2633, %v3086
        %v3103 = vmul.f32 %v2637, %v3086
        %v3104 = vmul.f32 %v2641, %v3086
        %v3105 = vmul.f32 %v2645, %v3086
        %v3106 = vmul.f32 %v2649, %v3086
        %v3107 = vmul.f32 %v2653, %v3086
        %v3108 = vmul.f32 %v2657, %v3086
        %v3109 = vmul.f32 %v2661, %v3086
        %v3110 = vmul.f32 %v2665, %v3086
        %v3111 = vmul.f32 %v2669, %v3086
        %v3112 = vmul.f32 %v2673, %v3086
        %v3113 = vmul.f32 %v2677, %v3086
        %v3114 = vmul.f32 %v2681, %v3086
        %v3115 = vmul.f32 %v2685, %v3086
        %v3116 = vmul.f32 %v2689, %v3086
        %v3117 = vmul.f32 %v2693, %v3086
        %v3118 = vmul.f32 %v2697, %v3086
        %v3119 = vmul.f32 %v2701, %v3086
        %v3120 = vmul.f32 %v2705, %v3086
        %v3121 = vmul.f32 %v2709, %v3086
        %v3122 = vmul.f32 %v2713, %v3086
        %v3123 = vmul.f32 %v2717, %v3086
        %v3124 = vmul.f32 %v2721, %v3086
        %v3125 = vmul.f32 %v2725, %v3086
        %v3126 = vmul.f32 %v2729, %v3086
        %v3127 = vmul.f32 %v2733, %v3086
        %v3128 = vmul.f32 %v2737, %v3086
        %v3129 = vmul.f32 %v2741, %v3086
        %v3130 = vmul.f32 %v2745, %v3086
        %v3131 = vmul.f32 %v2749, %v3086
        %v3132 = vmul.f32 %v2753, %v3086
        %v3133 = vmul.f32 %v2757, %v3086
        %v3134 = vmul.f32 %v2761, %v3086
        %v3135 = vmul.f32 %v2765, %v3086
        %v3136 = vmul.f32 %v2769, %v3086
        %v3137 = vmul.f32 %v2773, %v3086
        %v3138 = vmul.f32 %v2777, %v3086
        %v3139 = vmul.f32 %v2781, %v3086
        %v3140 = vmul.f32 %v2785, %v3086
        %v3141 = vmul.f32 %v2789, %v3086
        %v3142 = vmul.f32 %v2793, %v3086
        %v3143 = vmul.f32 %v2797, %v3086
        %v3144 = vmul.f32 %v2801, %v3086
        %v3145 = vmul.f32 %v2805, %v3086
        %v3146 = vmul.f32 %v2809, %v3086
        %v3147 = vmul.f32 %v2813, %v3086
        %v3148 = vmul.f32 %v2817, %v3086
        %v3149 = vmul.f32 %v2821, %v3086
        %v3150 = vmul.f32 %v2825, %v3086
        %v3151 = vmul.f32 %v2829, %v3086
        %v3152 = vmul.f32 %v2833, %v3086
        %v3153 = vmul.f32 %v2837, %v3086
        %v3154 = vmul.f32 %v2841, %v3086
        %v3155 = vmul.f32 %v2845, %v3086
        %v3156 = vmul.f32 %v2849, %v3086
        %v3157 = vmul.f32 %v2853, %v3086
        %v3158 = vmul.f32 %v2857, %v3086
        %v3159 = vmul.f32 %v2861, %v3086
        %v3160 = vmul.f32 %v2865, %v3086
        %v3161 = vmul.f32 %v2869, %v3086
        %v3162 = vmul.f32 %v2873, %v3086
        %v3163 = vmul.f32 %v2877, %v3086
        %v3164 = vmul.f32 %v2881, %v3086
        %v3165 = vmul.f32 %v2885, %v3086
        %v3166 = vmul.f32 %v2889, %v3086
        %v3167 = vmul.f32 %v2893, %v3086
        %v3168 = vmul.f32 %v2897, %v3086
        %v3169 = vmul.f32 %v2901, %v3086
        %v3170 = vmul.f32 %v2905, %v3086
        %v3171 = vmul.f32 %v2909, %v3086
        %v3172 = vmul.f32 %v2913, %v3086
        %v3173 = vmul.f32 %v2917, %v3086
        %v3174 = vmul.f32 %v2921, %v3086
        %v3175 = vmul.f32 %v2925, %v3086
        %v3176 = vmul.f32 %v2929, %v3086
        %v3177 = vmul.f32 %v2933, %v3086
        %v3178 = vmul.f32 %v2937, %v3086
        %v3179 = vmul.f32 %v2941, %v3086
        %v3180 = vmul.f32 %v2945, %v3086
        %v3181 = vmul.f32 %v2949, %v3086
        %v3182 = vmul.f32 %v2953, %v3086
        %v3183 = vmul.f32 %v2957, %v3086
        %v3184 = vmul.f32 %v2961, %v3086
        %v3185 = vmul.f32 %v2965, %v3086
        %v3186 = vmul.f32 %v2969, %v3086
        %v3187 = vmul.f32 %v2973, %v3086
        %v3188 = vmul.f32 %v2977, %v3086
        %v3189 = vmul.f32 %v2981, %v3086
        %v3190 = vmul.f32 %v2985, %v3086
        %v3191 = vmul.f32 %v2989, %v3086
        %v3192 = vmul.f32 %v2993, %v3086
        %v3193 = vmul.f32 %v2997, %v3086
        %v3194 = vmul.f32 %v3001, %v3086
        %v3195 = vmul.f32 %v3005, %v3086
        %v3196 = vmul.f32 %v3009, %v3086
        %v3197 = vmul.f32 %v3013, %v3086
        %v3198 = vmul.f32 %v3017, %v3086
        %v3199 = vmul.f32 %v3021, %v3086
        %v3200 = vmul.f32 %v3025, %v3086
        %v3201 = vmul.f32 %v3029, %v3086
        %v3202 = vmul.f32 %v3033, %v3086
        %v3203 = vmul.f32 %v3037, %v3086
        %v3204 = vmul.f32 %v3041, %v3086
        %v3205 = vmul.f32 %v3045, %v3086
        %v3206 = vmul.f32 %v3049, %v3086
        %v3207 = vmul.f32 %v3053, %v3086
        %v3208 = vmul.f32 %v3057, %v3086
        %v3209 = vmul.f32 %v3061, %v3086
        %v3210 = vmul.f32 %v3065, %v3086
        %v3211 = vmul.f32 %v3069, %v3086
        %v3212 = vmul.f32 %v3073, %v3086
        %v3213 = vmul.f32 %v3077, %v3086
        %v3214 = vmul.f32 %v3081, %v3086
        %v3215 = vadd.f32 %v2442, %v3087
        %v3216 = vadd.f32 %v2443, %v3088
        %v3217 = vadd.f32 %v2444, %v3089
        %v3218 = vadd.f32 %v2445, %v3090
        %v3219 = vadd.f32 %v2446, %v3091
        %v3220 = vadd.f32 %v2447, %v3092
        %v3221 = vadd.f32 %v2448, %v3093
        %v3222 = vadd.f32 %v2449, %v3094
        %v3223 = vadd.f32 %v2450, %v3095
        %v3224 = vadd.f32 %v2451, %v3096
        %v3225 = vadd.f32 %v2452, %v3097
        %v3226 = vadd.f32 %v2453, %v3098
        %v3227 = vadd.f32 %v2454, %v3099
        %v3228 = vadd.f32 %v2455, %v3100
        %v3229 = vadd.f32 %v2456, %v3101
        %v3230 = vadd.f32 %v2457, %v3102
        %v3231 = vadd.f32 %v2458, %v3103
        %v3232 = vadd.f32 %v2459, %v3104
        %v3233 = vadd.f32 %v2460, %v3105
        %v3234 = vadd.f32 %v2461, %v3106
        %v3235 = vadd.f32 %v2462, %v3107
        %v3236 = vadd.f32 %v2463, %v3108
        %v3237 = vadd.f32 %v2464, %v3109
        %v3238 = vadd.f32 %v2465, %v3110
        %v3239 = vadd.f32 %v2466, %v3111
        %v3240 = vadd.f32 %v2467, %v3112
        %v3241 = vadd.f32 %v2468, %v3113
        %v3242 = vadd.f32 %v2469, %v3114
        %v3243 = vadd.f32 %v2470, %v3115
        %v3244 = vadd.f32 %v2471, %v3116
        %v3245 = vadd.f32 %v2472, %v3117
        %v3246 = vadd.f32 %v2473, %v3118
        %v3247 = vadd.f32 %v2474, %v3119
        %v3248 = vadd.f32 %v2475, %v3120
        %v3249 = vadd.f32 %v2476, %v3121
        %v3250 = vadd.f32 %v2477, %v3122
        %v3251 = vadd.f32 %v2478, %v3123
        %v3252 = vadd.f32 %v2479, %v3124
        %v3253 = vadd.f32 %v2480, %v3125
        %v3254 = vadd.f32 %v2481, %v3126
        %v3255 = vadd.f32 %v2482, %v3127
        %v3256 = vadd.f32 %v2483, %v3128
        %v3257 = vadd.f32 %v2484, %v3129
        %v3258 = vadd.f32 %v2485, %v3130
        %v3259 = vadd.f32 %v2486, %v3131
        %v3260 = vadd.f32 %v2487, %v3132
        %v3261 = vadd.f32 %v2488, %v3133
        %v3262 = vadd.f32 %v2489, %v3134
        %v3263 = vadd.f32 %v2490, %v3135
        %v3264 = vadd.f32 %v2491, %v3136
        %v3265 = vadd.f32 %v2492, %v3137
        %v3266 = vadd.f32 %v2493, %v3138
        %v3267 = vadd.f32 %v2494, %v3139
        %v3268 = vadd.f32 %v2495, %v3140
        %v3269 = vadd.f32 %v2496, %v3141
        %v3270 = vadd.f32 %v2497, %v3142
        %v3271 = vadd.f32 %v2498, %v3143
        %v3272 = vadd.f32 %v2499, %v3144
        %v3273 = vadd.f32 %v2500, %v3145
        %v3274 = vadd.f32 %v2501, %v3146
        %v3275 = vadd.f32 %v2502, %v3147
        %v3276 = vadd.f32 %v2503, %v3148
        %v3277 = vadd.f32 %v2504, %v3149
        %v3278 = vadd.f32 %v2505, %v3150
        %v3279 = vadd.f32 %v2506, %v3151
        %v3280 = vadd.f32 %v2507, %v3152
        %v3281 = vadd.f32 %v2508, %v3153
        %v3282 = vadd.f32 %v2509, %v3154
        %v3283 = vadd.f32 %v2510, %v3155
        %v3284 = vadd.f32 %v2511, %v3156
        %v3285 = vadd.f32 %v2512, %v3157
        %v3286 = vadd.f32 %v2513, %v3158
        %v3287 = vadd.f32 %v2514, %v3159
        %v3288 = vadd.f32 %v2515, %v3160
        %v3289 = vadd.f32 %v2516, %v3161
        %v3290 = vadd.f32 %v2517, %v3162
        %v3291 = vadd.f32 %v2518, %v3163
        %v3292 = vadd.f32 %v2519, %v3164
        %v3293 = vadd.f32 %v2520, %v3165
        %v3294 = vadd.f32 %v2521, %v3166
        %v3295 = vadd.f32 %v2522, %v3167
        %v3296 = vadd.f32 %v2523, %v3168
        %v3297 = vadd.f32 %v2524, %v3169
        %v3298 = vadd.f32 %v2525, %v3170
        %v3299 = vadd.f32 %v2526, %v3171
        %v3300 = vadd.f32 %v2527, %v3172
        %v3301 = vadd.f32 %v2528, %v3173
        %v3302 = vadd.f32 %v2529, %v3174
        %v3303 = vadd.f32 %v2530, %v3175
        %v3304 = vadd.f32 %v2531, %v3176
        %v3305 = vadd.f32 %v2532, %v3177
        %v3306 = vadd.f32 %v2533, %v3178
        %v3307 = vadd.f32 %v2534, %v3179
        %v3308 = vadd.f32 %v2535, %v3180
        %v3309 = vadd.f32 %v2536, %v3181
        %v3310 = vadd.f32 %v2537, %v3182
        %v3311 = vadd.f32 %v2538, %v3183
        %v3312 = vadd.f32 %v2539, %v3184
        %v3313 = vadd.f32 %v2540, %v3185
        %v3314 = vadd.f32 %v2541, %v3186
        %v3315 = vadd.f32 %v2542, %v3187
        %v3316 = vadd.f32 %v2543, %v3188
        %v3317 = vadd.f32 %v2544, %v3189
        %v3318 = vadd.f32 %v2545, %v3190
        %v3319 = vadd.f32 %v2546, %v3191
        %v3320 = vadd.f32 %v2547, %v3192
        %v3321 = vadd.f32 %v2548, %v3193
        %v3322 = vadd.f32 %v2549, %v3194
        %v3323 = vadd.f32 %v2550, %v3195
        %v3324 = vadd.f32 %v2551, %v3196
        %v3325 = vadd.f32 %v2552, %v3197
        %v3326 = vadd.f32 %v2553, %v3198
        %v3327 = vadd.f32 %v2554, %v3199
        %v3328 = vadd.f32 %v2555, %v3200
        %v3329 = vadd.f32 %v2556, %v3201
        %v3330 = vadd.f32 %v2557, %v3202
        %v3331 = vadd.f32 %v2558, %v3203
        %v3332 = vadd.f32 %v2559, %v3204
        %v3333 = vadd.f32 %v2560, %v3205
        %v3334 = vadd.f32 %v2561, %v3206
        %v3335 = vadd.f32 %v2562, %v3207
        %v3336 = vadd.f32 %v2563, %v3208
        %v3337 = vadd.f32 %v2564, %v3209
        %v3338 = vadd.f32 %v2565, %v3210
        %v3339 = vadd.f32 %v2566, %v3211
        %v3340 = vadd.f32 %v2567, %v3212
        %v3341 = vadd.f32 %v2568, %v3213
        %v3342 = vadd.f32 %v2569, %v3214
        %v3343 = vmax.f32 %v3215, 0.0
        %v3344 = vmax.f32 %v3216, 0.0
        %v3345 = vmax.f32 %v3217, 0.0
        %v3346 = vmax.f32 %v3218, 0.0
        %v3347 = vmax.f32 %v3219, 0.0
        %v3348 = vmax.f32 %v3220, 0.0
        %v3349 = vmax.f32 %v3221, 0.0
        %v3350 = vmax.f32 %v3222, 0.0
        %v3351 = vmax.f32 %v3223, 0.0
        %v3352 = vmax.f32 %v3224, 0.0
        %v3353 = vmax.f32 %v3225, 0.0
        %v3354 = vmax.f32 %v3226, 0.0
        %v3355 = vmax.f32 %v3227, 0.0
        %v3356 = vmax.f32 %v3228, 0.0
        %v3357 = vmax.f32 %v3229, 0.0
        %v3358 = vmax.f32 %v3230, 0.0
        %v3359 = vmax.f32 %v3231, 0.0
        %v3360 = vmax.f32 %v3232, 0.0
        %v3361 = vmax.f32 %v3233, 0.0
        %v3362 = vmax.f32 %v3234, 0.0
        %v3363 = vmax.f32 %v3235, 0.0
        %v3364 = vmax.f32 %v3236, 0.0
        %v3365 = vmax.f32 %v3237, 0.0
        %v3366 = vmax.f32 %v3238, 0.0
        %v3367 = vmax.f32 %v3239, 0.0
        %v3368 = vmax.f32 %v3240, 0.0
        %v3369 = vmax.f32 %v3241, 0.0
        %v3370 = vmax.f32 %v3242, 0.0
        %v3371 = vmax.f32 %v3243, 0.0
        %v3372 = vmax.f32 %v3244, 0.0
        %v3373 = vmax.f32 %v3245, 0.0
        %v3374 = vmax.f32 %v3246, 0.0
        %v3375 = vmax.f32 %v3247, 0.0
        %v3376 = vmax.f32 %v3248, 0.0
        %v3377 = vmax.f32 %v3249, 0.0
        %v3378 = vmax.f32 %v3250, 0.0
        %v3379 = vmax.f32 %v3251, 0.0
        %v3380 = vmax.f32 %v3252, 0.0
        %v3381 = vmax.f32 %v3253, 0.0
        %v3382 = vmax.f32 %v3254, 0.0
        %v3383 = vmax.f32 %v3255, 0.0
        %v3384 = vmax.f32 %v3256, 0.0
        %v3385 = vmax.f32 %v3257, 0.0
        %v3386 = vmax.f32 %v3258, 0.0
        %v3387 = vmax.f32 %v3259, 0.0
        %v3388 = vmax.f32 %v3260, 0.0
        %v3389 = vmax.f32 %v3261, 0.0
        %v3390 = vmax.f32 %v3262, 0.0
        %v3391 = vmax.f32 %v3263, 0.0
        %v3392 = vmax.f32 %v3264, 0.0
        %v3393 = vmax.f32 %v3265, 0.0
        %v3394 = vmax.f32 %v3266, 0.0
        %v3395 = vmax.f32 %v3267, 0.0
        %v3396 = vmax.f32 %v3268, 0.0
        %v3397 = vmax.f32 %v3269, 0.0
        %v3398 = vmax.f32 %v3270, 0.0
        %v3399 = vmax.f32 %v3271, 0.0
        %v3400 = vmax.f32 %v3272, 0.0
        %v3401 = vmax.f32 %v3273, 0.0
        %v3402 = vmax.f32 %v3274, 0.0
        %v3403 = vmax.f32 %v3275, 0.0
        %v3404 = vmax.f32 %v3276, 0.0
        %v3405 = vmax.f32 %v3277, 0.0
        %v3406 = vmax.f32 %v3278, 0.0
        %v3407 = vmax.f32 %v3279, 0.0
        %v3408 = vmax.f32 %v3280, 0.0
        %v3409 = vmax.f32 %v3281, 0.0
        %v3410 = vmax.f32 %v3282, 0.0
        %v3411 = vmax.f32 %v3283, 0.0
        %v3412 = vmax.f32 %v3284, 0.0
        %v3413 = vmax.f32 %v3285, 0.0
        %v3414 = vmax.f32 %v3286, 0.0
        %v3415 = vmax.f32 %v3287, 0.0
        %v3416 = vmax.f32 %v3288, 0.0
        %v3417 = vmax.f32 %v3289, 0.0
        %v3418 = vmax.f32 %v3290, 0.0
        %v3419 = vmax.f32 %v3291, 0.0
        %v3420 = vmax.f32 %v3292, 0.0
        %v3421 = vmax.f32 %v3293, 0.0
        %v3422 = vmax.f32 %v3294, 0.0
        %v3423 = vmax.f32 %v3295, 0.0
        %v3424 = vmax.f32 %v3296, 0.0
        %v3425 = vmax.f32 %v3297, 0.0
        %v3426 = vmax.f32 %v3298, 0.0
        %v3427 = vmax.f32 %v3299, 0.0
        %v3428 = vmax.f32 %v3300, 0.0
        %v3429 = vmax.f32 %v3301, 0.0
        %v3430 = vmax.f32 %v3302, 0.0
        %v3431 = vmax.f32 %v3303, 0.0
        %v3432 = vmax.f32 %v3304, 0.0
        %v3433 = vmax.f32 %v3305, 0.0
        %v3434 = vmax.f32 %v3306, 0.0
        %v3435 = vmax.f32 %v3307, 0.0
        %v3436 = vmax.f32 %v3308, 0.0
        %v3437 = vmax.f32 %v3309, 0.0
        %v3438 = vmax.f32 %v3310, 0.0
        %v3439 = vmax.f32 %v3311, 0.0
        %v3440 = vmax.f32 %v3312, 0.0
        %v3441 = vmax.f32 %v3313, 0.0
        %v3442 = vmax.f32 %v3314, 0.0
        %v3443 = vmax.f32 %v3315, 0.0
        %v3444 = vmax.f32 %v3316, 0.0
        %v3445 = vmax.f32 %v3317, 0.0
        %v3446 = vmax.f32 %v3318, 0.0
        %v3447 = vmax.f32 %v3319, 0.0
        %v3448 = vmax.f32 %v3320, 0.0
        %v3449 = vmax.f32 %v3321, 0.0
        %v3450 = vmax.f32 %v3322, 0.0
        %v3451 = vmax.f32 %v3323, 0.0
        %v3452 = vmax.f32 %v3324, 0.0
        %v3453 = vmax.f32 %v3325, 0.0
        %v3454 = vmax.f32 %v3326, 0.0
        %v3455 = vmax.f32 %v3327, 0.0
        %v3456 = vmax.f32 %v3328, 0.0
        %v3457 = vmax.f32 %v3329, 0.0
        %v3458 = vmax.f32 %v3330, 0.0
        %v3459 = vmax.f32 %v3331, 0.0
        %v3460 = vmax.f32 %v3332, 0.0
        %v3461 = vmax.f32 %v3333, 0.0
        %v3462 = vmax.f32 %v3334, 0.0
        %v3463 = vmax.f32 %v3335, 0.0
        %v3464 = vmax.f32 %v3336, 0.0
        %v3465 = vmax.f32 %v3337, 0.0
        %v3466 = vmax.f32 %v3338, 0.0
        %v3467 = vmax.f32 %v3339, 0.0
        %v3468 = vmax.f32 %v3340, 0.0
        %v3469 = vmax.f32 %v3341, 0.0
        %v3470 = vmax.f32 %v3342, 0.0
        %v3471 = vld [vmem:[#allocation2] sm:$0xff]
        %v3472 = vadd.f32 %v3343, %v3344
        %v3473 = vadd.f32 %v3472, %v3345
        %v3474 = vadd.f32 %v3473, %v3346
        %v3475 = vadd.f32 %v3474, %v3347
        %v3476 = vadd.f32 %v3475, %v3348
        %v3477 = vadd.f32 %v3476, %v3349
        %v3478 = vadd.f32 %v3477, %v3350
        %v3479 = vadd.f32 %v3478, %v3351
        %v3480 = vadd.f32 %v3479, %v3352
        %v3481 = vadd.f32 %v3480, %v3353
        %v3482 = vadd.f32 %v3481, %v3354
        %v3483 = vadd.f32 %v3482, %v3355
        %v3484 = vadd.f32 %v3483, %v3356
        %v3485 = vadd.f32 %v3484, %v3357
        %v3486 = vadd.f32 %v3485, %v3358
        %v3487 = vrot.slane %v3486, 4
        %v3488 = vadd.f32 %v3486, %v3487
        %v3489 = vrot.slane %v3488, 2
        %v3490 = vadd.f32 %v3488, %v3489
        %v3491 = vrot.slane %v3490, 1
        %v3492 = vadd.f32 %v3490, %v3491
        %v3493 = vadd.f32 %v3359, %v3360
        %v3494 = vadd.f32 %v3493, %v3361
        %v3495 = vadd.f32 %v3494, %v3362
        %v3496 = vadd.f32 %v3495, %v3363
        %v3497 = vadd.f32 %v3496, %v3364
        %v3498 = vadd.f32 %v3497, %v3365
        %v3499 = vadd.f32 %v3498, %v3366
        %v3500 = vadd.f32 %v3499, %v3367
        %v3501 = vadd.f32 %v3500, %v3368
        %v3502 = vadd.f32 %v3501, %v3369
        %v3503 = vadd.f32 %v3502, %v3370
        %v3504 = vadd.f32 %v3503, %v3371
        %v3505 = vadd.f32 %v3504, %v3372
        %v3506 = vadd.f32 %v3505, %v3373
        %v3507 = vadd.f32 %v3506, %v3374
        %v3508 = vrot.slane %v3507, 4
        %v3509 = vadd.f32 %v3507, %v3508
        %v3510 = vrot.slane %v3509, 2
        %v3511 = vadd.f32 %v3509, %v3510
        %v3512 = vrot.slane %v3511, 1
        %v3513 = vadd.f32 %v3511, %v3512
        %v3514 = vadd.f32 %v3375, %v3376
        %v3515 = vadd.f32 %v3514, %v3377
        %v3516 = vadd.f32 %v3515, %v3378
        %v3517 = vadd.f32 %v3516, %v3379
        %v3518 = vadd.f32 %v3517, %v3380
        %v3519 = vadd.f32 %v3518, %v3381
        %v3520 = vadd.f32 %v3519, %v3382
        %v3521 = vadd.f32 %v3520, %v3383
        %v3522 = vadd.f32 %v3521, %v3384
        %v3523 = vadd.f32 %v3522, %v3385
        %v3524 = vadd.f32 %v3523, %v3386
        %v3525 = vadd.f32 %v3524, %v3387
        %v3526 = vadd.f32 %v3525, %v3388
        %v3527 = vadd.f32 %v3526, %v3389
        %v3528 = vadd.f32 %v3527, %v3390
        %v3529 = vrot.slane %v3528, 4
        %v3530 = vadd.f32 %v3528, %v3529
        %v3531 = vrot.slane %v3530, 2
        %v3532 = vadd.f32 %v3530, %v3531
        %v3533 = vrot.slane %v3532, 1
        %v3534 = vadd.f32 %v3532, %v3533
        %v3535 = vadd.f32 %v3391, %v3392
        %v3536 = vadd.f32 %v3535, %v3393
        %v3537 = vadd.f32 %v3536, %v3394
        %v3538 = vadd.f32 %v3537, %v3395
        %v3539 = vadd.f32 %v3538, %v3396
        %v3540 = vadd.f32 %v3539, %v3397
        %v3541 = vadd.f32 %v3540, %v3398
        %v3542 = vadd.f32 %v3541, %v3399
        %v3543 = vadd.f32 %v3542, %v3400
        %v3544 = vadd.f32 %v3543, %v3401
        %v3545 = vadd.f32 %v3544, %v3402
        %v3546 = vadd.f32 %v3545, %v3403
        %v3547 = vadd.f32 %v3546, %v3404
        %v3548 = vadd.f32 %v3547, %v3405
        %v3549 = vadd.f32 %v3548, %v3406
        %v3550 = vrot.slane %v3549, 4
        %v3551 = vadd.f32 %v3549, %v3550
        %v3552 = vrot.slane %v3551, 2
        %v3553 = vadd.f32 %v3551, %v3552
        %v3554 = vrot.slane %v3553, 1
        %v3555 = vadd.f32 %v3553, %v3554
        %v3556 = vadd.f32 %v3407, %v3408
        %v3557 = vadd.f32 %v3556, %v3409
        %v3558 = vadd.f32 %v3557, %v3410
        %v3559 = vadd.f32 %v3558, %v3411
        %v3560 = vadd.f32 %v3559, %v3412
        %v3561 = vadd.f32 %v3560, %v3413
        %v3562 = vadd.f32 %v3561, %v3414
        %v3563 = vadd.f32 %v3562, %v3415
        %v3564 = vadd.f32 %v3563, %v3416
        %v3565 = vadd.f32 %v3564, %v3417
        %v3566 = vadd.f32 %v3565, %v3418
        %v3567 = vadd.f32 %v3566, %v3419
        %v3568 = vadd.f32 %v3567, %v3420
        %v3569 = vadd.f32 %v3568, %v3421
        %v3570 = vadd.f32 %v3569, %v3422
        %v3571 = vrot.slane %v3570, 4
        %v3572 = vadd.f32 %v3570, %v3571
        %v3573 = vrot.slane %v3572, 2
        %v3574 = vadd.f32 %v3572, %v3573
        %v3575 = vrot.slane %v3574, 1
        %v3576 = vadd.f32 %v3574, %v3575
        %v3577 = vadd.f32 %v3423, %v3424
        %v3578 = vadd.f32 %v3577, %v3425
        %v3579 = vadd.f32 %v3578, %v3426
        %v3580 = vadd.f32 %v3579, %v3427
        %v3581 = vadd.f32 %v3580, %v3428
        %v3582 = vadd.f32 %v3581, %v3429
        %v3583 = vadd.f32 %v3582, %v3430
        %v3584 = vadd.f32 %v3583, %v3431
        %v3585 = vadd.f32 %v3584, %v3432
        %v3586 = vadd.f32 %v3585, %v3433
        %v3587 = vadd.f32 %v3586, %v3434
        %v3588 = vadd.f32 %v3587, %v3435
        %v3589 = vadd.f32 %v3588, %v3436
        %v3590 = vadd.f32 %v3589, %v3437
        %v3591 = vadd.f32 %v3590, %v3438
        %v3592 = vrot.slane %v3591, 4
        %v3593 = vadd.f32 %v3591, %v3592
        %v3594 = vrot.slane %v3593, 2
        %v3595 = vadd.f32 %v3593, %v3594
        %v3596 = vrot.slane %v3595, 1
        %v3597 = vadd.f32 %v3595, %v3596
        %v3598 = vadd.f32 %v3439, %v3440
        %v3599 = vadd.f32 %v3598, %v3441
        %v3600 = vadd.f32 %v3599, %v3442
        %v3601 = vadd.f32 %v3600, %v3443
        %v3602 = vadd.f32 %v3601, %v3444
        %v3603 = vadd.f32 %v3602, %v3445
        %v3604 = vadd.f32 %v3603, %v3446
        %v3605 = vadd.f32 %v3604, %v3447
        %v3606 = vadd.f32 %v3605, %v3448
        %v3607 = vadd.f32 %v3606, %v3449
        %v3608 = vadd.f32 %v3607, %v3450
        %v3609 = vadd.f32 %v3608, %v3451
        %v3610 = vadd.f32 %v3609, %v3452
        %v3611 = vadd.f32 %v3610, %v3453
        %v3612 = vadd.f32 %v3611, %v3454
        %v3613 = vrot.slane %v3612, 4
        %v3614 = vadd.f32 %v3612, %v3613
        %v3615 = vrot.slane %v3614, 2
        %v3616 = vadd.f32 %v3614, %v3615
        %v3617 = vrot.slane %v3616, 1
        %v3618 = vadd.f32 %v3616, %v3617
        %v3619 = vadd.f32 %v3455, %v3456
        %v3620 = vadd.f32 %v3619, %v3457
        %v3621 = vadd.f32 %v3620, %v3458
        %v3622 = vadd.f32 %v3621, %v3459
        %v3623 = vadd.f32 %v3622, %v3460
        %v3624 = vadd.f32 %v3623, %v3461
        %v3625 = vadd.f32 %v3624, %v3462
        %v3626 = vadd.f32 %v3625, %v3463
        %v3627 = vadd.f32 %v3626, %v3464
        %v3628 = vadd.f32 %v3627, %v3465
        %v3629 = vadd.f32 %v3628, %v3466
        %v3630 = vadd.f32 %v3629, %v3467
        %v3631 = vadd.f32 %v3630, %v3468
        %v3632 = vadd.f32 %v3631, %v3469
        %v3633 = vadd.f32 %v3632, %v3470
        %v3634 = vrot.slane %v3633, 4
        %v3635 = vadd.f32 %v3633, %v3634
        %v3636 = vrot.slane %v3635, 2
        %v3637 = vadd.f32 %v3635, %v3636
        %v3638 = vrot.slane %v3637, 1
        %v3639 = vadd.f32 %v3637, %v3638
        %vm3648 = vcmask 1041409
        %v3649 = vsel %vm3648, %v3513, %v3492
        %vm3650 = vcmask 1042434
        %v3651 = vsel %vm3650, %v3534, %v3649
        %vm3652 = vcmask 1043459
        %v3653 = vsel %vm3652, %v3555, %v3651
        %vm3654 = vcmask 1044484
        %v3655 = vsel %vm3654, %v3576, %v3653
        %vm3656 = vcmask 1045509
        %v3657 = vsel %vm3656, %v3597, %v3655
        %vm3658 = vcmask 1046534
        %v3659 = vsel %vm3658, %v3618, %v3657
        %vm3660 = vcmask 1047559
        %v3661 = vsel %vm3660, %v3639, %v3659
        %v3663 = vadd.f32 %v3471, %v3661
        %3664 = vst [vmem:[#allocation2] sm:$0xff] %v3663
        %p3665 = scmp.eq.s32.totalorder %s17, 1
        // Predicated region
        $region83: #{tpu_custom_call.1} parent=73 // pred_check
          %p3666 = pneg %p3665
        $region84: #{tpu_custom_call.1} parent=73 // pred_check_branch
          %3668 = sbr.rel (%p3666) target = $region86
        $region85: #{tpu_custom_call.1} parent=73 // pred_region
          %v3669 = vld [vmem:[#allocation2] sm:$0xff]
          %v3670 = vmul.f32 %v3669, 0.00390625
          %v3671 = vpack.c.bf16 %v3670, %v3670
          %v3672 = vld [vmem:[%s3] sm:$0xf]
          %v3673 = vld [vmem:[%s3 + $0x4] sm:$0xf]
          %v3674 = vld [vmem:[%s3 + $0x8] sm:$0xf]
          %v3675 = vld [vmem:[%s3 + $0xc] sm:$0xf]
          %v3676 = vld [vmem:[%s3 + $0x10] sm:$0xf]
          %v3677 = vld [vmem:[%s3 + $0x14] sm:$0xf]
          %v3678 = vld [vmem:[%s3 + $0x18] sm:$0xf]
          %v3679 = vld [vmem:[%s3 + $0x1c] sm:$0xf]
          %v3680 = vld [vmem:[%s3 + $0x20] sm:$0xf]
          %v3681 = vld [vmem:[%s3 + $0x24] sm:$0xf]
          %v3682 = vld [vmem:[%s3 + $0x28] sm:$0xf]
          %v3683 = vld [vmem:[%s3 + $0x2c] sm:$0xf]
          %v3684 = vld [vmem:[%s3 + $0x30] sm:$0xf]
          %v3685 = vld [vmem:[%s3 + $0x34] sm:$0xf]
          %v3686 = vld [vmem:[%s3 + $0x38] sm:$0xf]
          %v3687 = vld [vmem:[%s3 + $0x3c] sm:$0xf]
          %v3688 = vld [vmem:[%s4] sm:$0x1]
          %v3690 = vlaneseq
          %v3691 = vshrl.u32 %v3690, 7
          %v3692 = vsub.s32 0, %v3691
          %v3693 = vrot.slane %v3688, %v3692
          %v3711 = vunpack.c.l.b16 %v3672
          %v3712 = vunpack.c.l.b16 %v3673
          %v3713 = vunpack.c.l.b16 %v3674
          %v3714 = vunpack.c.l.b16 %v3675
          %v3715 = vunpack.c.l.b16 %v3676
          %v3716 = vunpack.c.l.b16 %v3677
          %v3717 = vunpack.c.l.b16 %v3678
          %v3718 = vunpack.c.l.b16 %v3679
          %v3719 = vunpack.c.l.b16 %v3680
          %v3720 = vunpack.c.l.b16 %v3681
          %v3721 = vunpack.c.l.b16 %v3682
          %v3722 = vunpack.c.l.b16 %v3683
          %v3723 = vunpack.c.l.b16 %v3684
          %v3724 = vunpack.c.l.b16 %v3685
          %v3725 = vunpack.c.l.b16 %v3686
          %v3726 = vunpack.c.l.b16 %v3687
          %v3727 = vpack.c.b16 %v3712, %v3711
          %v3728 = vpack.c.b16 %v3714, %v3713
          %v3729 = vpack.c.b16 %v3716, %v3715
          %v3730 = vpack.c.b16 %v3718, %v3717
          %v3731 = vpack.c.b16 %v3720, %v3719
          %v3732 = vpack.c.b16 %v3722, %v3721
          %v3733 = vpack.c.b16 %v3724, %v3723
          %v3734 = vpack.c.b16 %v3726, %v3725
          %3743 = vmatprep.subr.bf16.mxu0 0
          %3744 = vmatpush1.bf16.msra.mxu0 %v3727
          %3745 = vmatprep.subr.bf16.mxu0 0
          %3746 = vmatpush1.bf16.msra.mxu0 %v3728
          %3747 = vmatprep.subr.bf16.mxu0 0
          %3748 = vmatpush1.bf16.msra.mxu0 %v3729
          %3749 = vmatprep.subr.bf16.mxu0 0
          %3750 = vmatpush1.bf16.msra.mxu0 %v3730
          %3751 = vmatprep.subr.bf16.mxu0 0
          %3752 = vmatpush1.bf16.msra.mxu0 %v3731
          %3753 = vmatprep.subr.bf16.mxu0 0
          %3754 = vmatpush1.bf16.msra.mxu0 %v3732
          %3755 = vmatprep.subr.bf16.mxu0 0
          %3756 = vmatpush1.bf16.msra.mxu0 %v3733
          %3757 = vmatprep.subr.bf16.mxu0 0
          %3758 = vmatpush1.bf16.msra.mxu0 %v3734
          %3759 = vmatprep.subr.bf16.mxu0 0
          %3760 = vmatpush1.bf16.msra.mxu0 0
          %3761 = vmatprep.subr.bf16.mxu0 0
          %3762 = vmatpush1.bf16.msra.mxu0 0
          %3763 = vmatprep.subr.bf16.mxu0 0
          %3764 = vmatpush1.bf16.msra.mxu0 0
          %3765 = vmatprep.subr.bf16.mxu0 0
          %3766 = vmatpush1.bf16.msra.mxu0 0
          %3767 = vmatprep.subr.bf16.mxu0 0
          %3768 = vmatpush1.bf16.msra.mxu0 0
          %3769 = vmatprep.subr.bf16.mxu0 0
          %3770 = vmatpush1.bf16.msra.mxu0 0
          %3771 = vmatprep.subr.bf16.mxu0 0
          %3772 = vmatpush1.bf16.msra.mxu0 0
          %3773 = vmatprep.subr.bf16.mxu0 0
          %3774 = vmatpush1.bf16.msra.mxu0 0
          %3775 = vmatprep.mubr.bf16.mxu0 0
          %3776 = vmatmul.mubr.bf16.gmra.mrb[0].mxu0 %v3671
          %v3777 = vpop.f32.mrb[0].mxu0
          %v3778 = vadd.f32 %v3693, %v3777
          %v3779 = vpop.f32.mrb[0].mxu0
          %v3780 = vpop.f32.mrb[0].mxu0
          %v3781 = vpop.f32.mrb[0].mxu0
          %3782 = vdwg.mxu0
          %3783 = vst [vmem:[#allocation4] sm:$0xff] %v3778
        $region86: #{tpu_custom_call.1} parent=73 // pred_fallthru
          _
        // Predicated region
        $region87: #{tpu_custom_call.1} parent=73 // pred_check
          %p3784 = pneg %p140
        $region88: #{tpu_custom_call.1} parent=73 // pred_check_branch
          %3786 = sbr.rel (%p3784) target = $region90
        $region89: #{tpu_custom_call.1} parent=73 // pred_region
          %s3788 = ssub.s32 128, 128
          %3789 = vsyncadd [#allocation5], %s3788
          %s3791 = sshll.u32 [#allocation4], 4
          %s3792 = int_to_ptr.vmem [resolvable:$true] %s3791
          %3794 = dma.vmem_to_hbm [thread:$0]  %s3792, 128, %s5, [#allocation5]
        $region90: #{tpu_custom_call.1} parent=73 // pred_fallthru
          _
        // Predicated region
        $region91: #{tpu_custom_call.1} parent=73 // pred_check
          %p3795 = pneg %p140
        $region92: #{tpu_custom_call.1} parent=73 // pred_check_branch
          %3797 = sbr.rel (%p3795) target = $region94
        $region93: #{tpu_custom_call.1} parent=73 // pred_region
          %3798 = dma.done [#allocation5], 128
        $region94: #{tpu_custom_call.1} parent=73 // pred_fallthru
          _
      $region74: #{tpu_custom_call.1} parent=5 // pred_fallthru
        _
      %p3799 = scmp.le.s32.totalorder 2, %s12
      // Predicated region
      $region95: #{tpu_custom_call.1} parent=5 // pred_check
        %p3800 = pneg %p3799
      $region96: #{tpu_custom_call.1} parent=5 // pred_check_branch
        %3802 = sbr.rel (%p3800) target = $region98
      $region97: #{tpu_custom_call.1} parent=5 // pred_region
        %s3803 = ssub.s32 %s12, 2
      $region98: #{tpu_custom_call.1} parent=5 // pred_fallthru
        _
    $region6: #{tpu_custom_call.1} parent=1 // loop_footer
      %s16 = sadd.s32 1, %s12
    $region7: #{tpu_custom_call.1} parent=1 // loop_footer_branch
      %11 = sbr.rel target = $region3
    $region8: #{tpu_custom_call.1} parent=1 // loop_exit
      _
    %3804 = vsyncpa [#allocation5], 1
    %s3805 = scalar_lea.sflag [#allocation5], 1
    %3806 = vsyncpa %s3805, 1

</llo_original>
